<compile_context>
chip_gen: v7x
topology: tpu7x:2x2x1
jax: 0.10.0
libtpu: 0.0.40
codegen_flags: <defaults>
</compile_context>

<pallas_src>
import functools

import jax
import jax.numpy as jnp
from jax import lax
from jax.experimental import pallas as pl
from jax.experimental.pallas import tpu as pltpu


# Above the 16/32 MiB scoped defaults on v5e/v6e, below v7x's 64 MiB physical,
# with headroom for the ~32-35 MB of double-buffered best-match blocks at
# TP=1024 / TQ=512 / CKp=4608.
_VMEM_LIMIT = 56 * 1024 * 1024


def _round_up(x, m):
    return (x + m - 1) // m * m


# ----------------------------------------------------------------------------
# Pallas kernel 1: best-matching style patch per content pixel
# ----------------------------------------------------------------------------
def _best_match_kernel(a_ref, st_ref, idx_ref, m_ref, *, tq, q_rem):
    """Online (flash-style) argmax of normalized patch scores over style patches.

    grid = (B, P_tiles, Q_tiles); Q is the streamed reduction ("arbitrary") axis.
      a_ref   : (1, TP, CKp) bf16  content patches for this P tile
      st_ref  : (1, CKp, TQ) bf16  style patches, pre-transposed AND pre-scaled
                                   by 1/||s||_2 (lane axis = Q)
      idx_ref : (1, TP, 1)   i32   output: winning style-patch index (VMEM-resident
                                   across the Q axis — accumulator pattern)
      m_ref   : (TP, 1)      f32   scratch: running max normalized score
      tq      : static Q tile size
      q_rem   : static Q % TQ (0 => no padded columns => no masking emitted)
    """
    q = pl.program_id(2)

    @pl.when(q == 0)
    def _init():
        m_ref[...] = jnp.full_like(m_ref, -jnp.inf)
        idx_ref[...] = jnp.zeros_like(idx_ref)

    a = a_ref[0]        # (TP, CKp) bf16
    st = st_ref[0]      # (CKp, TQ) bf16 (already column-normalized)

    # Normalized patch score (normalization folded into st in the wrapper).
    scores = jnp.dot(a, st, preferred_element_type=jnp.float32)         # (TP, TQ)

    # Local column iota (0..TQ-1); padded-column masking is only emitted when
    # padding statically exists, and only the last Q tile ever has a short limit.
    col = lax.broadcasted_iota(jnp.int32, scores.shape, 1)
    if q_rem:
        limit = jnp.where(q == pl.num_programs(2) - 1, q_rem, tq)
        scores = jnp.where(col < limit, scores, -jnp.inf)

    # First-max-wins argmax within this Q tile (local index, offset added once).
    tile_max = jnp.max(scores, axis=-1, keepdims=True)                  # (TP, 1)
    tile_arg = jnp.min(jnp.where(scores == tile_max, col, jnp.int32(2 ** 30)),
                       axis=-1, keepdims=True) + q * tq                 # (TP, 1)

    # Strictly-greater: earlier tiles win ties -> global first-max-wins.
    better = tile_max > m_ref[...]
    m_ref[...] = jnp.where(better, tile_max, m_ref[...])
    idx_ref[0] = jnp.where(better, tile_arg, idx_ref[0])


def pallas_best_match(content_patches, style_t_norm, *, tp=1024, tq=512):
    """content (B, P, CK) bf16, style (B, CK, Q) bf16 (column-normalized)
    -> (B, P) int32 best style-patch index.

    TP=1024 cuts style-block HBM re-reads 4x vs TP=256 (the style block is
    re-streamed per P tile), making the kernel MXU-bound at realistic AvatarNet
    sizes.  TQ=512 keeps double-buffered blocks under v7x's 64 MiB VMEM per TC;
    v6e/v5e (128 MiB VMEM) can raise TQ to 1024-2048 and the vmem limit further.
    """
    B, P, CK = content_patches.shape
    Bs, CK2, Q = style_t_norm.shape
    assert B == Bs and CK == CK2

    TP = tp if P >= tp else _round_up(P, 16)
    TQ = tq if Q >= tq else _round_up(Q, 128)
    CKp = _round_up(CK, 128)          # 128-aligned contraction (MXU friendly)
    P_pad = _round_up(P, TP)
    Q_pad = _round_up(Q, TQ)

    a = content_patches.astype(jnp.bfloat16)
    if (P_pad, CKp) != (P, CK):
        a = jnp.pad(a, ((0, 0), (0, P_pad - P), (0, CKp - CK)))
    st = style_t_norm.astype(jnp.bfloat16)
    if (CKp, Q_pad) != (CK, Q):
        st = jnp.pad(st, ((0, 0), (0, CKp - CK), (0, Q_pad - Q)))

    # TODO(synk): fp8 (v7x) / int8 (v6e,v5e) quantized operands with per-row /
    # per-column scales would double MXU rate and halve the style stream.
    q_rem = Q % TQ
    kernel = functools.partial(_best_match_kernel, tq=TQ, q_rem=q_rem)
    idx = pl.pallas_call(
        kernel,
        out_shape=jax.ShapeDtypeStruct((B, P_pad, 1), jnp.int32),
        grid=(B, P_pad // TP, Q_pad // TQ),
        in_specs=[
            pl.BlockSpec((1, TP, CKp), lambda b, p, q: (b, p, 0)),
            pl.BlockSpec((1, CKp, TQ), lambda b, p, q: (b, 0, q)),
        ],
        out_specs=pl.BlockSpec((1, TP, 1), lambda b, p, q: (b, p, 0)),
        scratch_shapes=[pltpu.VMEM((TP, 1), jnp.float32)],
        compiler_params=pltpu.CompilerParams(
            dimension_semantics=("parallel", "parallel", "arbitrary"),
            vmem_limit_bytes=_VMEM_LIMIT,
        ),
    )(a, st)
    return idx[:, :P, 0]


# ----------------------------------------------------------------------------
# Pallas kernel 2: covariance A @ A^T (K-tiled, output block is the accumulator)
# ----------------------------------------------------------------------------
def _cov_kernel(x_ref, o_ref):
    @pl.when(pl.program_id(1) == 0)
    def _init():
        o_ref[...] = jnp.zeros_like(o_ref)

    x = x_ref[0]                                           # (C, TK) f32
    # TODO(synk): if the XLU transpose of x becomes the binding slot at large C,
    # feed a second pre-transposed (B, K, C) stream from HBM instead.
    o_ref[0] += lax.dot_general(x, x, (((1,), (1,)), ((), ())),
                                preferred_element_type=jnp.float32)


def pallas_cov(x, *, tk=4096):
    """x: (B, C, K) f32 (already mean-centered) -> (B, C, C) = x @ x^T per batch."""
    B, C, K = x.shape
    x = x.astype(jnp.float32)
    TK = K if K <= tk else tk
    K_pad = _round_up(K, TK)
    if K_pad != K:
        x = jnp.pad(x, ((0, 0), (0, 0), (0, K_pad - K)))   # zero cols: exact
    return pl.pallas_call(
        _cov_kernel,
        out_shape=jax.ShapeDtypeStruct((B, C, C), jnp.float32),
        grid=(B, K_pad // TK),
        in_specs=[pl.BlockSpec((1, C, TK), lambda b, k: (b, 0, k))],
        out_specs=pl.BlockSpec((1, C, C), lambda b, k: (b, 0, 0)),
        compiler_params=pltpu.CompilerParams(
            dimension_semantics=("parallel", "arbitrary"),
            vmem_limit_bytes=_VMEM_LIMIT,
        ),
    )(x)


# ----------------------------------------------------------------------------
# Pallas kernel 3: batched matmul, N-tiled (ZCA transform application)
# ----------------------------------------------------------------------------
def _bmm_kernel(a_ref, b_ref, o_ref):
    o_ref[0] = jnp.dot(a_ref[0], b_ref[0], preferred_element_type=jnp.float32)


def pallas_bmm(a, b, *, tn=2048):
    """(B, M, K) @ (B, K, N) -> (B, M, N) f32. K (=C) is small in all uses; N tiled.

    TN=2048 amortizes per-grid-step overhead and keeps stores lane-dense while
    blocks stay far below even v7x's 64 MiB VMEM.
    """
    B, M, K = a.shape
    Bb, K2, N = b.shape
    assert B == Bb and K == K2
    a = a.astype(jnp.float32)
    b = b.astype(jnp.float32)
    TN = N if N <= tn else tn
    N_pad = _round_up(N, TN)
    if N_pad != N:
        b = jnp.pad(b, ((0, 0), (0, 0), (0, N_pad - N)))
    out = pl.pallas_call(
        _bmm_kernel,
        out_shape=jax.ShapeDtypeStruct((B, M, N_pad), jnp.float32),
        grid=(B, N_pad // TN),
        in_specs=[
            pl.BlockSpec((1, M, K), lambda i, j: (i, 0, 0)),
            pl.BlockSpec((1, K, TN), lambda i, j: (i, 0, j)),
        ],
        out_specs=pl.BlockSpec((1, M, TN), lambda i, j: (i, 0, j)),
        compiler_params=pltpu.CompilerParams(
            dimension_semantics=("parallel", "parallel"),
            vmem_limit_bytes=_VMEM_LIMIT,
        ),
    )(a, b)
    return out[:, :, :N] if N_pad != N else out


# ----------------------------------------------------------------------------
# Plain-JAX glue (patch extraction, overlap-add, gather, eigendecomposition)
# ----------------------------------------------------------------------------
def _im2col_views(x, k, stride):
    """k*k shifted views, each (B, C, Hp, Wp); view index = di*k + dj."""
    B, C, H, W = x.shape
    pad = (k - 1) // 2
    xp = jnp.pad(x, ((0, 0), (0, 0), (pad, pad), (pad, pad)))
    Hp = (H + 2 * pad - k) // stride + 1
    Wp = (W + 2 * pad - k) // stride + 1
    views = []
    for di in range(k):
        for dj in range(k):
            views.append(xp[:, :, di:di + stride * Hp:stride,
                            dj:dj + stride * Wp:stride])
    return views, Hp, Wp


def im2col(x, k=3, stride=1):
    """(B, C, H, W) -> (B, Hp*Wp, C*k*k). Matches extract_patches (pad (k-1)//2).

    Flat CK index = c*k*k + di*k + dj.
    """
    views, Hp, Wp = _im2col_views(x, k, stride)
    B, C = x.shape[:2]
    p = jnp.stack(views, axis=-1)                # (B, C, Hp, Wp, kk)
    p = jnp.transpose(p, (0, 2, 3, 1, 4))        # (B, Hp, Wp, C, kk)
    return p.reshape(B, Hp * Wp, C * k * k)


def im2col_t(x, k=3, stride=1):
    """(B, C, H, W) -> (B, C*k*k, Hp*Wp): same CK ordering, lane axis = patch index.

    Built by stacking the shifted views along a small leading axis — no transpose
    of the wide patch axis is ever materialized.
    """
    views, Hp, Wp = _im2col_views(x, k, stride)
    B, C = x.shape[:2]
    p = jnp.stack(views, axis=2)                 # (B, C, kk, Hp, Wp)
    return p.reshape(B, C * k * k, Hp * Wp)


def col2im_add(g, H, W, k=3):
    """Overlap-add of per-pixel patches: (B, H*W, C*k*k) -> (B, C, H, W).

    Equivalent to conv_transpose2d(padded one-hot, style kernels, padding=k-1).
    """
    B, P, CK = g.shape
    C = CK // (k * k)
    pad = (k - 1) // 2
    gr = g.reshape(B, H, W, C, k, k)
    gr = jnp.transpose(gr, (0, 3, 1, 2, 4, 5))   # (B, C, H, W, k, k)
    out = jnp.zeros((B, C, H + 2 * pad, W + 2 * pad), jnp.float32)
    for di in range(k):
        for dj in range(k):
            out = out.at[:, :, di:di + H, dj:dj + W].add(gr[:, :, :, :, di, dj])
    if pad:
        out = out[:, :, pad:-pad, pad:-pad]
    return out


def norm_deconvolution(h, w, patch_size):
    ones = jnp.ones((h, w), jnp.float32)
    full = jnp.zeros((h + patch_size - 1, w + patch_size - 1), jnp.float32)
    for i in range(patch_size):
        for j in range(patch_size):
            full = full.at[j:j + h, i:i + w].add(ones)
    pad = (patch_size - 1) // 2
    dn = full if pad == 0 else full[pad:-pad, pad:-pad]
    return dn.reshape(1, 1, h, w)


def _zca_transform(cov, power, eps=1e-8):
    # TODO(synk): eigendecomposition (torch.svd) has no Pallas equivalent; done in XLA.
    s, u = jnp.linalg.eigh(cov)            # cov symmetric PSD, (B, C, C)
    d = jnp.clip(s, eps, None) ** power    # (B, C)
    return pallas_bmm(u * d[:, None, :], jnp.swapaxes(u, 1, 2))


def whitening(x):
    B, C, H, W = x.shape
    xf = x.reshape(B, C, H * W).astype(jnp.float32)
    mean = jnp.mean(xf, axis=-1, keepdims=True)
    xc = xf - mean
    cov = pallas_cov(xc) / (H * W - 1)
    wmat = _zca_transform(cov, -0.5)
    return pallas_bmm(wmat, xc).reshape(B, C, H, W)


def coloring(x, target):
    B, C, H, W = x.shape
    xf = x.reshape(B, C, H * W).astype(jnp.float32)
    tf = target.reshape(target.shape[0], C, -1).astype(jnp.float32)
    t_mean = jnp.mean(tf, axis=-1, keepdims=True)
    tc = tf - t_mean
    cov = pallas_cov(tc) / (tc.shape[-1] - 1)
    cmat = _zca_transform(cov, 0.5)
    out = pallas_bmm(cmat, xf) + t_mean
    return out.reshape(B, C, H, W)


def reassemble_feature(ncf, nsf, patch_size, patch_stride):
    B, C, H, W = ncf.shape
    k = patch_size
    CK = C * k * k

    # Content patches for every output pixel (stride 1, pad (k-1)//2), emitted
    # directly in bf16 (MXU operand) — no f32 9x-expanded intermediate + cast pass.
    # TODO(synk): fuse content im2col into the best-match kernel (halo blocks of
    # ncf + in-VMEM shifted views) to drop this HBM intermediate entirely.
    cp = im2col(ncf.astype(jnp.bfloat16), k, 1)                     # (B, H*W, CK)

    # Style kernels via extract_patches (pad (k-1)//2, given stride):
    #  - f32 (B, Q, CK): un-normalized, used for the winning-patch gather/deconv.
    sp = im2col(nsf.astype(jnp.float32), k, patch_stride)           # (B, Q, CK)
    #  - bf16 (B, CK, Q): lane-major matmul RHS built by a transposed stack, with
    #    the per-column 1/||s||_2 normalization folded in once (f32) before cast.
    #    (eps on the squared norm vs F.normalize's eps on the norm: only matters
    #    for near-zero style patches; harmless for the argmax.)
    inv = lax.rsqrt(jnp.sum(sp * sp, axis=-1) + 1e-12)              # (B, Q)
    sp_tn = (im2col_t(nsf.astype(jnp.float32), k, patch_stride)
             * inv[:, None, :]).astype(jnp.bfloat16)                # (B, CK, Q)

    # Fused Pallas kernel: normalized-score matmul + online argmax -> indices.
    best = pallas_best_match(cp, sp_tn)                             # (B, H*W) i32

    # Deconv with the (un-normalized) style kernels == gather the winning patch
    # per pixel (exactly one_hot @ S), then overlap-add.
    g = jnp.take_along_axis(sp, best[:, :, None], axis=1)           # (B, H*W, CK)

    deconv_norm = norm_deconvolution(H, W, k)
    return col2im_add(g, H, W, k) / deconv_norm


# ----------------------------------------------------------------------------
# StyleDecorator forward
# ----------------------------------------------------------------------------
def style_decorator_forward(content_feature, style_feature, style_strength=1.0,
                            patch_size=3, patch_stride=1):
    content_feature = content_feature.astype(jnp.float32)
    style_feature = style_feature.astype(jnp.float32)

    ncf = whitening(content_feature)
    nsf = whitening(style_feature)

    reassembled = reassemble_feature(ncf, nsf, patch_size, patch_stride)

    stylized = coloring(reassembled, style_feature)
    return (1.0 - style_strength) * content_feature + style_strength * stylized


if __name__ == "__main__":
    key = jax.random.PRNGKey(0)
    kc, ks = jax.random.split(key)
    # Small shapes consistent with the module: B=2, C=4, 16x16 feature maps.
    content = jax.random.normal(kc, (2, 4, 16, 16), jnp.float32)
    style = jax.random.normal(ks, (2, 4, 16, 16), jnp.float32)

    fwd = jax.jit(
        functools.partial(style_decorator_forward, patch_size=3, patch_stride=1)
    )
    out = fwd(content, style, 1.0)
    out = jax.block_until_ready(out)

    assert out.shape == content.shape
    assert bool(jnp.all(jnp.isfinite(out)))
    print("KERNEL_OK")
</pallas_src>

<mosaic_0001>
module attributes {stable_mosaic.version = 11 : i64} {
  func.func @_cov_kernel(%arg0: i32, %arg1: i32, %arg2: memref<1x4x256xf32, #tpu.memory_space<vmem>>, %arg3: memref<1x4x4xf32, #tpu.memory_space<vmem>>) attributes {dimension_semantics = [#tpu.dimension_semantics<parallel>, #tpu.dimension_semantics<arbitrary>], iteration_bounds = array<i64: 2, 1>, scalar_prefetch = 0 : i64, scratch_operands = 0 : i64, tpu.core_type = #tpu.core_type<tc>, window_params = [{transform_indices = @transform_0, window_bounds = array<i64: 1, 4, 256>}, {transform_indices = @transform_1, window_bounds = array<i64: 1, 4, 4>}]} {
    %c0_i32 = arith.constant 0 : i32
    %0 = arith.cmpi eq, %arg1, %c0_i32 : i32
    %1 = arith.extui %0 : i1 to i32
    %c0_i32_0 = arith.constant 0 : i32
    %2 = arith.cmpi ne, %1, %c0_i32_0 : i32
    scf.if %2 {
      %cst_9 = arith.constant 0.000000e+00 : f32
      %12 = vector.broadcast %cst_9 : f32 to vector<1x4x4xf32>
      %c0_10 = arith.constant 0 : index
      %c0_11 = arith.constant 0 : index
      %c0_12 = arith.constant 0 : index
      %13 = vector.load %arg3[%c0_10, %c0_11, %c0_12] : memref<1x4x4xf32, #tpu.memory_space<vmem>>, vector<1x4x4xf32>
      tpu.vector_store %arg3[%c0_10, %c0_11, %c0_12], %12 {strides = array<i32>} : memref<1x4x4xf32, #tpu.memory_space<vmem>>, vector<1x4x4xf32>,
    } else {
    }
    %c0 = arith.constant 0 : index
    %c0_1 = arith.constant 0 : index
    %c0_2 = arith.constant 0 : index
    %3 = vector.load %arg2[%c0, %c0_1, %c0_2] : memref<1x4x256xf32, #tpu.memory_space<vmem>>, vector<1x4x256xf32>
    %4 = vector.shape_cast %3 : vector<1x4x256xf32> to vector<4x256xf32>
    %c0_3 = arith.constant 0 : index
    %c0_4 = arith.constant 0 : index
    %c0_5 = arith.constant 0 : index
    %5 = vector.load %arg3[%c0_3, %c0_4, %c0_5] : memref<1x4x4xf32, #tpu.memory_space<vmem>>, vector<1x4x4xf32>
    %6 = vector.shape_cast %5 : vector<1x4x4xf32> to vector<4x4xf32>
    %cst = arith.constant dense<0.000000e+00> : vector<4x4xf32>
    %7 = tpu.matmul %4, %4, %cst {dimension_numbers = #tpu.dot_dimension_numbers<[1], [1], [0], [0], [0, 0, 1, 0], [], []>} : vector<4x256xf32>, vector<4x256xf32>, vector<4x4xf32> -> vector<4x4xf32>
    %8 = arith.addf %6, %7 : vector<4x4xf32>
    %c0_6 = arith.constant 0 : index
    %c0_7 = arith.constant 0 : index
    %c0_8 = arith.constant 0 : index
    %9 = vector.load %arg3[%c0_6, %c0_7, %c0_8] : memref<1x4x4xf32, #tpu.memory_space<vmem>>, vector<1x4x4xf32>
    %10 = vector.shape_cast %9 : vector<1x4x4xf32> to vector<4x4xf32>
    %11 = vector.shape_cast %8 : vector<4x4xf32> to vector<1x4x4xf32>
    tpu.vector_store %arg3[%c0_6, %c0_7, %c0_8], %11 {strides = array<i32>} : memref<1x4x4xf32, #tpu.memory_space<vmem>>, vector<1x4x4xf32>,
    return
  }
  func.func @transform_0(%arg0: i32, %arg1: i32) -> (i32, i32, i32) {
    %c0_i32 = arith.constant 0 : i32
    %c0_i32_0 = arith.constant 0 : i32
    return %arg0, %c0_i32, %arg1 : i32, i32, i32
  }
  func.func @transform_1(%arg0: i32, %arg1: i32) -> (i32, i32, i32) {
    %c0_i32 = arith.constant 0 : i32
    %c0_i32_0 = arith.constant 0 : i32
    %c0_i32_1 = arith.constant 0 : i32
    return %arg0, %c0_i32, %c0_i32_0 : i32, i32, i32
  }
}

module attributes {stable_mosaic.version = 11 : i64} {
  func.func @_bmm_kernel(%arg0: i32, %arg1: i32, %arg2: memref<1x4x4xf32, #tpu.memory_space<vmem>>, %arg3: memref<1x4x4xf32, #tpu.memory_space<vmem>>, %arg4: memref<1x4x4xf32, #tpu.memory_space<vmem>>) attributes {dimension_semantics = [#tpu.dimension_semantics<parallel>, #tpu.dimension_semantics<parallel>], iteration_bounds = array<i64: 2, 1>, scalar_prefetch = 0 : i64, scratch_operands = 0 : i64, tpu.core_type = #tpu.core_type<tc>, window_params = [{transform_indices = @transform_0, window_bounds = array<i64: 1, 4, 4>}, {transform_indices = @transform_1, window_bounds = array<i64: 1, 4, 4>}, {transform_indices = @transform_2, window_bounds = array<i64: 1, 4, 4>}]} {
    %c0 = arith.constant 0 : index
    %c0_0 = arith.constant 0 : index
    %c0_1 = arith.constant 0 : index
    %0 = vector.load %arg2[%c0, %c0_0, %c0_1] : memref<1x4x4xf32, #tpu.memory_space<vmem>>, vector<1x4x4xf32>
    %1 = vector.shape_cast %0 : vector<1x4x4xf32> to vector<4x4xf32>
    %c0_2 = arith.constant 0 : index
    %c0_3 = arith.constant 0 : index
    %c0_4 = arith.constant 0 : index
    %2 = vector.load %arg3[%c0_2, %c0_3, %c0_4] : memref<1x4x4xf32, #tpu.memory_space<vmem>>, vector<1x4x4xf32>
    %3 = vector.shape_cast %2 : vector<1x4x4xf32> to vector<4x4xf32>
    %cst = arith.constant dense<0.000000e+00> : vector<4x4xf32>
    %4 = tpu.matmul %1, %3, %cst {dimension_numbers = #tpu.dot_dimension_numbers<[1], [0], [0], [1], [0, 0, 1, 1], [], []>} : vector<4x4xf32>, vector<4x4xf32>, vector<4x4xf32> -> vector<4x4xf32>
    %c0_5 = arith.constant 0 : index
    %c0_6 = arith.constant 0 : index
    %c0_7 = arith.constant 0 : index
    %5 = vector.load %arg4[%c0_5, %c0_6, %c0_7] : memref<1x4x4xf32, #tpu.memory_space<vmem>>, vector<1x4x4xf32>
    %6 = vector.shape_cast %5 : vector<1x4x4xf32> to vector<4x4xf32>
    %7 = vector.shape_cast %4 : vector<4x4xf32> to vector<1x4x4xf32>
    tpu.vector_store %arg4[%c0_5, %c0_6, %c0_7], %7 {strides = array<i32>} : memref<1x4x4xf32, #tpu.memory_space<vmem>>, vector<1x4x4xf32>,
    return
  }
  func.func @transform_0(%arg0: i32, %arg1: i32) -> (i32, i32, i32) {
    %c0_i32 = arith.constant 0 : i32
    %c0_i32_0 = arith.constant 0 : i32
    %c0_i32_1 = arith.constant 0 : i32
    return %arg0, %c0_i32, %c0_i32_0 : i32, i32, i32
  }
  func.func @transform_1(%arg0: i32, %arg1: i32) -> (i32, i32, i32) {
    %c0_i32 = arith.constant 0 : i32
    %c0_i32_0 = arith.constant 0 : i32
    return %arg0, %c0_i32, %arg1 : i32, i32, i32
  }
  func.func @transform_2(%arg0: i32, %arg1: i32) -> (i32, i32, i32) {
    %c0_i32 = arith.constant 0 : i32
    %c0_i32_0 = arith.constant 0 : i32
    return %arg0, %c0_i32, %arg1 : i32, i32, i32
  }
}

module attributes {stable_mosaic.version = 11 : i64} {
  func.func @_bmm_kernel(%arg0: i32, %arg1: i32, %arg2: memref<1x4x4xf32, #tpu.memory_space<vmem>>, %arg3: memref<1x4x256xf32, #tpu.memory_space<vmem>>, %arg4: memref<1x4x256xf32, #tpu.memory_space<vmem>>) attributes {dimension_semantics = [#tpu.dimension_semantics<parallel>, #tpu.dimension_semantics<parallel>], iteration_bounds = array<i64: 2, 1>, scalar_prefetch = 0 : i64, scratch_operands = 0 : i64, tpu.core_type = #tpu.core_type<tc>, window_params = [{transform_indices = @transform_0, window_bounds = array<i64: 1, 4, 4>}, {transform_indices = @transform_1, window_bounds = array<i64: 1, 4, 256>}, {transform_indices = @transform_2, window_bounds = array<i64: 1, 4, 256>}]} {
    %c0 = arith.constant 0 : index
    %c0_0 = arith.constant 0 : index
    %c0_1 = arith.constant 0 : index
    %0 = vector.load %arg2[%c0, %c0_0, %c0_1] : memref<1x4x4xf32, #tpu.memory_space<vmem>>, vector<1x4x4xf32>
    %1 = vector.shape_cast %0 : vector<1x4x4xf32> to vector<4x4xf32>
    %c0_2 = arith.constant 0 : index
    %c0_3 = arith.constant 0 : index
    %c0_4 = arith.constant 0 : index
    %2 = vector.load %arg3[%c0_2, %c0_3, %c0_4] : memref<1x4x256xf32, #tpu.memory_space<vmem>>, vector<1x4x256xf32>
    %3 = vector.shape_cast %2 : vector<1x4x256xf32> to vector<4x256xf32>
    %cst = arith.constant dense<0.000000e+00> : vector<4x256xf32>
    %4 = tpu.matmul %1, %3, %cst {dimension_numbers = #tpu.dot_dimension_numbers<[1], [0], [0], [1], [0, 0, 1, 1], [], []>} : vector<4x4xf32>, vector<4x256xf32>, vector<4x256xf32> -> vector<4x256xf32>
    %c0_5 = arith.constant 0 : index
    %c0_6 = arith.constant 0 : index
    %c0_7 = arith.constant 0 : index
    %5 = vector.load %arg4[%c0_5, %c0_6, %c0_7] : memref<1x4x256xf32, #tpu.memory_space<vmem>>, vector<1x4x256xf32>
    %6 = vector.shape_cast %5 : vector<1x4x256xf32> to vector<4x256xf32>
    %7 = vector.shape_cast %4 : vector<4x256xf32> to vector<1x4x256xf32>
    tpu.vector_store %arg4[%c0_5, %c0_6, %c0_7], %7 {strides = array<i32>} : memref<1x4x256xf32, #tpu.memory_space<vmem>>, vector<1x4x256xf32>,
    return
  }
  func.func @transform_0(%arg0: i32, %arg1: i32) -> (i32, i32, i32) {
    %c0_i32 = arith.constant 0 : i32
    %c0_i32_0 = arith.constant 0 : i32
    %c0_i32_1 = arith.constant 0 : i32
    return %arg0, %c0_i32, %c0_i32_0 : i32, i32, i32
  }
  func.func @transform_1(%arg0: i32, %arg1: i32) -> (i32, i32, i32) {
    %c0_i32 = arith.constant 0 : i32
    %c0_i32_0 = arith.constant 0 : i32
    return %arg0, %c0_i32, %arg1 : i32, i32, i32
  }
  func.func @transform_2(%arg0: i32, %arg1: i32) -> (i32, i32, i32) {
    %c0_i32 = arith.constant 0 : i32
    %c0_i32_0 = arith.constant 0 : i32
    return %arg0, %c0_i32, %arg1 : i32, i32, i32
  }
}

module attributes {stable_mosaic.version = 11 : i64} {
  func.func @_best_match_kernel(%arg0: i32, %arg1: i32, %arg2: i32, %arg3: memref<1x256x128xbf16, #tpu.memory_space<vmem>>, %arg4: memref<1x128x256xbf16, #tpu.memory_space<vmem>>, %arg5: memref<1x256x1xi32, #tpu.memory_space<vmem>>, %arg6: memref<256x1xf32, #tpu.memory_space<vmem>>) attributes {dimension_semantics = [#tpu.dimension_semantics<parallel>, #tpu.dimension_semantics<parallel>, #tpu.dimension_semantics<arbitrary>], iteration_bounds = array<i64: 2, 1, 1>, scalar_prefetch = 0 : i64, scratch_operands = 1 : i64, tpu.core_type = #tpu.core_type<tc>, window_params = [{transform_indices = @transform_0, window_bounds = array<i64: 1, 256, 128>}, {transform_indices = @transform_1, window_bounds = array<i64: 1, 128, 256>}, {transform_indices = @transform_2, window_bounds = array<i64: 1, 256, 1>}]} {
    %c0_i32 = arith.constant 0 : i32
    %0 = arith.cmpi eq, %arg2, %c0_i32 : i32
    %1 = arith.extui %0 : i1 to i32
    %c0_i32_0 = arith.constant 0 : i32
    %2 = arith.cmpi ne, %1, %c0_i32_0 : i32
    scf.if %2 {
      %cst_20 = arith.constant 0xFF800000 : f32
      %31 = vector.broadcast %cst_20 : f32 to vector<256x1xf32>
      %c0_21 = arith.constant 0 : index
      %c0_22 = arith.constant 0 : index
      %32 = vector.load %arg6[%c0_21, %c0_22] : memref<256x1xf32, #tpu.memory_space<vmem>>, vector<256x1xf32>
      tpu.vector_store %arg6[%c0_21, %c0_22], %31 {strides = array<i32>} : memref<256x1xf32, #tpu.memory_space<vmem>>, vector<256x1xf32>,
      %c0_i32_23 = arith.constant 0 : i32
      %33 = vector.broadcast %c0_i32_23 : i32 to vector<1x256x1xi32>
      %c0_24 = arith.constant 0 : index
      %c0_25 = arith.constant 0 : index
      %c0_26 = arith.constant 0 : index
      %34 = vector.load %arg5[%c0_24, %c0_25, %c0_26] : memref<1x256x1xi32, #tpu.memory_space<vmem>>, vector<1x256x1xi32>
      tpu.vector_store %arg5[%c0_24, %c0_25, %c0_26], %33 {strides = array<i32>} : memref<1x256x1xi32, #tpu.memory_space<vmem>>, vector<1x256x1xi32>,
    } else {
    }
    %c0 = arith.constant 0 : index
    %c0_1 = arith.constant 0 : index
    %c0_2 = arith.constant 0 : index
    %3 = vector.load %arg3[%c0, %c0_1, %c0_2] : memref<1x256x128xbf16, #tpu.memory_space<vmem>>, vector<1x256x128xbf16>
    %4 = vector.shape_cast %3 : vector<1x256x128xbf16> to vector<256x128xbf16>
    %c0_3 = arith.constant 0 : index
    %c0_4 = arith.constant 0 : index
    %c0_5 = arith.constant 0 : index
    %5 = vector.load %arg4[%c0_3, %c0_4, %c0_5] : memref<1x128x256xbf16, #tpu.memory_space<vmem>>, vector<1x128x256xbf16>
    %6 = vector.shape_cast %5 : vector<1x128x256xbf16> to vector<128x256xbf16>
    %cst = arith.constant dense<0.000000e+00> : vector<256x256xf32>
    %7 = tpu.matmul %4, %6, %cst {dimension_numbers = #tpu.dot_dimension_numbers<[1], [0], [0], [1], [0, 0, 1, 1], [], []>} : vector<256x128xbf16>, vector<128x256xbf16>, vector<256x256xf32> -> vector<256x256xf32>
    %8 = tpu.iota {dimensions = array<i32: 1>} : vector<256x256xi32>
    %cst_6 = arith.constant dense<0xFF800000> : vector<256xf32>
    %9 = vector.multi_reduction <maximumf>, %7, %cst_6 [1] : vector<256x256xf32> to vector<256xf32>
    %10 = vector.shape_cast %9 : vector<256xf32> to vector<256x1xf32>
    %11 = vector.broadcast %10 : vector<256x1xf32> to vector<256x256xf32>
    %12 = arith.cmpf oeq, %7, %11 : vector<256x256xf32>
    %c1073741824_i32 = arith.constant 1073741824 : i32
    %13 = vector.broadcast %c1073741824_i32 : i32 to vector<256x256xi32>
    %14 = arith.select %12, %8, %13 : vector<256x256xi1>, vector<256x256xi32>
    %cst_7 = arith.constant dense<2147483647> : vector<256xi32>
    %15 = vector.multi_reduction <minsi>, %14, %cst_7 [1] : vector<256x256xi32> to vector<256xi32>
    %16 = vector.shape_cast %15 : vector<256xi32> to vector<256x1xi32>
    %c256_i32 = arith.constant 256 : i32
    %17 = arith.muli %arg2, %c256_i32 : i32
    %18 = vector.broadcast %17 : i32 to vector<256x1xi32>
    %19 = arith.addi %16, %18 : vector<256x1xi32>
    %c0_8 = arith.constant 0 : index
    %c0_9 = arith.constant 0 : index
    %20 = vector.load %arg6[%c0_8, %c0_9] : memref<256x1xf32, #tpu.memory_space<vmem>>, vector<256x1xf32>
    %21 = arith.cmpf ogt, %10, %20 : vector<256x1xf32>
    %c0_10 = arith.constant 0 : index
    %c0_11 = arith.constant 0 : index
    %22 = vector.load %arg6[%c0_10, %c0_11] : memref<256x1xf32, #tpu.memory_space<vmem>>, vector<256x1xf32>
    %23 = arith.select %21, %10, %22 : vector<256x1xi1>, vector<256x1xf32>
    %c0_12 = arith.constant 0 : index
    %c0_13 = arith.constant 0 : index
    %24 = vector.load %arg6[%c0_12, %c0_13] : memref<256x1xf32, #tpu.memory_space<vmem>>, vector<256x1xf32>
    tpu.vector_store %arg6[%c0_12, %c0_13], %23 {strides = array<i32>} : memref<256x1xf32, #tpu.memory_space<vmem>>, vector<256x1xf32>,
    %c0_14 = arith.constant 0 : index
    %c0_15 = arith.constant 0 : index
    %c0_16 = arith.constant 0 : index
    %25 = vector.load %arg5[%c0_14, %c0_15, %c0_16] : memref<1x256x1xi32, #tpu.memory_space<vmem>>, vector<1x256x1xi32>
    %26 = vector.shape_cast %25 : vector<1x256x1xi32> to vector<256x1xi32>
    %27 = arith.select %21, %19, %26 : vector<256x1xi1>, vector<256x1xi32>
    %c0_17 = arith.constant 0 : index
    %c0_18 = arith.constant 0 : index
    %c0_19 = arith.constant 0 : index
    %28 = vector.load %arg5[%c0_17, %c0_18, %c0_19] : memref<1x256x1xi32, #tpu.memory_space<vmem>>, vector<1x256x1xi32>
    %29 = vector.shape_cast %28 : vector<1x256x1xi32> to vector<256x1xi32>
    %30 = vector.shape_cast %27 : vector<256x1xi32> to vector<1x256x1xi32>
    tpu.vector_store %arg5[%c0_17, %c0_18, %c0_19], %30 {strides = array<i32>} : memref<1x256x1xi32, #tpu.memory_space<vmem>>, vector<1x256x1xi32>,
    return
  }
  func.func @transform_0(%arg0: i32, %arg1: i32, %arg2: i32) -> (i32, i32, i32) {
    %c0_i32 = arith.constant 0 : i32
    %c0_i32_0 = arith.constant 0 : i32
    return %arg0, %arg1, %c0_i32 : i32, i32, i32
  }
  func.func @transform_1(%arg0: i32, %arg1: i32, %arg2: i32) -> (i32, i32, i32) {
    %c0_i32 = arith.constant 0 : i32
    %c0_i32_0 = arith.constant 0 : i32
    return %arg0, %c0_i32, %arg2 : i32, i32, i32
  }
  func.func @transform_2(%arg0: i32, %arg1: i32, %arg2: i32) -> (i32, i32, i32) {
    %c0_i32 = arith.constant 0 : i32
    %c0_i32_0 = arith.constant 0 : i32
    return %arg0, %arg1, %c0_i32 : i32, i32, i32
  }
}

</mosaic_0001>

<llo_original>
// kernel: custom-call.5
$region0: #{custom-call.5}
  %s0 = inlined_call_operand.vmem [shape: f32[2,2,2], index: 0, kind: input, shape index: {}]
  %s1 = inlined_call_operand.vmem [shape: f32[2,2,2], index: 1, kind: input, shape index: {}]
  %s2 = inlined_call_operand.vmem [shape: f32[2,2,2], index: 2, kind: input, shape index: {}]
  %s3 = inlined_call_operand.vmem [shape: f32[2,2,2], index: 3, kind: input, shape index: {}]
  %s4 = inlined_call_operand.vmem [shape: f32[2,2], index: 4, kind: output, shape index: {0}]
  %s5 = inlined_call_operand.vmem [shape: f32[2,2], index: 5, kind: output, shape index: {1}]
  %s6 = inlined_call_operand.vmem [shape: f32[2,2,2], index: 6, kind: output, shape index: {2}]
  %s7 = inlined_call_operand.vmem [shape: f32[2,2,2], index: 7, kind: output, shape index: {3}]
  %s8 = inlined_call_operand.vmem [shape: f32[2,2,2], index: 8, kind: output, shape index: {4}]
  %s9 = inlined_call_operand.vmem [shape: f32[2,2,2], index: 9, kind: output, shape index: {5}]
  %10 = xla_tuple %s4, %s5, %s6, %s7, %s8, %s9
  $region1: #{custom-call.5} parent=0
    #allocation0 [shape = 'u8[4096]{0}', space=vmem, size = 0x1000, scoped, tag = 'operand span for operand 0']
    #allocation1 [shape = 'u8[2048]{0}', space=vmem, size = 0x800, scoped, tag = 'packed  for operand 0']
    #allocation2 [shape = 'u8[4096]{0}', space=vmem, size = 0x1000, scoped, tag = 'operand span for operand 1']
    #allocation3 [shape = 'u8[2048]{0}', space=vmem, size = 0x800, scoped, tag = 'packed  for operand 1']
    #allocation4 [shape = 'u8[4096]{0}', space=vmem, size = 0x1000, scoped, tag = 'operand span for operand 2']
    #allocation5 [shape = 'u8[2048]{0}', space=vmem, size = 0x800, scoped, tag = 'packed  for operand 2']
    #allocation6 [shape = 'u8[4096]{0}', space=vmem, size = 0x1000, scoped, tag = 'operand span for operand 3']
    #allocation7 [shape = 'u8[2048]{0}', space=vmem, size = 0x800, scoped, tag = 'packed  for operand 3']
    #allocation8 [shape = 'u8[4096]{0}', space=vmem, size = 0x1000, scoped, tag = 'operand span for operand 4']
    #allocation9 [shape = 'u8[2048]{0}', space=vmem, size = 0x800, scoped, tag = 'packed  for operand 4']
    #allocation10 [shape = 'u8[4096]{0}', space=vmem, size = 0x1000, scoped, tag = 'operand span for operand 5']
    #allocation11 [shape = 'u8[2048]{0}', space=vmem, size = 0x800, scoped, tag = 'packed  for operand 5']
    #allocation12 [shape = 'u8[4096]{0}', space=vmem, size = 0x1000, scoped, tag = 'operand span for operand 6']
    #allocation13 [shape = 'u8[2048]{0}', space=vmem, size = 0x800, scoped, tag = 'packed  for operand 6']
    #allocation14 [shape = 'u8[4096]{0}', space=vmem, size = 0x1000, scoped, tag = 'operand span for operand 7']
    #allocation15 [shape = 'u8[2048]{0}', space=vmem, size = 0x800, scoped, tag = 'packed  for operand 7']
    #allocation16 [shape = 'u8[4096]{0}', space=vmem, size = 0x1000, scoped, tag = 'operand span for operand 8']
    #allocation17 [shape = 'u8[2048]{0}', space=vmem, size = 0x800, scoped, tag = 'packed  for operand 8']
    #allocation18 [shape = 'u8[4096]{0}', space=vmem, size = 0x1000, scoped, tag = 'operand span for operand 9']
    #allocation19 [shape = 'u8[2048]{0}', space=vmem, size = 0x800, scoped, tag = 'packed  for operand 9']
    loop: start=0, step=1, limit=4
    $region2: #{custom-call.5} parent=1 // loop_pre_header
      _
    $region3: #{custom-call.5} parent=1 // loop_header
      %s12 = sphi 0, %s16
      %p13 = scmp.ge.s32.totalorder %s12, 4
      %s24 = sphi 0, %s26
      %s27 = sphi 0, %s24
      %s28 = sphi 0, %s27
      %s44 = sphi 0, %s28
      %s52 = sphi 0, %s54
      %s55 = sphi 0, %s52
      %s56 = sphi 0, %s55
      %s72 = sphi 0, %s56
    $region4: #{custom-call.5} parent=1 // loop_header_branch
      %15 = sbr.rel (%p13) target = $region8
    $region5: #{custom-call.5} parent=1 // loop_body
      %s17 = ssub.s32 %s12, 1
      %s18 = ssub.s32 %s12, 2
      %s19 = sadd.s32 %s12, 1
      %s20 = sshrl.u32 %s12, 3
      %s21 = sshrl.u32 %s19, 3
      %s22 = ssub.s32 %s20, %s21
      %p23 = scmp.eq.s32.totalorder %s22, 0
      %s25 = sadd.s32 %s24, 1
      %s26 = scalar_select %p23, %s24, %s25
      %p29 = pneg %p23
      %p30 = scmp.eq.s32.totalorder %s12, 1
      %p31 = por %p29, %p30
      %p32 = scmp.ne.s32.totalorder %s24, %s27
      %p33 = scmp.eq.s32.totalorder %s12, 0
      %p34 = por %p32, %p33
      %p35 = scmp.ne.s32.totalorder %s24, %s27
      %p36 = scmp.eq.s32.totalorder %s17, 1
      %p37 = por %p35, %p36
      %p38 = scmp.ne.s32.totalorder %s27, %s28
      %p39 = scmp.eq.s32.totalorder %s17, 0
      %p40 = por %p38, %p39
      %p41 = scmp.ne.s32.totalorder %s27, %s28
      %p42 = scmp.eq.s32.totalorder %s18, 1
      %p43 = por %p41, %p42
      %p45 = scmp.ne.s32.totalorder %s28, %s44
      %p46 = scmp.eq.s32.totalorder %s18, 0
      %p47 = por %p45, %p46
      %s48 = sshrl.u32 %s12, 3
      %s49 = sshrl.u32 %s19, 3
      %s50 = ssub.s32 %s48, %s49
      %p51 = scmp.eq.s32.totalorder %s50, 0
      %s53 = sadd.s32 %s52, 1
      %s54 = scalar_select %p51, %s52, %s53
      %p57 = pneg %p51
      %p58 = scmp.eq.s32.totalorder %s12, 1
      %p59 = por %p57, %p58
      %p60 = scmp.ne.s32.totalorder %s52, %s55
      %p61 = scmp.eq.s32.totalorder %s12, 0
      %p62 = por %p60, %p61
      %p63 = scmp.ne.s32.totalorder %s52, %s55
      %p64 = scmp.eq.s32.totalorder %s17, 1
      %p65 = por %p63, %p64
      %p66 = scmp.ne.s32.totalorder %s55, %s56
      %p67 = scmp.eq.s32.totalorder %s17, 0
      %p68 = por %p66, %p67
      %p69 = scmp.ne.s32.totalorder %s55, %s56
      %p70 = scmp.eq.s32.totalorder %s18, 1
      %p71 = por %p69, %p70
      %p73 = scmp.ne.s32.totalorder %s56, %s72
      %p74 = scmp.eq.s32.totalorder %s18, 0
      %p75 = por %p73, %p74
      %p76 = scmp.le.s32.totalorder 1, %s12
      %p77 = scmp.lt.s32.totalorder %s12, 3
      %p78 = pnand %p76, %p77
      %p79 = pneg %p78
      // Predicated region
      $region9: #{custom-call.5} parent=5 // pred_check
        _
      $region10: #{custom-call.5} parent=5 // pred_check_branch
        %81 = sbr.rel (%p78) target = $region12
      $region11: #{custom-call.5} parent=5 // pred_region
        %s82 = ssub.s32 %s12, 1
      $region12: #{custom-call.5} parent=5 // pred_fallthru
        _
      %p83 = scmp.lt.s32.totalorder %s12, 2
      // Predicated region
      $region13: #{custom-call.5} parent=5 // pred_check
        %p84 = pneg %p83
      $region14: #{custom-call.5} parent=5 // pred_check_branch
        %86 = sbr.rel (%p84) target = $region16
      $region15: #{custom-call.5} parent=5 // pred_region
        %s87 = sand.u32 %s12, 1
        %s88 = sand.u32 %s12, 1
        %s89 = smul.addr %s88, 2
        %s90 = scalar_lea.vmem [#allocation1], %s89
        %s91 = smul.addr %s12, 2
        %s92 = scalar_lea.vmem %s0, %s91
        // Predicated region
        $region17: #{custom-call.5} parent=15 // pred_check
          _
        $region18: #{custom-call.5} parent=15 // pred_check_branch
          %94 = sbr.rel (0) target = $region20
        $region19: #{custom-call.5} parent=15 // pred_region
          // Predicated region
          $region21: #{custom-call.5} parent=19 // pred_check
            _
          $region22: #{custom-call.5} parent=19 // pred_check_branch
            %96 = sbr.rel target = $region24
          $region23: #{custom-call.5} parent=19 // pred_region
            // Predicated region
            $region36: #{custom-call.5} parent=23 // pred_check
              _
            $region37: #{custom-call.5} parent=23 // pred_check_branch
              %111 = sbr.rel (0) target = $region39
            $region38: #{custom-call.5} parent=23 // pred_region
              loop: start=0, step=1, limit=1
              $region40: #{custom-call.5} parent=38 // loop_pre_header
                _
              $region41: #{custom-call.5} parent=38 // loop_header
                %s114 = sphi 0, %s118
                %p115 = scmp.ge.s32.totalorder %s114, 1
                %s119 = sphi %s92, %s92
                %s120 = sphi %s90, %s90
              $region42: #{custom-call.5} parent=38 // loop_header_branch
                %117 = sbr.rel (%p115) target = $region46
              $region43: #{custom-call.5} parent=38 // loop_body
                %v121 = vld [vmem:[%s119] sm:$0x3]
                %122 = vst [vmem:[%s120] sm:$0x3] %v121
              $region44: #{custom-call.5} parent=38 // loop_footer
                %s118 = sadd.s32 1, %s114
              $region45: #{custom-call.5} parent=38 // loop_footer_branch
                %113 = sbr.rel target = $region41
              $region46: #{custom-call.5} parent=38 // loop_exit
                _
            $region39: #{custom-call.5} parent=23 // pred_fallthru
              _
          $region24: #{custom-call.5} parent=19 // pred_fallthru
            _
          // Predicated region
          $region25: #{custom-call.5} parent=19 // pred_check
            _
          $region26: #{custom-call.5} parent=19 // pred_check_branch
            %98 = sbr.rel (0) target = $region28
          $region27: #{custom-call.5} parent=19 // pred_region
            loop: start=0, step=1, limit=1
            $region29: #{custom-call.5} parent=27 // loop_pre_header
              _
            $region30: #{custom-call.5} parent=27 // loop_header
              %s101 = sphi 0, %s105
              %p102 = scmp.ge.s32.totalorder %s101, 1
              %s106 = sphi %s92, %s92
              %s107 = sphi %s90, %s90
            $region31: #{custom-call.5} parent=27 // loop_header_branch
              %104 = sbr.rel (%p102) target = $region35
            $region32: #{custom-call.5} parent=27 // loop_body
              %v108 = vld [vmem:[%s106] sm:$0x3]
              %109 = vst [vmem:[%s107] sm:$0x3] %v108
            $region33: #{custom-call.5} parent=27 // loop_footer
              %s105 = sadd.s32 1, %s101
            $region34: #{custom-call.5} parent=27 // loop_footer_branch
              %100 = sbr.rel target = $region30
            $region35: #{custom-call.5} parent=27 // loop_exit
              _
          $region28: #{custom-call.5} parent=19 // pred_fallthru
            _
        $region20: #{custom-call.5} parent=15 // pred_fallthru
          _
        %123 = vnop
        %s124 = sand.u32 %s12, 1
        %s125 = sand.u32 %s12, 1
        %s126 = smul.addr %s125, 2
        %s127 = scalar_lea.vmem [#allocation3], %s126
        %s128 = smul.addr %s12, 2
        %s129 = scalar_lea.vmem %s1, %s128
        // Predicated region
        $region47: #{custom-call.5} parent=15 // pred_check
          _
        $region48: #{custom-call.5} parent=15 // pred_check_branch
          %131 = sbr.rel (0) target = $region50
        $region49: #{custom-call.5} parent=15 // pred_region
          // Predicated region
          $region51: #{custom-call.5} parent=49 // pred_check
            _
          $region52: #{custom-call.5} parent=49 // pred_check_branch
            %133 = sbr.rel target = $region54
          $region53: #{custom-call.5} parent=49 // pred_region
            // Predicated region
            $region66: #{custom-call.5} parent=53 // pred_check
              _
            $region67: #{custom-call.5} parent=53 // pred_check_branch
              %148 = sbr.rel (0) target = $region69
            $region68: #{custom-call.5} parent=53 // pred_region
              loop: start=0, step=1, limit=1
              $region70: #{custom-call.5} parent=68 // loop_pre_header
                _
              $region71: #{custom-call.5} parent=68 // loop_header
                %s151 = sphi 0, %s155
                %p152 = scmp.ge.s32.totalorder %s151, 1
                %s156 = sphi %s129, %s129
                %s157 = sphi %s127, %s127
              $region72: #{custom-call.5} parent=68 // loop_header_branch
                %154 = sbr.rel (%p152) target = $region76
              $region73: #{custom-call.5} parent=68 // loop_body
                %v158 = vld [vmem:[%s156] sm:$0x3]
                %159 = vst [vmem:[%s157] sm:$0x3] %v158
              $region74: #{custom-call.5} parent=68 // loop_footer
                %s155 = sadd.s32 1, %s151
              $region75: #{custom-call.5} parent=68 // loop_footer_branch
                %150 = sbr.rel target = $region71
              $region76: #{custom-call.5} parent=68 // loop_exit
                _
            $region69: #{custom-call.5} parent=53 // pred_fallthru
              _
          $region54: #{custom-call.5} parent=49 // pred_fallthru
            _
          // Predicated region
          $region55: #{custom-call.5} parent=49 // pred_check
            _
          $region56: #{custom-call.5} parent=49 // pred_check_branch
            %135 = sbr.rel (0) target = $region58
          $region57: #{custom-call.5} parent=49 // pred_region
            loop: start=0, step=1, limit=1
            $region59: #{custom-call.5} parent=57 // loop_pre_header
              _
            $region60: #{custom-call.5} parent=57 // loop_header
              %s138 = sphi 0, %s142
              %p139 = scmp.ge.s32.totalorder %s138, 1
              %s143 = sphi %s129, %s129
              %s144 = sphi %s127, %s127
            $region61: #{custom-call.5} parent=57 // loop_header_branch
              %141 = sbr.rel (%p139) target = $region65
            $region62: #{custom-call.5} parent=57 // loop_body
              %v145 = vld [vmem:[%s143] sm:$0x3]
              %146 = vst [vmem:[%s144] sm:$0x3] %v145
            $region63: #{custom-call.5} parent=57 // loop_footer
              %s142 = sadd.s32 1, %s138
            $region64: #{custom-call.5} parent=57 // loop_footer_branch
              %137 = sbr.rel target = $region60
            $region65: #{custom-call.5} parent=57 // loop_exit
              _
          $region58: #{custom-call.5} parent=49 // pred_fallthru
            _
        $region50: #{custom-call.5} parent=15 // pred_fallthru
          _
        %160 = vnop
        %s161 = sand.u32 %s12, 1
        %s162 = sand.u32 %s12, 1
        %s163 = smul.addr %s162, 2
        %s164 = scalar_lea.vmem [#allocation5], %s163
        %s165 = smul.addr %s12, 2
        %s166 = scalar_lea.vmem %s2, %s165
        // Predicated region
        $region77: #{custom-call.5} parent=15 // pred_check
          _
        $region78: #{custom-call.5} parent=15 // pred_check_branch
          %168 = sbr.rel (0) target = $region80
        $region79: #{custom-call.5} parent=15 // pred_region
          // Predicated region
          $region81: #{custom-call.5} parent=79 // pred_check
            _
          $region82: #{custom-call.5} parent=79 // pred_check_branch
            %170 = sbr.rel target = $region84
          $region83: #{custom-call.5} parent=79 // pred_region
            // Predicated region
            $region96: #{custom-call.5} parent=83 // pred_check
              _
            $region97: #{custom-call.5} parent=83 // pred_check_branch
              %185 = sbr.rel (0) target = $region99
            $region98: #{custom-call.5} parent=83 // pred_region
              loop: start=0, step=1, limit=1
              $region100: #{custom-call.5} parent=98 // loop_pre_header
                _
              $region101: #{custom-call.5} parent=98 // loop_header
                %s188 = sphi 0, %s192
                %p189 = scmp.ge.s32.totalorder %s188, 1
                %s193 = sphi %s166, %s166
                %s194 = sphi %s164, %s164
              $region102: #{custom-call.5} parent=98 // loop_header_branch
                %191 = sbr.rel (%p189) target = $region106
              $region103: #{custom-call.5} parent=98 // loop_body
                %v195 = vld [vmem:[%s193] sm:$0x3]
                %196 = vst [vmem:[%s194] sm:$0x3] %v195
              $region104: #{custom-call.5} parent=98 // loop_footer
                %s192 = sadd.s32 1, %s188
              $region105: #{custom-call.5} parent=98 // loop_footer_branch
                %187 = sbr.rel target = $region101
              $region106: #{custom-call.5} parent=98 // loop_exit
                _
            $region99: #{custom-call.5} parent=83 // pred_fallthru
              _
          $region84: #{custom-call.5} parent=79 // pred_fallthru
            _
          // Predicated region
          $region85: #{custom-call.5} parent=79 // pred_check
            _
          $region86: #{custom-call.5} parent=79 // pred_check_branch
            %172 = sbr.rel (0) target = $region88
          $region87: #{custom-call.5} parent=79 // pred_region
            loop: start=0, step=1, limit=1
            $region89: #{custom-call.5} parent=87 // loop_pre_header
              _
            $region90: #{custom-call.5} parent=87 // loop_header
              %s175 = sphi 0, %s179
              %p176 = scmp.ge.s32.totalorder %s175, 1
              %s180 = sphi %s166, %s166
              %s181 = sphi %s164, %s164
            $region91: #{custom-call.5} parent=87 // loop_header_branch
              %178 = sbr.rel (%p176) target = $region95
            $region92: #{custom-call.5} parent=87 // loop_body
              %v182 = vld [vmem:[%s180] sm:$0x3]
              %183 = vst [vmem:[%s181] sm:$0x3] %v182
            $region93: #{custom-call.5} parent=87 // loop_footer
              %s179 = sadd.s32 1, %s175
            $region94: #{custom-call.5} parent=87 // loop_footer_branch
              %174 = sbr.rel target = $region90
            $region95: #{custom-call.5} parent=87 // loop_exit
              _
          $region88: #{custom-call.5} parent=79 // pred_fallthru
            _
        $region80: #{custom-call.5} parent=15 // pred_fallthru
          _
        %197 = vnop
        %s198 = sand.u32 %s12, 1
        %s199 = sand.u32 %s12, 1
        %s200 = smul.addr %s199, 2
        %s201 = scalar_lea.vmem [#allocation7], %s200
        %s202 = smul.addr %s12, 2
        %s203 = scalar_lea.vmem %s3, %s202
        // Predicated region
        $region107: #{custom-call.5} parent=15 // pred_check
          _
        $region108: #{custom-call.5} parent=15 // pred_check_branch
          %205 = sbr.rel (0) target = $region110
        $region109: #{custom-call.5} parent=15 // pred_region
          // Predicated region
          $region111: #{custom-call.5} parent=109 // pred_check
            _
          $region112: #{custom-call.5} parent=109 // pred_check_branch
            %207 = sbr.rel target = $region114
          $region113: #{custom-call.5} parent=109 // pred_region
            // Predicated region
            $region126: #{custom-call.5} parent=113 // pred_check
              _
            $region127: #{custom-call.5} parent=113 // pred_check_branch
              %222 = sbr.rel (0) target = $region129
            $region128: #{custom-call.5} parent=113 // pred_region
              loop: start=0, step=1, limit=1
              $region130: #{custom-call.5} parent=128 // loop_pre_header
                _
              $region131: #{custom-call.5} parent=128 // loop_header
                %s225 = sphi 0, %s229
                %p226 = scmp.ge.s32.totalorder %s225, 1
                %s230 = sphi %s203, %s203
                %s231 = sphi %s201, %s201
              $region132: #{custom-call.5} parent=128 // loop_header_branch
                %228 = sbr.rel (%p226) target = $region136
              $region133: #{custom-call.5} parent=128 // loop_body
                %v232 = vld [vmem:[%s230] sm:$0x3]
                %233 = vst [vmem:[%s231] sm:$0x3] %v232
              $region134: #{custom-call.5} parent=128 // loop_footer
                %s229 = sadd.s32 1, %s225
              $region135: #{custom-call.5} parent=128 // loop_footer_branch
                %224 = sbr.rel target = $region131
              $region136: #{custom-call.5} parent=128 // loop_exit
                _
            $region129: #{custom-call.5} parent=113 // pred_fallthru
              _
          $region114: #{custom-call.5} parent=109 // pred_fallthru
            _
          // Predicated region
          $region115: #{custom-call.5} parent=109 // pred_check
            _
          $region116: #{custom-call.5} parent=109 // pred_check_branch
            %209 = sbr.rel (0) target = $region118
          $region117: #{custom-call.5} parent=109 // pred_region
            loop: start=0, step=1, limit=1
            $region119: #{custom-call.5} parent=117 // loop_pre_header
              _
            $region120: #{custom-call.5} parent=117 // loop_header
              %s212 = sphi 0, %s216
              %p213 = scmp.ge.s32.totalorder %s212, 1
              %s217 = sphi %s203, %s203
              %s218 = sphi %s201, %s201
            $region121: #{custom-call.5} parent=117 // loop_header_branch
              %215 = sbr.rel (%p213) target = $region125
            $region122: #{custom-call.5} parent=117 // loop_body
              %v219 = vld [vmem:[%s217] sm:$0x3]
              %220 = vst [vmem:[%s218] sm:$0x3] %v219
            $region123: #{custom-call.5} parent=117 // loop_footer
              %s216 = sadd.s32 1, %s212
            $region124: #{custom-call.5} parent=117 // loop_footer_branch
              %211 = sbr.rel target = $region120
            $region125: #{custom-call.5} parent=117 // loop_exit
              _
          $region118: #{custom-call.5} parent=109 // pred_fallthru
            _
        $region110: #{custom-call.5} parent=15 // pred_fallthru
          _
        %234 = vnop
      $region16: #{custom-call.5} parent=5 // pred_fallthru
        _
      %p235 = scmp.le.s32.totalorder 1, %s12
      %p236 = scmp.lt.s32.totalorder %s12, 3
      %p237 = pnand %p235, %p236
      %p238 = pneg %p237
      // Predicated region
      $region137: #{custom-call.5} parent=5 // pred_check
        _
      $region138: #{custom-call.5} parent=5 // pred_check_branch
        %240 = sbr.rel (%p237) target = $region140
      $region139: #{custom-call.5} parent=5 // pred_region
        #allocation20 [shape = 'f32[2,2]{1,0}', space=vmem, size = 0x1000, scoped, tag = 'a top-left matrix']
        #allocation21 [shape = 'f32[2,2]{1,0}', space=vmem, size = 0x1000, scoped, tag = 'a top-right matrix']
        #allocation22 [shape = 'f32[2,2]{1,0}', space=vmem, size = 0x1000, scoped, tag = 'a bottom-left matrix']
        #allocation23 [shape = 'f32[2,2]{1,0}', space=vmem, size = 0x1000, scoped, tag = 'a bottom-right matrix']
        %s241 = ssub.s32 %s12, 1
        %s242 = sand.u32 %s17, 1
        %s243 = sand.u32 %s17, 1
        %s244 = smul.addr %s243, 2
        %s245 = scalar_lea.vmem [#allocation1], %s244
        %s246 = sand.u32 %s17, 1
        %s247 = sand.u32 %s17, 1
        %s248 = smul.addr %s247, 2
        %s249 = scalar_lea.vmem [#allocation3], %s248
        %s250 = sand.u32 %s17, 1
        %s251 = sand.u32 %s17, 1
        %s252 = smul.addr %s251, 2
        %s253 = scalar_lea.vmem [#allocation5], %s252
        %s254 = sand.u32 %s17, 1
        %s255 = sand.u32 %s17, 1
        %s256 = smul.addr %s255, 2
        %s257 = scalar_lea.vmem [#allocation7], %s256
        %s258 = sand.u32 %s17, 1
        %s259 = sand.u32 %s17, 1
        %s260 = smul.addr %s259, 2
        %s261 = scalar_lea.vmem [#allocation1], %s260
        %s262 = sand.u32 %s17, 1
        %s263 = sand.u32 %s17, 1
        %s264 = smul.addr %s263, 2
        %s265 = scalar_lea.vmem [#allocation3], %s264
        %s266 = sand.u32 %s17, 1
        %s267 = sand.u32 %s17, 1
        %s268 = smul.addr %s267, 2
        %s269 = scalar_lea.vmem [#allocation5], %s268
        %s270 = sand.u32 %s17, 1
        %s271 = sand.u32 %s17, 1
        %s272 = smul.addr %s271, 2
        %s273 = scalar_lea.vmem [#allocation7], %s272
        %p274 = pneg %p40
        %p275 = pneg %p37
        %s276 = sand.u32 %s27, 1
        %s277 = sand.u32 %s27, 1
        %s278 = smul.addr %s277, 2
        %s279 = scalar_lea.vmem [#allocation9], %s278
        %p280 = pneg %p68
        %p281 = pneg %p65
        %s282 = sand.u32 %s55, 1
        %s283 = sand.u32 %s55, 1
        %s284 = smul.addr %s283, 2
        %s285 = scalar_lea.vmem [#allocation11], %s284
        %s286 = sand.u32 %s17, 1
        %s287 = sand.u32 %s17, 1
        %s288 = smul.addr %s287, 2
        %s289 = scalar_lea.vmem [#allocation13], %s288
        %s290 = sand.u32 %s17, 1
        %s291 = sand.u32 %s17, 1
        %s292 = smul.addr %s291, 2
        %s293 = scalar_lea.vmem [#allocation15], %s292
        %s294 = sand.u32 %s17, 1
        %s295 = sand.u32 %s17, 1
        %s296 = smul.addr %s295, 2
        %s297 = scalar_lea.vmem [#allocation17], %s296
        %s298 = sand.u32 %s17, 1
        %s299 = sand.u32 %s17, 1
        %s300 = smul.addr %s299, 2
        %s301 = scalar_lea.vmem [#allocation19], %s300
        %s303 = sshllo.u32 0, 2
        %v304 = vld [vmem:[%s261] sm:%s303]
        %305 = vst [vmem:[#allocation0] sm:%s303] %v304
        %s307 = sshllo.u32 0, 2
        %v308 = vld [vmem:[%s265] sm:%s307]
        %309 = vst [vmem:[#allocation2] sm:%s307] %v308
        %s311 = sshllo.u32 0, 2
        %v312 = vld [vmem:[%s269] sm:%s311]
        %313 = vst [vmem:[#allocation4] sm:%s311] %v312
        %s315 = sshllo.u32 0, 2
        %v316 = vld [vmem:[%s273] sm:%s315]
        %317 = vst [vmem:[#allocation6] sm:%s315] %v316
        %s318 = sshrl.u32 %s17, 3
        %s319 = sshrl.u32 %s17, 3
        %s320 = smov [#allocation20]
        %v321 = vld [vmem:[#allocation0] sm:$0xff]
        %322 = vst [vmem:[%s320] sm:$0xff] %v321
        %s323 = smov [#allocation21]
        %v324 = vld [vmem:[#allocation2] sm:$0xff]
        %325 = vst [vmem:[%s323] sm:$0xff] %v324
        %s326 = smov [#allocation22]
        %v327 = vld [vmem:[#allocation4] sm:$0xff]
        %328 = vst [vmem:[%s326] sm:$0xff] %v327
        %s329 = smov [#allocation23]
        %v330 = vld [vmem:[#allocation6] sm:$0xff]
        %331 = vst [vmem:[%s329] sm:$0xff] %v330
        %332 = vst [vmem:[#allocation12] sm:$0xff] 0.0
        %333 = vst [vmem:[#allocation14] sm:$0xff] 0.0
        %334 = vst [vmem:[#allocation16] sm:$0xff] 0.0
        %335 = vst [vmem:[#allocation18] sm:$0xff] 0.0
        %s336 = smov [#allocation12]
        %v337 = vlaneseq
        %v338 = vand.u32 %v337, 127
        %v339 = vmov %v338
        %v340 = vlaneseq
        %v341 = vshrl.u32 %v340, 7
        %v342 = vmov %v341
        %v343 = vld [vmem:[%s336] sm:$0x3]
        %vm346 = vcmp.eq.s32.totalorder %v342, %v339
        %v347 = vsel %vm346, 1.0, %v343
        %348 = vst [vmem:[%s336] sm:$0x3] %v347
        %s349 = smov [#allocation18]
        %v350 = vlaneseq
        %v351 = vand.u32 %v350, 127
        %v352 = vmov %v351
        %v353 = vlaneseq
        %v354 = vshrl.u32 %v353, 7
        %v355 = vmov %v354
        %v356 = vld [vmem:[%s349] sm:$0x3]
        %vm359 = vcmp.eq.s32.totalorder %v355, %v352
        %v360 = vsel %vm359, 1.0, %v356
        %361 = vst [vmem:[%s349] sm:$0x3] %v360
        // While loop
        $region141: #{custom-call.5} parent=139 // loop_pre_header
          _
        $region142: #{custom-call.5} parent=139 // loop_header
          %s363 = sphi 0, %s905
          %v364 = vlaneseq
          %v365 = vand.u32 %v364, 127
          %v366 = vmov %v365
          %v367 = vlaneseq
          %v368 = vshrl.u32 %v367, 7
          %v369 = vmov %v368
          %s370 = smov [#allocation20]
          %v371 = vlaneseq
          %v372 = vand.u32 %v371, 127
          %vm373 = vcmp.ge.s32.totalorder %v372, 0
          %vm374 = vcmp.lt.s32.totalorder %v372, 2
          %vm375 = vmand %vm373, %vm374
          %v376 = vld [vmem:[%s370] sm:$0x3]
          %v377 = vsel %vm375, %v376, 0.0
          %v378 = vmul.f32 %v377, %v377
          %vm381 = vcmp.eq.s32.totalorder %v369, %v366
          %v382 = vsel %vm381, 0.0, %v378
          %v383 = vlaneseq
          %v384 = vand.u32 %v383, 127
          %v385 = vmov %v384
          %v386 = vlaneseq
          %v387 = vshrl.u32 %v386, 7
          %v388 = vmov %v387
          %s389 = smov [#allocation21]
          %v390 = vlaneseq
          %v391 = vand.u32 %v390, 127
          %vm392 = vcmp.ge.s32.totalorder %v391, 0
          %vm393 = vcmp.lt.s32.totalorder %v391, 2
          %vm394 = vmand %vm392, %vm393
          %v395 = vld [vmem:[%s389] sm:$0x3]
          %v396 = vsel %vm394, %v395, 0.0
          %v397 = vmul.f32 %v396, %v396
          %v398 = vadd.f32 %v382, %v397
          %v399 = vadd.f32 %v378, %v397
          %v400 = vlaneseq
          %v401 = vand.u32 %v400, 127
          %v402 = vmov %v401
          %v403 = vlaneseq
          %v404 = vshrl.u32 %v403, 7
          %v405 = vmov %v404
          %s406 = smov [#allocation22]
          %v407 = vlaneseq
          %v408 = vand.u32 %v407, 127
          %vm409 = vcmp.ge.s32.totalorder %v408, 0
          %vm410 = vcmp.lt.s32.totalorder %v408, 2
          %vm411 = vmand %vm409, %vm410
          %v412 = vld [vmem:[%s406] sm:$0x3]
          %v413 = vsel %vm411, %v412, 0.0
          %v414 = vmul.f32 %v413, %v413
          %v415 = vadd.f32 %v398, %v414
          %v416 = vadd.f32 %v399, %v414
          %v417 = vlaneseq
          %v418 = vand.u32 %v417, 127
          %v419 = vmov %v418
          %v420 = vlaneseq
          %v421 = vshrl.u32 %v420, 7
          %v422 = vmov %v421
          %s423 = smov [#allocation23]
          %v424 = vlaneseq
          %v425 = vand.u32 %v424, 127
          %vm426 = vcmp.ge.s32.totalorder %v425, 0
          %vm427 = vcmp.lt.s32.totalorder %v425, 2
          %vm428 = vmand %vm426, %vm427
          %v429 = vld [vmem:[%s423] sm:$0x3]
          %v430 = vsel %vm428, %v429, 0.0
          %v431 = vmul.f32 %v430, %v430
          %vm434 = vcmp.eq.s32.totalorder %v422, %v419
          %v435 = vsel %vm434, 0.0, %v431
          %v436 = vadd.f32 %v415, %v435
          %v437 = vadd.f32 %v416, %v431
          %438 = vadd.xlane.f32.xlu0 %v437
          %v439 = vpop.xlane.xlu0 %438
          %v440 = vrot.slane %v439, 4
          %v441 = vadd.f32 %v439, %v440
          %v442 = vrot.slane %v441, 2
          %v443 = vadd.f32 %v441, %v442
          %v444 = vrot.slane %v443, 1
          %v445 = vadd.f32 %v443, %v444
          %446 = vadd.xlane.f32.xlu0 %v436
          %v447 = vpop.xlane.xlu0 %446
          %v448 = vrot.slane %v447, 4
          %v449 = vadd.f32 %v447, %v448
          %v450 = vrot.slane %v449, 2
          %v451 = vadd.f32 %v449, %v450
          %v452 = vrot.slane %v451, 1
          %v453 = vadd.f32 %v451, %v452
          %s454 = vtos %v453
          %s455 = vtos %v445
          %s456 = smul.f32 1e-10, %s455
          %p457 = scmp.le.f32.partialorder %s454, %s456
          %p458 = scmp.ge.s32.totalorder %s363, 15
          %p459 = por %p457, %p458
        $region143: #{custom-call.5} parent=139 // loop_header_branch
          %907 = sbr.rel (%p459) target = $region147
        $region144: #{custom-call.5} parent=139 // loop_body
          loop: start=0, step=1, limit=3
          $region148: #{custom-call.5} parent=144 // loop_pre_header
            _
          $region149: #{custom-call.5} parent=144 // loop_header
            %s461 = sphi 0, %s465
            %p462 = scmp.ge.s32.totalorder %s461, 3
          $region150: #{custom-call.5} parent=144 // loop_header_branch
            %464 = sbr.rel (%p462) target = $region154
          $region151: #{custom-call.5} parent=144 // loop_body
            #allocation24 [shape = 'f32[1024]{0}', space=vmem, size = 0x1000, scoped, tag = 'a_tl_diag vmem']
            #allocation25 [shape = 'f32[1024]{0}', space=vmem, size = 0x1000, scoped, tag = 'a_tr_diag vmem']
            #allocation26 [shape = 'f32[1024]{0}', space=vmem, size = 0x1000, scoped, tag = 'a_br_diag vmem']
            #allocation27 [shape = 'f32[1024]{0}', space=vmem, size = 0x1000, scoped, tag = 'rt1 vmem']
            #allocation28 [shape = 'f32[1024]{0}', space=vmem, size = 0x1000, scoped, tag = 'rt2 vmem']
            #allocation29 [shape = 'f32[1024]{0}', space=vmem, size = 0x1000, scoped, tag = 'c vmem']
            #allocation30 [shape = 'f32[1024]{0}', space=vmem, size = 0x1000, scoped, tag = 's vmem']
            #allocation31 [shape = 'f32[4096]{0}', space=vmem, size = 0x4000, scoped, tag = 'c broadcast']
            #allocation32 [shape = 'f32[4096]{0}', space=vmem, size = 0x4000, scoped, tag = 's broadcast']
            %s466 = smov [#allocation20]
            %s467 = smov [#allocation24]
            %v468 = vlaneseq
            %v469 = vand.u32 %v468, 127
            %v470 = vmov %v469
            %v471 = vlaneseq
            %v472 = vshrl.u32 %v471, 7
            %v473 = vmov %v472
            %v474 = vld [vmem:[%s466] sm:$0x3]
            %vm477 = vcmp.eq.s32.totalorder %v473, %v470
            %v478 = vsel %vm477, %v474, 0.0
            %v479 = vrot.slane %v478, 4
            %v480 = vadd.f32 %v478, %v479
            %v481 = vrot.slane %v480, 2
            %v482 = vadd.f32 %v480, %v481
            %v483 = vrot.slane %v482, 1
            %v484 = vadd.f32 %v482, %v483
            %485 = vst [vmem:[%s467] sm:$0x1] %v484
            %s486 = smov [#allocation21]
            %s487 = smov [#allocation25]
            %v488 = vlaneseq
            %v489 = vand.u32 %v488, 127
            %v490 = vmov %v489
            %v491 = vlaneseq
            %v492 = vshrl.u32 %v491, 7
            %v493 = vmov %v492
            %v494 = vld [vmem:[%s486] sm:$0x3]
            %vm497 = vcmp.eq.s32.totalorder %v493, %v490
            %v498 = vsel %vm497, %v494, 0.0
            %v499 = vrot.slane %v498, 4
            %v500 = vadd.f32 %v498, %v499
            %v501 = vrot.slane %v500, 2
            %v502 = vadd.f32 %v500, %v501
            %v503 = vrot.slane %v502, 1
            %v504 = vadd.f32 %v502, %v503
            %505 = vst [vmem:[%s487] sm:$0x1] %v504
            %s506 = smov [#allocation23]
            %s507 = smov [#allocation26]
            %v508 = vlaneseq
            %v509 = vand.u32 %v508, 127
            %v510 = vmov %v509
            %v511 = vlaneseq
            %v512 = vshrl.u32 %v511, 7
            %v513 = vmov %v512
            %v514 = vld [vmem:[%s506] sm:$0x3]
            %vm517 = vcmp.eq.s32.totalorder %v513, %v510
            %v518 = vsel %vm517, %v514, 0.0
            %v519 = vrot.slane %v518, 4
            %v520 = vadd.f32 %v518, %v519
            %v521 = vrot.slane %v520, 2
            %v522 = vadd.f32 %v520, %v521
            %v523 = vrot.slane %v522, 1
            %v524 = vadd.f32 %v522, %v523
            %525 = vst [vmem:[%s507] sm:$0x1] %v524
            %s526 = smov [#allocation29]
            %s527 = smov [#allocation30]
            %s528 = smov [#allocation24]
            %v529 = vld [vmem:[%s528] sm:$0xff]
            %s530 = smov [#allocation25]
            %v531 = vld [vmem:[%s530] sm:$0xff]
            %s532 = smov [#allocation26]
            %v533 = vld [vmem:[%s532] sm:$0xff]
            %v534 = vsub.f32 %v533, %v529
            %v535 = vmul.f32 2.0, %v531
            %v536 = vrcp.pop %v535
            %v537 = vmul.f32 %v534, %v536
            %vm538 = vcmp.ge.f32.partialorder %v537, 0.0
            %v539 = vmul.f32 %v537, %v537
            %v540 = vadd.f32 1.0, %v539
            %v541 = vrsqrt.pop %v540
            %v542 = vmul.f32 %v540, %v541
            %vm543 = vcmp.eq.f32.partialorder %v540, inf
            %v544 = vsel %vm543, %v540, %v542
            %vm545 = vcmp.eq.f32.partialorder %v540, 0.0
            %v546 = vand.u32 %v540, 2147483648
            %v547 = vsel %vm545, %v546, %v544
            %v548 = vxor.u32 %v547, 2147483648
            %v549 = vsel %vm538, %v547, %v548
            %v550 = vadd.f32 %v537, %v549
            %v551 = vrcp.pop %v550
            %v552 = vand.u32 2147483647, %v529
            %v553 = vand.u32 2147483647, %v531
            %v554 = vand.u32 2147483647, %v533
            %v555 = vmin.f32 %v552, %v554
            %v556 = vmul.f32 1.1920929e-08, %v555
            %vm557 = vcmp.le.f32.partialorder %v553, %v556
            %v558 = vsel %vm557, 0.0, %v551
            %v559 = vmul.f32 %v558, %v558
            %v560 = vadd.f32 1.0, %v559
            %v561 = vrsqrt.pop %v560
            %v562 = vmul.f32 %v558, %v561
            %v563 = vmul.f32 %v558, %v531
            %v564 = vsub.f32 %v529, %v563
            %v565 = vmul.f32 %v558, %v531
            %v566 = vadd.f32 %v533, %v565
            %s567 = smov [#allocation27]
            %568 = vst [vmem:[%s567] sm:$0xff] %v564
            %s569 = smov [#allocation28]
            %570 = vst [vmem:[%s569] sm:$0xff] %v566
            %s571 = smov %s526
            %572 = vst [vmem:[%s571] sm:$0xff] %v561
            %s573 = smov %s527
            %574 = vst [vmem:[%s573] sm:$0xff] %v562
            %s575 = smov [#allocation29]
            %v576 = vld [vmem:[%s575] ss:$0 sm:$0xff]
            %v577 = vlaneseq
            %v578 = vand.u32 %v577, 127
            %v579 = vmov %v578
            %v580 = vlaneseq
            %v581 = vshrl.u32 %v580, 7
            %v582 = vmov %v581
            %vm584 = vcmp.eq.s32.totalorder %v582, %v579
            %v585 = vsel %vm584, %v576, 0.0
            %586 = vadd.xlane.f32.xlu0 %v585
            %v587 = vpop.xlane.xlu0 %586
            %s588 = smov [#allocation31]
            %589 = vst [vmem:[%s588] sm:$0xff] %v587
            %s590 = smov [#allocation30]
            %v591 = vld [vmem:[%s590] ss:$0 sm:$0xff]
            %v592 = vlaneseq
            %v593 = vand.u32 %v592, 127
            %v594 = vmov %v593
            %v595 = vlaneseq
            %v596 = vshrl.u32 %v595, 7
            %v597 = vmov %v596
            %vm599 = vcmp.eq.s32.totalorder %v597, %v594
            %v600 = vsel %vm599, %v591, 0.0
            %601 = vadd.xlane.f32.xlu0 %v600
            %v602 = vpop.xlane.xlu0 %601
            %s603 = smov [#allocation32]
            %604 = vst [vmem:[%s603] sm:$0xff] %v602
            %s605 = smov [#allocation31]
            %v606 = vld [vmem:[%s605] sm:$0xff]
            %s607 = smov [#allocation32]
            %v608 = vld [vmem:[%s607] sm:$0xff]
            %s609 = smov [#allocation20]
            %s610 = smov [#allocation21]
            %s611 = smov [#allocation22]
            %s612 = smov [#allocation23]
            %v613 = vld [vmem:[%s609] sm:$0x3]
            %v614 = vld [vmem:[%s610] sm:$0x3]
            %v615 = vld [vmem:[%s611] sm:$0x3]
            %v616 = vld [vmem:[%s612] sm:$0x3]
            %v617 = vmul.f32 %v606, %v613
            %v618 = vmul.f32 %v608, %v615
            %v619 = vsub.f32 %v617, %v618
            %v620 = vmul.f32 %v606, %v614
            %v621 = vmul.f32 %v608, %v616
            %v622 = vsub.f32 %v620, %v621
            %v623 = vmul.f32 %v608, %v613
            %v624 = vmul.f32 %v606, %v615
            %v625 = vadd.f32 %v623, %v624
            %v626 = vmul.f32 %v608, %v614
            %v627 = vmul.f32 %v606, %v616
            %v628 = vadd.f32 %v626, %v627
            %629 = vst [vmem:[%s609] sm:$0x3] %v619
            %630 = vst [vmem:[%s610] sm:$0x3] %v622
            %631 = vst [vmem:[%s611] sm:$0x3] %v625
            %632 = vst [vmem:[%s612] sm:$0x3] %v628
            %s633 = smov [#allocation29]
            %v634 = vld [vmem:[%s633] ss:$0 sm:$0xff]
            %s635 = smov [#allocation30]
            %v636 = vld [vmem:[%s635] ss:$0 sm:$0xff]
            %s637 = smov [#allocation20]
            %s638 = smov [#allocation21]
            %s639 = smov [#allocation22]
            %s640 = smov [#allocation23]
            %v641 = vld [vmem:[%s637] sm:$0x3]
            %v642 = vld [vmem:[%s638] sm:$0x3]
            %v643 = vld [vmem:[%s639] sm:$0x3]
            %v644 = vld [vmem:[%s640] sm:$0x3]
            %v645 = vmul.f32 %v634, %v641
            %v646 = vmul.f32 %v636, %v642
            %v647 = vsub.f32 %v645, %v646
            %v648 = vmul.f32 %v636, %v641
            %v649 = vmul.f32 %v634, %v642
            %v650 = vadd.f32 %v648, %v649
            %v651 = vmul.f32 %v634, %v643
            %v652 = vmul.f32 %v636, %v644
            %v653 = vsub.f32 %v651, %v652
            %v654 = vmul.f32 %v636, %v643
            %v655 = vmul.f32 %v634, %v644
            %v656 = vadd.f32 %v654, %v655
            %657 = vst [vmem:[%s637] sm:$0x3] %v647
            %658 = vst [vmem:[%s638] sm:$0x3] %v650
            %659 = vst [vmem:[%s639] sm:$0x3] %v653
            %660 = vst [vmem:[%s640] sm:$0x3] %v656
            %s661 = smov [#allocation20]
            %s662 = smov [#allocation27]
            %v663 = vlaneseq
            %v664 = vand.u32 %v663, 127
            %v665 = vmov %v664
            %v666 = vlaneseq
            %v667 = vshrl.u32 %v666, 7
            %v668 = vmov %v667
            %v669 = vld [vmem:[%s662] ss:$0 sm:$0xff]
            %v670 = vld [vmem:[%s661] sm:$0x3]
            %vm673 = vcmp.eq.s32.totalorder %v668, %v665
            %v674 = vsel %vm673, %v669, %v670
            %675 = vst [vmem:[%s661] sm:$0x3] %v674
            %s676 = smov [#allocation21]
            %v677 = vlaneseq
            %v678 = vand.u32 %v677, 127
            %v679 = vmov %v678
            %v680 = vlaneseq
            %v681 = vshrl.u32 %v680, 7
            %v682 = vmov %v681
            %v683 = vld [vmem:[%s676] sm:$0x3]
            %vm686 = vcmp.eq.s32.totalorder %v682, %v679
            %v687 = vsel %vm686, 0.0, %v683
            %688 = vst [vmem:[%s676] sm:$0x3] %v687
            %s689 = smov [#allocation22]
            %v690 = vlaneseq
            %v691 = vand.u32 %v690, 127
            %v692 = vmov %v691
            %v693 = vlaneseq
            %v694 = vshrl.u32 %v693, 7
            %v695 = vmov %v694
            %v696 = vld [vmem:[%s689] sm:$0x3]
            %vm699 = vcmp.eq.s32.totalorder %v695, %v692
            %v700 = vsel %vm699, 0.0, %v696
            %701 = vst [vmem:[%s689] sm:$0x3] %v700
            %s702 = smov [#allocation23]
            %s703 = smov [#allocation28]
            %v704 = vlaneseq
            %v705 = vand.u32 %v704, 127
            %v706 = vmov %v705
            %v707 = vlaneseq
            %v708 = vshrl.u32 %v707, 7
            %v709 = vmov %v708
            %v710 = vld [vmem:[%s703] ss:$0 sm:$0xff]
            %v711 = vld [vmem:[%s702] sm:$0x3]
            %vm714 = vcmp.eq.s32.totalorder %v709, %v706
            %v715 = vsel %vm714, %v710, %v711
            %716 = vst [vmem:[%s702] sm:$0x3] %v715
            %s717 = smov [#allocation20]
            %s718 = smov [#allocation21]
            %v719 = vld [vmem:[%s718] sm:$0x3]
            %720 = vrot.lane.b32.xlu0 %v719, 1
            %v721 = vpop.permute.xlu0 %720
            %v722 = vld [vmem:[%s717] sm:$0x3]
            %v723 = vld [vmem:[%s717] sm:$0x3]
            %724 = vrot.lane.b32.xlu0 %v723, 1
            %v725 = vpop.permute.xlu0 %724
            %v726 = vlaneseq
            %v727 = vand.u32 %v726, 127
            %vm728 = vcmp.eq.s32.totalorder %v727, 0
            %v729 = vsel %vm728, %v723, %v725
            %v730 = vlaneseq
            %v731 = vand.u32 %v730, 127
            %vm732 = vcmp.eq.s32.totalorder %v731, 1
            %v733 = vsel %vm732, %v721, %v729
            %v734 = vlaneseq
            %v735 = vand.u32 %v734, 127
            %vm736 = vcmp.ge.s32.totalorder %v735, 0
            %vm737 = vcmp.lt.s32.totalorder %v735, 2
            %vm738 = vmand %vm736, %vm737
            %v739 = vsel %vm738, %v733, 0.0
            %v740 = vld [vmem:[%s718] sm:$0x3]
            %741 = vrot.lane.b32.xlu0 %v740, 127
            %v742 = vpop.permute.xlu0 %741
            %v743 = vlaneseq
            %v744 = vand.u32 %v743, 127
            %vm745 = vcmp.eq.s32.totalorder %v744, 1
            %v746 = vsel %vm745, %v722, %v742
            %747 = vst [vmem:[%s717] sm:$0x3] %v739
            %748 = vst [vmem:[%s718] sm:$0x3] %v746
            %s749 = smov [#allocation22]
            %s750 = smov [#allocation23]
            %v751 = vld [vmem:[%s750] sm:$0x3]
            %752 = vrot.lane.b32.xlu0 %v751, 1
            %v753 = vpop.permute.xlu0 %752
            %v754 = vld [vmem:[%s749] sm:$0x3]
            %v755 = vld [vmem:[%s749] sm:$0x3]
            %756 = vrot.lane.b32.xlu0 %v755, 1
            %v757 = vpop.permute.xlu0 %756
            %v758 = vlaneseq
            %v759 = vand.u32 %v758, 127
            %vm760 = vcmp.eq.s32.totalorder %v759, 0
            %v761 = vsel %vm760, %v755, %v757
            %v762 = vlaneseq
            %v763 = vand.u32 %v762, 127
            %vm764 = vcmp.eq.s32.totalorder %v763, 1
            %v765 = vsel %vm764, %v753, %v761
            %v766 = vlaneseq
            %v767 = vand.u32 %v766, 127
            %vm768 = vcmp.ge.s32.totalorder %v767, 0
            %vm769 = vcmp.lt.s32.totalorder %v767, 2
            %vm770 = vmand %vm768, %vm769
            %v771 = vsel %vm770, %v765, 0.0
            %v772 = vld [vmem:[%s750] sm:$0x3]
            %773 = vrot.lane.b32.xlu0 %v772, 127
            %v774 = vpop.permute.xlu0 %773
            %v775 = vlaneseq
            %v776 = vand.u32 %v775, 127
            %vm777 = vcmp.eq.s32.totalorder %v776, 1
            %v778 = vsel %vm777, %v754, %v774
            %779 = vst [vmem:[%s749] sm:$0x3] %v771
            %780 = vst [vmem:[%s750] sm:$0x3] %v778
            %s781 = smov [#allocation20]
            %s782 = smov [#allocation22]
            %v783 = vld [vmem:[%s781] ss:$0 sm:$0xff]
            %s785 = scalar_lea.vmem %s781, 4294967295
            %v786 = vld [vmem:[%s785] sm:$0x2]
            %v787 = vlaneseq
            %v788 = vshrl.u32 %v787, 7
            %vm789 = vcmp.eq.s32.totalorder %v788, 0
            %v790 = vsel %vm789, %v783, %v786
            %s791 = scalar_lea.vmem %s781, 1
            %v792 = vld [vmem:[%s791] ss:$0 sm:$0xff]
            %793 = vst [vmem:[%s781] sm:$0x3] %v790
            %v794 = vld [vmem:[%s782] ss:$0 sm:$0xff]
            %s795 = scalar_lea.vmem %s781, 1
            %796 = vst [vmem:[%s795] sm:$0x1] %v794
            %s797 = scalar_lea.vmem %s782, 1
            %v798 = vld [vmem:[%s797] sm:$0x1]
            %v799 = vlaneseq
            %v800 = vshrl.u32 %v799, 7
            %vm801 = vcmp.eq.s32.totalorder %v800, 1
            %v802 = vsel %vm801, %v792, %v798
            %v803 = vld [vmem:[%s782] ss:$0 sm:$0xff]
            %804 = vst [vmem:[%s782] sm:$0x3] %v802
            %s805 = smov [#allocation21]
            %s806 = smov [#allocation23]
            %v807 = vld [vmem:[%s805] ss:$0 sm:$0xff]
            %s809 = scalar_lea.vmem %s805, 4294967295
            %v810 = vld [vmem:[%s809] sm:$0x2]
            %v811 = vlaneseq
            %v812 = vshrl.u32 %v811, 7
            %vm813 = vcmp.eq.s32.totalorder %v812, 0
            %v814 = vsel %vm813, %v807, %v810
            %s815 = scalar_lea.vmem %s805, 1
            %v816 = vld [vmem:[%s815] ss:$0 sm:$0xff]
            %817 = vst [vmem:[%s805] sm:$0x3] %v814
            %v818 = vld [vmem:[%s806] ss:$0 sm:$0xff]
            %s819 = scalar_lea.vmem %s805, 1
            %820 = vst [vmem:[%s819] sm:$0x1] %v818
            %s821 = scalar_lea.vmem %s806, 1
            %v822 = vld [vmem:[%s821] sm:$0x1]
            %v823 = vlaneseq
            %v824 = vshrl.u32 %v823, 7
            %vm825 = vcmp.eq.s32.totalorder %v824, 1
            %v826 = vsel %vm825, %v816, %v822
            %v827 = vld [vmem:[%s806] ss:$0 sm:$0xff]
            %828 = vst [vmem:[%s806] sm:$0x3] %v826
            %s829 = smov [#allocation31]
            %v830 = vld [vmem:[%s829] sm:$0xff]
            %s831 = smov [#allocation32]
            %v832 = vld [vmem:[%s831] sm:$0xff]
            %s833 = smov [#allocation12]
            %s834 = smov [#allocation14]
            %s835 = smov [#allocation16]
            %s836 = smov [#allocation18]
            %v837 = vld [vmem:[%s833] sm:$0x3]
            %v838 = vld [vmem:[%s834] sm:$0x3]
            %v839 = vld [vmem:[%s835] sm:$0x3]
            %v840 = vld [vmem:[%s836] sm:$0x3]
            %v841 = vmul.f32 %v830, %v837
            %v842 = vmul.f32 %v832, %v839
            %v843 = vsub.f32 %v841, %v842
            %v844 = vmul.f32 %v830, %v838
            %v845 = vmul.f32 %v832, %v840
            %v846 = vsub.f32 %v844, %v845
            %v847 = vmul.f32 %v832, %v837
            %v848 = vmul.f32 %v830, %v839
            %v849 = vadd.f32 %v847, %v848
            %v850 = vmul.f32 %v832, %v838
            %v851 = vmul.f32 %v830, %v840
            %v852 = vadd.f32 %v850, %v851
            %853 = vst [vmem:[%s833] sm:$0x3] %v843
            %854 = vst [vmem:[%s834] sm:$0x3] %v846
            %855 = vst [vmem:[%s835] sm:$0x3] %v849
            %856 = vst [vmem:[%s836] sm:$0x3] %v852
            %s857 = smov [#allocation12]
            %s858 = smov [#allocation16]
            %v859 = vld [vmem:[%s857] ss:$0 sm:$0xff]
            %s861 = scalar_lea.vmem %s857, 4294967295
            %v862 = vld [vmem:[%s861] sm:$0x2]
            %v863 = vlaneseq
            %v864 = vshrl.u32 %v863, 7
            %vm865 = vcmp.eq.s32.totalorder %v864, 0
            %v866 = vsel %vm865, %v859, %v862
            %s867 = scalar_lea.vmem %s857, 1
            %v868 = vld [vmem:[%s867] ss:$0 sm:$0xff]
            %869 = vst [vmem:[%s857] sm:$0x3] %v866
            %v870 = vld [vmem:[%s858] ss:$0 sm:$0xff]
            %s871 = scalar_lea.vmem %s857, 1
            %872 = vst [vmem:[%s871] sm:$0x1] %v870
            %s873 = scalar_lea.vmem %s858, 1
            %v874 = vld [vmem:[%s873] sm:$0x1]
            %v875 = vlaneseq
            %v876 = vshrl.u32 %v875, 7
            %vm877 = vcmp.eq.s32.totalorder %v876, 1
            %v878 = vsel %vm877, %v868, %v874
            %v879 = vld [vmem:[%s858] ss:$0 sm:$0xff]
            %880 = vst [vmem:[%s858] sm:$0x3] %v878
            %s881 = smov [#allocation14]
            %s882 = smov [#allocation18]
            %v883 = vld [vmem:[%s881] ss:$0 sm:$0xff]
            %s885 = scalar_lea.vmem %s881, 4294967295
            %v886 = vld [vmem:[%s885] sm:$0x2]
            %v887 = vlaneseq
            %v888 = vshrl.u32 %v887, 7
            %vm889 = vcmp.eq.s32.totalorder %v888, 0
            %v890 = vsel %vm889, %v883, %v886
            %s891 = scalar_lea.vmem %s881, 1
            %v892 = vld [vmem:[%s891] ss:$0 sm:$0xff]
            %893 = vst [vmem:[%s881] sm:$0x3] %v890
            %v894 = vld [vmem:[%s882] ss:$0 sm:$0xff]
            %s895 = scalar_lea.vmem %s881, 1
            %896 = vst [vmem:[%s895] sm:$0x1] %v894
            %s897 = scalar_lea.vmem %s882, 1
            %v898 = vld [vmem:[%s897] sm:$0x1]
            %v899 = vlaneseq
            %v900 = vshrl.u32 %v899, 7
            %vm901 = vcmp.eq.s32.totalorder %v900, 1
            %v902 = vsel %vm901, %v892, %v898
            %v903 = vld [vmem:[%s882] ss:$0 sm:$0xff]
            %904 = vst [vmem:[%s882] sm:$0x3] %v902
          $region152: #{custom-call.5} parent=144 // loop_footer
            %s465 = sadd.s32 1, %s461
          $region153: #{custom-call.5} parent=144 // loop_footer_branch
            %460 = sbr.rel target = $region149
          $region154: #{custom-call.5} parent=144 // loop_exit
            _
          %s905 = sadd.s32 %s363, 1
        $region145: #{custom-call.5} parent=139 // loop_footer
          _
        $region146: #{custom-call.5} parent=139 // loop_footer_branch
          %362 = sbr.rel target = $region142
        $region147: #{custom-call.5} parent=139 // loop_exit
          _
        %s908 = sand.u32 %s17, 7
        %s909 = scalar_lea.vmem [#allocation8], %s908
        %s910 = sand.u32 %s17, 7
        %s911 = scalar_lea.vmem [#allocation10], %s910
        %s912 = smov [#allocation20]
        %s913 = smov %s909
        %v914 = vlaneseq
        %v915 = vand.u32 %v914, 127
        %v916 = vmov %v915
        %v917 = vlaneseq
        %v918 = vshrl.u32 %v917, 7
        %v919 = vmov %v918
        %v920 = vld [vmem:[%s912] sm:$0x3]
        %vm923 = vcmp.eq.s32.totalorder %v919, %v916
        %v924 = vsel %vm923, %v920, 0.0
        %v925 = vrot.slane %v924, 4
        %v926 = vadd.f32 %v924, %v925
        %v927 = vrot.slane %v926, 2
        %v928 = vadd.f32 %v926, %v927
        %v929 = vrot.slane %v928, 1
        %v930 = vadd.f32 %v928, %v929
        %931 = vst [vmem:[%s913] sm:$0x1] %v930
        %s932 = smov [#allocation23]
        %s933 = smov %s911
        %v934 = vlaneseq
        %v935 = vand.u32 %v934, 127
        %v936 = vmov %v935
        %v937 = vlaneseq
        %v938 = vshrl.u32 %v937, 7
        %v939 = vmov %v938
        %v940 = vld [vmem:[%s932] sm:$0x3]
        %vm943 = vcmp.eq.s32.totalorder %v939, %v936
        %v944 = vsel %vm943, %v940, 0.0
        %v945 = vrot.slane %v944, 4
        %v946 = vadd.f32 %v944, %v945
        %v947 = vrot.slane %v946, 2
        %v948 = vadd.f32 %v946, %v947
        %v949 = vrot.slane %v948, 1
        %v950 = vadd.f32 %v948, %v949
        %951 = vst [vmem:[%s933] sm:$0x1] %v950
        %s953 = sshllo.u32 0, 2
        %v955 = vld [vmem:[#allocation8] sm:%s953]
        %s956 = sshllo.u32 0, 2
        %957 = vst [vmem:[%s279] sm:%s956] %v955
        %s959 = sshllo.u32 0, 2
        %v961 = vld [vmem:[#allocation10] sm:%s959]
        %s962 = sshllo.u32 0, 2
        %963 = vst [vmem:[%s285] sm:%s962] %v961
        %s965 = sshllo.u32 0, 2
        %v967 = vld [vmem:[#allocation12] sm:%s965]
        %s968 = sshllo.u32 0, 2
        %969 = vst [vmem:[%s289] sm:%s968] %v967
        %s971 = sshllo.u32 0, 2
        %v973 = vld [vmem:[#allocation14] sm:%s971]
        %s974 = sshllo.u32 0, 2
        %975 = vst [vmem:[%s293] sm:%s974] %v973
        %s977 = sshllo.u32 0, 2
        %v979 = vld [vmem:[#allocation16] sm:%s977]
        %s980 = sshllo.u32 0, 2
        %981 = vst [vmem:[%s297] sm:%s980] %v979
        %s983 = sshllo.u32 0, 2
        %v985 = vld [vmem:[#allocation18] sm:%s983]
        %s986 = sshllo.u32 0, 2
        %987 = vst [vmem:[%s301] sm:%s986] %v985
        %s988 = sand.u32 %s27, 1
        %s989 = sand.u32 %s27, 1
        %s990 = smul.addr %s989, 2
        %s991 = scalar_lea.vmem [#allocation9], %s990
        %s992 = sand.u32 %s55, 1
        %s993 = sand.u32 %s55, 1
        %s994 = smul.addr %s993, 2
        %s995 = scalar_lea.vmem [#allocation11], %s994
        %s996 = sand.u32 %s17, 1
        %s997 = sand.u32 %s17, 1
        %s998 = smul.addr %s997, 2
        %s999 = scalar_lea.vmem [#allocation13], %s998
        %s1000 = sand.u32 %s17, 1
        %s1001 = sand.u32 %s17, 1
        %s1002 = smul.addr %s1001, 2
        %s1003 = scalar_lea.vmem [#allocation15], %s1002
        %s1004 = sand.u32 %s17, 1
        %s1005 = sand.u32 %s17, 1
        %s1006 = smul.addr %s1005, 2
        %s1007 = scalar_lea.vmem [#allocation17], %s1006
        %s1008 = sand.u32 %s17, 1
        %s1009 = sand.u32 %s17, 1
        %s1010 = smul.addr %s1009, 2
        %s1011 = scalar_lea.vmem [#allocation19], %s1010
        // Predicated region
        $region155: #{custom-call.5} parent=139 // pred_check
          %p1012 = pneg %p37
        $region156: #{custom-call.5} parent=139 // pred_check_branch
          %1014 = sbr.rel (%p1012) target = $region158
        $region157: #{custom-call.5} parent=139 // pred_region
          %s1015 = sshrl.u32 %s17, 3
          %s1016 = smul.addr %s1015, 2
          %s1017 = scalar_lea.vmem %s4, %s1016
          // Predicated region
          $region159: #{custom-call.5} parent=157 // pred_check
            _
          $region160: #{custom-call.5} parent=157 // pred_check_branch
            %1019 = sbr.rel (0) target = $region162
          $region161: #{custom-call.5} parent=157 // pred_region
            // Predicated region
            $region163: #{custom-call.5} parent=161 // pred_check
              _
            $region164: #{custom-call.5} parent=161 // pred_check_branch
              %1021 = sbr.rel target = $region166
            $region165: #{custom-call.5} parent=161 // pred_region
              // Predicated region
              $region178: #{custom-call.5} parent=165 // pred_check
                _
              $region179: #{custom-call.5} parent=165 // pred_check_branch
                %1036 = sbr.rel (0) target = $region181
              $region180: #{custom-call.5} parent=165 // pred_region
                loop: start=0, step=1, limit=1
                $region182: #{custom-call.5} parent=180 // loop_pre_header
                  _
                $region183: #{custom-call.5} parent=180 // loop_header
                  %s1039 = sphi 0, %s1043
                  %p1040 = scmp.ge.s32.totalorder %s1039, 1
                  %s1044 = sphi %s991, %s991
                  %s1045 = sphi %s1017, %s1017
                $region184: #{custom-call.5} parent=180 // loop_header_branch
                  %1042 = sbr.rel (%p1040) target = $region188
                $region185: #{custom-call.5} parent=180 // loop_body
                  %v1046 = vld [vmem:[%s1044] sm:$0x3]
                  %1047 = vst [vmem:[%s1045] sm:$0x3] %v1046
                $region186: #{custom-call.5} parent=180 // loop_footer
                  %s1043 = sadd.s32 1, %s1039
                $region187: #{custom-call.5} parent=180 // loop_footer_branch
                  %1038 = sbr.rel target = $region183
                $region188: #{custom-call.5} parent=180 // loop_exit
                  _
              $region181: #{custom-call.5} parent=165 // pred_fallthru
                _
            $region166: #{custom-call.5} parent=161 // pred_fallthru
              _
            // Predicated region
            $region167: #{custom-call.5} parent=161 // pred_check
              _
            $region168: #{custom-call.5} parent=161 // pred_check_branch
              %1023 = sbr.rel (0) target = $region170
            $region169: #{custom-call.5} parent=161 // pred_region
              loop: start=0, step=1, limit=1
              $region171: #{custom-call.5} parent=169 // loop_pre_header
                _
              $region172: #{custom-call.5} parent=169 // loop_header
                %s1026 = sphi 0, %s1030
                %p1027 = scmp.ge.s32.totalorder %s1026, 1
                %s1031 = sphi %s991, %s991
                %s1032 = sphi %s1017, %s1017
              $region173: #{custom-call.5} parent=169 // loop_header_branch
                %1029 = sbr.rel (%p1027) target = $region177
              $region174: #{custom-call.5} parent=169 // loop_body
                %v1033 = vld [vmem:[%s1031] sm:$0x3]
                %1034 = vst [vmem:[%s1032] sm:$0x3] %v1033
              $region175: #{custom-call.5} parent=169 // loop_footer
                %s1030 = sadd.s32 1, %s1026
              $region176: #{custom-call.5} parent=169 // loop_footer_branch
                %1025 = sbr.rel target = $region172
              $region177: #{custom-call.5} parent=169 // loop_exit
                _
            $region170: #{custom-call.5} parent=161 // pred_fallthru
              _
          $region162: #{custom-call.5} parent=157 // pred_fallthru
            _
          %1048 = vnop
        $region158: #{custom-call.5} parent=139 // pred_fallthru
          _
        // Predicated region
        $region189: #{custom-call.5} parent=139 // pred_check
          %p1049 = pneg %p65
        $region190: #{custom-call.5} parent=139 // pred_check_branch
          %1051 = sbr.rel (%p1049) target = $region192
        $region191: #{custom-call.5} parent=139 // pred_region
          %s1052 = sshrl.u32 %s17, 3
          %s1053 = smul.addr %s1052, 2
          %s1054 = scalar_lea.vmem %s5, %s1053
          // Predicated region
          $region193: #{custom-call.5} parent=191 // pred_check
            _
          $region194: #{custom-call.5} parent=191 // pred_check_branch
            %1056 = sbr.rel (0) target = $region196
          $region195: #{custom-call.5} parent=191 // pred_region
            // Predicated region
            $region197: #{custom-call.5} parent=195 // pred_check
              _
            $region198: #{custom-call.5} parent=195 // pred_check_branch
              %1058 = sbr.rel target = $region200
            $region199: #{custom-call.5} parent=195 // pred_region
              // Predicated region
              $region212: #{custom-call.5} parent=199 // pred_check
                _
              $region213: #{custom-call.5} parent=199 // pred_check_branch
                %1073 = sbr.rel (0) target = $region215
              $region214: #{custom-call.5} parent=199 // pred_region
                loop: start=0, step=1, limit=1
                $region216: #{custom-call.5} parent=214 // loop_pre_header
                  _
                $region217: #{custom-call.5} parent=214 // loop_header
                  %s1076 = sphi 0, %s1080
                  %p1077 = scmp.ge.s32.totalorder %s1076, 1
                  %s1081 = sphi %s995, %s995
                  %s1082 = sphi %s1054, %s1054
                $region218: #{custom-call.5} parent=214 // loop_header_branch
                  %1079 = sbr.rel (%p1077) target = $region222
                $region219: #{custom-call.5} parent=214 // loop_body
                  %v1083 = vld [vmem:[%s1081] sm:$0x3]
                  %1084 = vst [vmem:[%s1082] sm:$0x3] %v1083
                $region220: #{custom-call.5} parent=214 // loop_footer
                  %s1080 = sadd.s32 1, %s1076
                $region221: #{custom-call.5} parent=214 // loop_footer_branch
                  %1075 = sbr.rel target = $region217
                $region222: #{custom-call.5} parent=214 // loop_exit
                  _
              $region215: #{custom-call.5} parent=199 // pred_fallthru
                _
            $region200: #{custom-call.5} parent=195 // pred_fallthru
              _
            // Predicated region
            $region201: #{custom-call.5} parent=195 // pred_check
              _
            $region202: #{custom-call.5} parent=195 // pred_check_branch
              %1060 = sbr.rel (0) target = $region204
            $region203: #{custom-call.5} parent=195 // pred_region
              loop: start=0, step=1, limit=1
              $region205: #{custom-call.5} parent=203 // loop_pre_header
                _
              $region206: #{custom-call.5} parent=203 // loop_header
                %s1063 = sphi 0, %s1067
                %p1064 = scmp.ge.s32.totalorder %s1063, 1
                %s1068 = sphi %s995, %s995
                %s1069 = sphi %s1054, %s1054
              $region207: #{custom-call.5} parent=203 // loop_header_branch
                %1066 = sbr.rel (%p1064) target = $region211
              $region208: #{custom-call.5} parent=203 // loop_body
                %v1070 = vld [vmem:[%s1068] sm:$0x3]
                %1071 = vst [vmem:[%s1069] sm:$0x3] %v1070
              $region209: #{custom-call.5} parent=203 // loop_footer
                %s1067 = sadd.s32 1, %s1063
              $region210: #{custom-call.5} parent=203 // loop_footer_branch
                %1062 = sbr.rel target = $region206
              $region211: #{custom-call.5} parent=203 // loop_exit
                _
            $region204: #{custom-call.5} parent=195 // pred_fallthru
              _
          $region196: #{custom-call.5} parent=191 // pred_fallthru
            _
          %1085 = vnop
        $region192: #{custom-call.5} parent=139 // pred_fallthru
          _
        %s1086 = smul.addr %s17, 2
        %s1087 = scalar_lea.vmem %s6, %s1086
        // Predicated region
        $region223: #{custom-call.5} parent=139 // pred_check
          _
        $region224: #{custom-call.5} parent=139 // pred_check_branch
          %1089 = sbr.rel (0) target = $region226
        $region225: #{custom-call.5} parent=139 // pred_region
          // Predicated region
          $region227: #{custom-call.5} parent=225 // pred_check
            _
          $region228: #{custom-call.5} parent=225 // pred_check_branch
            %1091 = sbr.rel target = $region230
          $region229: #{custom-call.5} parent=225 // pred_region
            // Predicated region
            $region242: #{custom-call.5} parent=229 // pred_check
              _
            $region243: #{custom-call.5} parent=229 // pred_check_branch
              %1106 = sbr.rel (0) target = $region245
            $region244: #{custom-call.5} parent=229 // pred_region
              loop: start=0, step=1, limit=1
              $region246: #{custom-call.5} parent=244 // loop_pre_header
                _
              $region247: #{custom-call.5} parent=244 // loop_header
                %s1109 = sphi 0, %s1113
                %p1110 = scmp.ge.s32.totalorder %s1109, 1
                %s1114 = sphi %s999, %s999
                %s1115 = sphi %s1087, %s1087
              $region248: #{custom-call.5} parent=244 // loop_header_branch
                %1112 = sbr.rel (%p1110) target = $region252
              $region249: #{custom-call.5} parent=244 // loop_body
                %v1116 = vld [vmem:[%s1114] sm:$0x3]
                %1117 = vst [vmem:[%s1115] sm:$0x3] %v1116
              $region250: #{custom-call.5} parent=244 // loop_footer
                %s1113 = sadd.s32 1, %s1109
              $region251: #{custom-call.5} parent=244 // loop_footer_branch
                %1108 = sbr.rel target = $region247
              $region252: #{custom-call.5} parent=244 // loop_exit
                _
            $region245: #{custom-call.5} parent=229 // pred_fallthru
              _
          $region230: #{custom-call.5} parent=225 // pred_fallthru
            _
          // Predicated region
          $region231: #{custom-call.5} parent=225 // pred_check
            _
          $region232: #{custom-call.5} parent=225 // pred_check_branch
            %1093 = sbr.rel (0) target = $region234
          $region233: #{custom-call.5} parent=225 // pred_region
            loop: start=0, step=1, limit=1
            $region235: #{custom-call.5} parent=233 // loop_pre_header
              _
            $region236: #{custom-call.5} parent=233 // loop_header
              %s1096 = sphi 0, %s1100
              %p1097 = scmp.ge.s32.totalorder %s1096, 1
              %s1101 = sphi %s999, %s999
              %s1102 = sphi %s1087, %s1087
            $region237: #{custom-call.5} parent=233 // loop_header_branch
              %1099 = sbr.rel (%p1097) target = $region241
            $region238: #{custom-call.5} parent=233 // loop_body
              %v1103 = vld [vmem:[%s1101] sm:$0x3]
              %1104 = vst [vmem:[%s1102] sm:$0x3] %v1103
            $region239: #{custom-call.5} parent=233 // loop_footer
              %s1100 = sadd.s32 1, %s1096
            $region240: #{custom-call.5} parent=233 // loop_footer_branch
              %1095 = sbr.rel target = $region236
            $region241: #{custom-call.5} parent=233 // loop_exit
              _
          $region234: #{custom-call.5} parent=225 // pred_fallthru
            _
        $region226: #{custom-call.5} parent=139 // pred_fallthru
          _
        %1118 = vnop
        %s1119 = smul.addr %s17, 2
        %s1120 = scalar_lea.vmem %s7, %s1119
        // Predicated region
        $region253: #{custom-call.5} parent=139 // pred_check
          _
        $region254: #{custom-call.5} parent=139 // pred_check_branch
          %1122 = sbr.rel (0) target = $region256
        $region255: #{custom-call.5} parent=139 // pred_region
          // Predicated region
          $region257: #{custom-call.5} parent=255 // pred_check
            _
          $region258: #{custom-call.5} parent=255 // pred_check_branch
            %1124 = sbr.rel target = $region260
          $region259: #{custom-call.5} parent=255 // pred_region
            // Predicated region
            $region272: #{custom-call.5} parent=259 // pred_check
              _
            $region273: #{custom-call.5} parent=259 // pred_check_branch
              %1139 = sbr.rel (0) target = $region275
            $region274: #{custom-call.5} parent=259 // pred_region
              loop: start=0, step=1, limit=1
              $region276: #{custom-call.5} parent=274 // loop_pre_header
                _
              $region277: #{custom-call.5} parent=274 // loop_header
                %s1142 = sphi 0, %s1146
                %p1143 = scmp.ge.s32.totalorder %s1142, 1
                %s1147 = sphi %s1003, %s1003
                %s1148 = sphi %s1120, %s1120
              $region278: #{custom-call.5} parent=274 // loop_header_branch
                %1145 = sbr.rel (%p1143) target = $region282
              $region279: #{custom-call.5} parent=274 // loop_body
                %v1149 = vld [vmem:[%s1147] sm:$0x3]
                %1150 = vst [vmem:[%s1148] sm:$0x3] %v1149
              $region280: #{custom-call.5} parent=274 // loop_footer
                %s1146 = sadd.s32 1, %s1142
              $region281: #{custom-call.5} parent=274 // loop_footer_branch
                %1141 = sbr.rel target = $region277
              $region282: #{custom-call.5} parent=274 // loop_exit
                _
            $region275: #{custom-call.5} parent=259 // pred_fallthru
              _
          $region260: #{custom-call.5} parent=255 // pred_fallthru
            _
          // Predicated region
          $region261: #{custom-call.5} parent=255 // pred_check
            _
          $region262: #{custom-call.5} parent=255 // pred_check_branch
            %1126 = sbr.rel (0) target = $region264
          $region263: #{custom-call.5} parent=255 // pred_region
            loop: start=0, step=1, limit=1
            $region265: #{custom-call.5} parent=263 // loop_pre_header
              _
            $region266: #{custom-call.5} parent=263 // loop_header
              %s1129 = sphi 0, %s1133
              %p1130 = scmp.ge.s32.totalorder %s1129, 1
              %s1134 = sphi %s1003, %s1003
              %s1135 = sphi %s1120, %s1120
            $region267: #{custom-call.5} parent=263 // loop_header_branch
              %1132 = sbr.rel (%p1130) target = $region271
            $region268: #{custom-call.5} parent=263 // loop_body
              %v1136 = vld [vmem:[%s1134] sm:$0x3]
              %1137 = vst [vmem:[%s1135] sm:$0x3] %v1136
            $region269: #{custom-call.5} parent=263 // loop_footer
              %s1133 = sadd.s32 1, %s1129
            $region270: #{custom-call.5} parent=263 // loop_footer_branch
              %1128 = sbr.rel target = $region266
            $region271: #{custom-call.5} parent=263 // loop_exit
              _
          $region264: #{custom-call.5} parent=255 // pred_fallthru
            _
        $region256: #{custom-call.5} parent=139 // pred_fallthru
          _
        %1151 = vnop
        %s1152 = smul.addr %s17, 2
        %s1153 = scalar_lea.vmem %s8, %s1152
        // Predicated region
        $region283: #{custom-call.5} parent=139 // pred_check
          _
        $region284: #{custom-call.5} parent=139 // pred_check_branch
          %1155 = sbr.rel (0) target = $region286
        $region285: #{custom-call.5} parent=139 // pred_region
          // Predicated region
          $region287: #{custom-call.5} parent=285 // pred_check
            _
          $region288: #{custom-call.5} parent=285 // pred_check_branch
            %1157 = sbr.rel target = $region290
          $region289: #{custom-call.5} parent=285 // pred_region
            // Predicated region
            $region302: #{custom-call.5} parent=289 // pred_check
              _
            $region303: #{custom-call.5} parent=289 // pred_check_branch
              %1172 = sbr.rel (0) target = $region305
            $region304: #{custom-call.5} parent=289 // pred_region
              loop: start=0, step=1, limit=1
              $region306: #{custom-call.5} parent=304 // loop_pre_header
                _
              $region307: #{custom-call.5} parent=304 // loop_header
                %s1175 = sphi 0, %s1179
                %p1176 = scmp.ge.s32.totalorder %s1175, 1
                %s1180 = sphi %s1007, %s1007
                %s1181 = sphi %s1153, %s1153
              $region308: #{custom-call.5} parent=304 // loop_header_branch
                %1178 = sbr.rel (%p1176) target = $region312
              $region309: #{custom-call.5} parent=304 // loop_body
                %v1182 = vld [vmem:[%s1180] sm:$0x3]
                %1183 = vst [vmem:[%s1181] sm:$0x3] %v1182
              $region310: #{custom-call.5} parent=304 // loop_footer
                %s1179 = sadd.s32 1, %s1175
              $region311: #{custom-call.5} parent=304 // loop_footer_branch
                %1174 = sbr.rel target = $region307
              $region312: #{custom-call.5} parent=304 // loop_exit
                _
            $region305: #{custom-call.5} parent=289 // pred_fallthru
              _
          $region290: #{custom-call.5} parent=285 // pred_fallthru
            _
          // Predicated region
          $region291: #{custom-call.5} parent=285 // pred_check
            _
          $region292: #{custom-call.5} parent=285 // pred_check_branch
            %1159 = sbr.rel (0) target = $region294
          $region293: #{custom-call.5} parent=285 // pred_region
            loop: start=0, step=1, limit=1
            $region295: #{custom-call.5} parent=293 // loop_pre_header
              _
            $region296: #{custom-call.5} parent=293 // loop_header
              %s1162 = sphi 0, %s1166
              %p1163 = scmp.ge.s32.totalorder %s1162, 1
              %s1167 = sphi %s1007, %s1007
              %s1168 = sphi %s1153, %s1153
            $region297: #{custom-call.5} parent=293 // loop_header_branch
              %1165 = sbr.rel (%p1163) target = $region301
            $region298: #{custom-call.5} parent=293 // loop_body
              %v1169 = vld [vmem:[%s1167] sm:$0x3]
              %1170 = vst [vmem:[%s1168] sm:$0x3] %v1169
            $region299: #{custom-call.5} parent=293 // loop_footer
              %s1166 = sadd.s32 1, %s1162
            $region300: #{custom-call.5} parent=293 // loop_footer_branch
              %1161 = sbr.rel target = $region296
            $region301: #{custom-call.5} parent=293 // loop_exit
              _
          $region294: #{custom-call.5} parent=285 // pred_fallthru
            _
        $region286: #{custom-call.5} parent=139 // pred_fallthru
          _
        %1184 = vnop
        %s1185 = smul.addr %s17, 2
        %s1186 = scalar_lea.vmem %s9, %s1185
        // Predicated region
        $region313: #{custom-call.5} parent=139 // pred_check
          _
        $region314: #{custom-call.5} parent=139 // pred_check_branch
          %1188 = sbr.rel (0) target = $region316
        $region315: #{custom-call.5} parent=139 // pred_region
          // Predicated region
          $region317: #{custom-call.5} parent=315 // pred_check
            _
          $region318: #{custom-call.5} parent=315 // pred_check_branch
            %1190 = sbr.rel target = $region320
          $region319: #{custom-call.5} parent=315 // pred_region
            // Predicated region
            $region332: #{custom-call.5} parent=319 // pred_check
              _
            $region333: #{custom-call.5} parent=319 // pred_check_branch
              %1205 = sbr.rel (0) target = $region335
            $region334: #{custom-call.5} parent=319 // pred_region
              loop: start=0, step=1, limit=1
              $region336: #{custom-call.5} parent=334 // loop_pre_header
                _
              $region337: #{custom-call.5} parent=334 // loop_header
                %s1208 = sphi 0, %s1212
                %p1209 = scmp.ge.s32.totalorder %s1208, 1
                %s1213 = sphi %s1011, %s1011
                %s1214 = sphi %s1186, %s1186
              $region338: #{custom-call.5} parent=334 // loop_header_branch
                %1211 = sbr.rel (%p1209) target = $region342
              $region339: #{custom-call.5} parent=334 // loop_body
                %v1215 = vld [vmem:[%s1213] sm:$0x3]
                %1216 = vst [vmem:[%s1214] sm:$0x3] %v1215
              $region340: #{custom-call.5} parent=334 // loop_footer
                %s1212 = sadd.s32 1, %s1208
              $region341: #{custom-call.5} parent=334 // loop_footer_branch
                %1207 = sbr.rel target = $region337
              $region342: #{custom-call.5} parent=334 // loop_exit
                _
            $region335: #{custom-call.5} parent=319 // pred_fallthru
              _
          $region320: #{custom-call.5} parent=315 // pred_fallthru
            _
          // Predicated region
          $region321: #{custom-call.5} parent=315 // pred_check
            _
          $region322: #{custom-call.5} parent=315 // pred_check_branch
            %1192 = sbr.rel (0) target = $region324
          $region323: #{custom-call.5} parent=315 // pred_region
            loop: start=0, step=1, limit=1
            $region325: #{custom-call.5} parent=323 // loop_pre_header
              _
            $region326: #{custom-call.5} parent=323 // loop_header
              %s1195 = sphi 0, %s1199
              %p1196 = scmp.ge.s32.totalorder %s1195, 1
              %s1200 = sphi %s1011, %s1011
              %s1201 = sphi %s1186, %s1186
            $region327: #{custom-call.5} parent=323 // loop_header_branch
              %1198 = sbr.rel (%p1196) target = $region331
            $region328: #{custom-call.5} parent=323 // loop_body
              %v1202 = vld [vmem:[%s1200] sm:$0x3]
              %1203 = vst [vmem:[%s1201] sm:$0x3] %v1202
            $region329: #{custom-call.5} parent=323 // loop_footer
              %s1199 = sadd.s32 1, %s1195
            $region330: #{custom-call.5} parent=323 // loop_footer_branch
              %1194 = sbr.rel target = $region326
            $region331: #{custom-call.5} parent=323 // loop_exit
              _
          $region324: #{custom-call.5} parent=315 // pred_fallthru
            _
        $region316: #{custom-call.5} parent=139 // pred_fallthru
          _
        %1217 = vnop
      $region140: #{custom-call.5} parent=5 // pred_fallthru
        _
      %p1218 = scmp.le.s32.totalorder 2, %s12
      // Predicated region
      $region343: #{custom-call.5} parent=5 // pred_check
        %p1219 = pneg %p1218
      $region344: #{custom-call.5} parent=5 // pred_check_branch
        %1221 = sbr.rel (%p1219) target = $region346
      $region345: #{custom-call.5} parent=5 // pred_region
        %s1222 = ssub.s32 %s12, 2
        // Predicated region
        $region347: #{custom-call.5} parent=345 // pred_check
          %p1223 = pneg %p43
        $region348: #{custom-call.5} parent=345 // pred_check_branch
          %1225 = sbr.rel (%p1223) target = $region350
        $region349: #{custom-call.5} parent=345 // pred_region
          %s1226 = sand.u32 %s28, 1
          %s1227 = sand.u32 %s28, 1
          %s1228 = smul.addr %s1227, 2
          %s1229 = scalar_lea.vmem [#allocation9], %s1228
        $region350: #{custom-call.5} parent=345 // pred_fallthru
          _
        // Predicated region
        $region351: #{custom-call.5} parent=345 // pred_check
          %p1230 = pneg %p71
        $region352: #{custom-call.5} parent=345 // pred_check_branch
          %1232 = sbr.rel (%p1230) target = $region354
        $region353: #{custom-call.5} parent=345 // pred_region
          %s1233 = sand.u32 %s56, 1
          %s1234 = sand.u32 %s56, 1
          %s1235 = smul.addr %s1234, 2
          %s1236 = scalar_lea.vmem [#allocation11], %s1235
        $region354: #{custom-call.5} parent=345 // pred_fallthru
          _
        %s1237 = sand.u32 %s18, 1
        %s1238 = sand.u32 %s18, 1
        %s1239 = smul.addr %s1238, 2
        %s1240 = scalar_lea.vmem [#allocation13], %s1239
        %s1241 = sand.u32 %s18, 1
        %s1242 = sand.u32 %s18, 1
        %s1243 = smul.addr %s1242, 2
        %s1244 = scalar_lea.vmem [#allocation15], %s1243
        %s1245 = sand.u32 %s18, 1
        %s1246 = sand.u32 %s18, 1
        %s1247 = smul.addr %s1246, 2
        %s1248 = scalar_lea.vmem [#allocation17], %s1247
        %s1249 = sand.u32 %s18, 1
        %s1250 = sand.u32 %s18, 1
        %s1251 = smul.addr %s1250, 2
        %s1252 = scalar_lea.vmem [#allocation19], %s1251
      $region346: #{custom-call.5} parent=5 // pred_fallthru
        _
    $region6: #{custom-call.5} parent=1 // loop_footer
      %s16 = sadd.s32 1, %s12
    $region7: #{custom-call.5} parent=1 // loop_footer_branch
      %11 = sbr.rel target = $region3
    $region8: #{custom-call.5} parent=1 // loop_exit
      _

// kernel: style_decorator_forward.16
$region0: #{style_decorator_forward.16}
  #allocation0 [shape = 'u32[]', space=smem, size = 0x4, offset = 0x4, fixed_abs, tag = 'smem constant byte address 0x4 - core index']
  #allocation1 [shape = 'u32[144,128]{1,0:T(1,128)}', space=vmem, size = 0x12000, scoped, tag = 'internal scratch']
  %s0 = inlined_call_operand.vmem [shape: f32[2,4,256], index: 0, kind: input, shape index: {}]
  %s1 = inlined_call_operand.vmem [shape: f32[2,4,4], index: 1, kind: output, shape index: {}]
  %s2 = sld [smem:[#allocation0]]
  $region41: #{style_decorator_forward.16} parent=0
    _
  %s4 = ssub.s32 1, %s2
  %s5 = scalar_select 0, %s4, %s2
  loop: start=0, step=1, limit=4
  $region2: #{style_decorator_forward.16} parent=0 // loop_pre_header
    _
  $region3: #{style_decorator_forward.16} parent=0 // loop_header
    %s7 = sphi 0, %s11
    %p8 = scmp.ge.s32.totalorder %s7, 4
    %s14 = sphi 0, %s26
    %s15 = sphi 0, %s22
    %s16 = sphi 0, %s14
    %s17 = sphi 0, %s15
    %s18 = sphi 0, %s16
    %s19 = sphi 0, %s17
    %s31 = sphi 0, %s33
    %s34 = sphi 0, %s31
    %s35 = sphi 0, %s34
    %s51 = sphi 0, %s35
    %s57 = sphi 0, %s59
    %s60 = sphi 0, %s57
    %s61 = sphi 0, %s60
    %s77 = sphi 0, %s61
  $region4: #{style_decorator_forward.16} parent=0 // loop_header_branch
    %10 = sbr.rel (%p8) target = $region8
  $region5: #{style_decorator_forward.16} parent=0 // loop_body
    %s12 = ssub.s32 %s7, 1
    %s13 = ssub.s32 %s7, 2
    %s20 = sadd.s32 1, %s15
    %p21 = scmp.ge.s32.totalorder %s20, 1
    %s22 = scalar_select %p21, 0, %s20
    %s23 = sadd.s32 1, %s14
    %s24 = scalar_select %p21, %s23, %s14
    %p25 = scmp.ge.s32.totalorder %s24, 2
    %s26 = scalar_select %p25, 0, %s24
    %s27 = ssub.s32 %s14, %s26
    %s28 = ssub.s32 %s15, %s22
    %s29 = sor.u32 %s27, %s28
    %p30 = scmp.eq.s32.totalorder %s29, 0
    %s32 = sadd.s32 %s31, 1
    %s33 = scalar_select %p30, %s31, %s32
    %p36 = pneg %p30
    %p37 = scmp.eq.s32.totalorder %s7, 1
    %p38 = por %p36, %p37
    %p39 = scmp.ne.s32.totalorder %s31, %s34
    %p40 = scmp.eq.s32.totalorder %s7, 0
    %p41 = por %p39, %p40
    %p42 = scmp.ne.s32.totalorder %s31, %s34
    %p43 = scmp.eq.s32.totalorder %s12, 1
    %p44 = por %p42, %p43
    %p45 = scmp.ne.s32.totalorder %s34, %s35
    %p46 = scmp.eq.s32.totalorder %s12, 0
    %p47 = por %p45, %p46
    %p48 = scmp.ne.s32.totalorder %s34, %s35
    %p49 = scmp.eq.s32.totalorder %s13, 1
    %p50 = por %p48, %p49
    %p52 = scmp.ne.s32.totalorder %s35, %s51
    %p53 = scmp.eq.s32.totalorder %s13, 0
    %p54 = por %p52, %p53
    %s55 = ssub.s32 %s14, %s26
    %p56 = scmp.eq.s32.totalorder %s55, 0
    %s58 = sadd.s32 %s57, 1
    %s59 = scalar_select %p56, %s57, %s58
    %p62 = pneg %p56
    %p63 = scmp.eq.s32.totalorder %s7, 1
    %p64 = por %p62, %p63
    %p65 = scmp.ne.s32.totalorder %s57, %s60
    %p66 = scmp.eq.s32.totalorder %s7, 0
    %p67 = por %p65, %p66
    %p68 = scmp.ne.s32.totalorder %s57, %s60
    %p69 = scmp.eq.s32.totalorder %s12, 1
    %p70 = por %p68, %p69
    %p71 = scmp.ne.s32.totalorder %s60, %s61
    %p72 = scmp.eq.s32.totalorder %s12, 0
    %p73 = por %p71, %p72
    %p74 = scmp.ne.s32.totalorder %s60, %s61
    %p75 = scmp.eq.s32.totalorder %s13, 1
    %p76 = por %p74, %p75
    %p78 = scmp.ne.s32.totalorder %s61, %s77
    %p79 = scmp.eq.s32.totalorder %s13, 0
    %p80 = por %p78, %p79
    %p81 = scmp.le.s32.totalorder 1, %s7
    %p82 = scmp.lt.s32.totalorder %s7, 3
    %p83 = pnand %p81, %p82
    %p84 = pneg %p83
    // Predicated region
    $region9: #{style_decorator_forward.16} parent=5 // pred_check
      _
    $region10: #{style_decorator_forward.16} parent=5 // pred_check_branch
      %86 = sbr.rel (%p83) target = $region12
    $region11: #{style_decorator_forward.16} parent=5 // pred_region
      %s87 = ssub.s32 %s7, 1
    $region12: #{style_decorator_forward.16} parent=5 // pred_fallthru
      _
    %p88 = scmp.lt.s32.totalorder %s7, 2
    // Predicated region
    $region13: #{style_decorator_forward.16} parent=5 // pred_check
      %p89 = pneg %p88
    $region14: #{style_decorator_forward.16} parent=5 // pred_check_branch
      %91 = sbr.rel (%p89) target = $region16
    $region15: #{style_decorator_forward.16} parent=5 // pred_region
      // Predicated region
      $region17: #{style_decorator_forward.16} parent=15 // pred_check
        %p92 = pneg %p41
      $region18: #{style_decorator_forward.16} parent=15 // pred_check_branch
        %94 = sbr.rel (%p92) target = $region20
      $region19: #{style_decorator_forward.16} parent=15 // pred_region
        %s95 = smul.u32 2, %s15
        %p96 = scmp.lt.s32.totalorder %s14, 1
        %s97 = scalar_select %p96, %s14, 1
        %p98 = scmp.lt.s32.totalorder %s95, 1
        %s99 = scalar_select %p98, %s95, 1
        %s100 = smul.addr %s97, 2
        %s101 = sadd.s32 %s99, %s100
        %s102 = smul.addr %s101, 4
        %s103 = scalar_lea.vmem %s0, %s102
        %s104 = smul.u32 2, %s15
      $region20: #{style_decorator_forward.16} parent=15 // pred_fallthru
        _
    $region16: #{style_decorator_forward.16} parent=5 // pred_fallthru
      _
    %p105 = scmp.le.s32.totalorder 1, %s7
    %p106 = scmp.lt.s32.totalorder %s7, 3
    %p107 = pnand %p105, %p106
    %p108 = pneg %p107
    // Predicated region
    $region21: #{style_decorator_forward.16} parent=5 // pred_check
      _
    $region22: #{style_decorator_forward.16} parent=5 // pred_check_branch
      %110 = sbr.rel (%p107) target = $region24
    $region23: #{style_decorator_forward.16} parent=5 // pred_region
      %s111 = ssub.s32 %s7, 1
      %s112 = smul.u32 2, %s17
      %p113 = scmp.lt.s32.totalorder %s16, 1
      %s114 = scalar_select %p113, %s16, 1
      %p115 = scmp.lt.s32.totalorder %s112, 1
      %s116 = scalar_select %p115, %s112, 1
      %s117 = smul.addr %s114, 2
      %s118 = sadd.s32 %s116, %s117
      %s119 = smul.addr %s118, 4
      %s120 = scalar_lea.vmem %s0, %s119
      %p121 = pneg %p47
      %p122 = pneg %p44
      %p123 = pneg %p73
      %p124 = pneg %p70
      %p125 = scmp.lt.s32.totalorder %s16, 1
      %s126 = scalar_select %p125, %s16, 1
      %s127 = smul.addr %s126, 4
      %s128 = scalar_lea.vmem %s1, %s127
      %s129 = smul.u32 2, %s17
      %p130 = scmp.lt.s32.totalorder %s16, 1
      %s131 = scalar_select %p130, %s16, 1
      %p132 = scmp.lt.s32.totalorder %s129, 1
      %s133 = scalar_select %p132, %s129, 1
      %s134 = smul.addr %s131, 2
      %s135 = sadd.s32 %s133, %s134
      %s136 = smul.addr %s135, 4
      %s137 = scalar_lea.vmem %s0, %s136
      %s138 = smul.u32 2, %s17
      %p139 = scmp.lt.s32.totalorder %s16, 1
      %s140 = scalar_select %p139, %s16, 1
      %s141 = smul.addr %s140, 4
      %s142 = scalar_lea.vmem %s1, %s141
      %p143 = scmp.eq.s32.totalorder %s17, 0
      // Predicated region
      $region25: #{style_decorator_forward.16} parent=23 // pred_check
        %p144 = pneg %p143
      $region26: #{style_decorator_forward.16} parent=23 // pred_check_branch
        %146 = sbr.rel (%p144) target = $region28
      $region27: #{style_decorator_forward.16} parent=23 // pred_region
        %vm147 = vcmask 27648
        %148 = vst.msk [vmem:[%s142] sm:$0xf] %vm147, 0.0
      $region28: #{style_decorator_forward.16} parent=23 // pred_fallthru
        _
      %v149 = vld [vmem:[%s137] sm:$0xff]
      %v150 = vld [vmem:[%s142] sm:$0xf]
      %v152 = vcombine.high %v149, %v149
      %154 = vmatprep.subr.mxu0 %v152
      %155 = vmatpush1.xpose.msra.mxu0 %v149
      %156 = vmatprep.subr.mxu0 0.0
      %157 = vmatpush1.xpose.msra.mxu0 0.0
      %158 = vmatprep.subr.mxu0 0.0
      %159 = vmatpush1.xpose.msra.mxu0 0.0
      %160 = vmatprep.subr.mxu0 0.0
      %161 = vmatpush1.xpose.msra.mxu0 0.0
      %162 = vmatprep.subr.mxu0 0.0
      %163 = vmatpush1.xpose.msra.mxu0 0.0
      %164 = vmatprep.subr.mxu0 0.0
      %165 = vmatpush1.xpose.msra.mxu0 0.0
      %166 = vmatprep.subr.mxu0 0.0
      %167 = vmatpush1.xpose.msra.mxu0 0.0
      %168 = vmatprep.subr.mxu0 0.0
      %169 = vmatpush1.xpose.msra.mxu0 0.0
      %170 = vmatprep.subr.mxu0 0.0
      %171 = vmatpush1.xpose.msra.mxu0 0.0
      %172 = vmatprep.subr.mxu0 0.0
      %173 = vmatpush1.xpose.msra.mxu0 0.0
      %174 = vmatprep.subr.mxu0 0.0
      %175 = vmatpush1.xpose.msra.mxu0 0.0
      %176 = vmatprep.subr.mxu0 0.0
      %177 = vmatpush1.xpose.msra.mxu0 0.0
      %178 = vmatprep.subr.mxu0 0.0
      %179 = vmatpush1.xpose.msra.mxu0 0.0
      %180 = vmatprep.subr.mxu0 0.0
      %181 = vmatpush1.xpose.msra.mxu0 0.0
      %182 = vmatprep.subr.mxu0 0.0
      %183 = vmatpush1.xpose.msra.mxu0 0.0
      %184 = vmatprep.subr.mxu0 0.0
      %185 = vmatpush1.xpose.msra.mxu0 0.0
      %186 = vmatprep.subr.mxu0 0.0
      %187 = vmatpush1.xpose.msra.mxu0 0.0
      %188 = vmatprep.subr.mxu0 0.0
      %189 = vmatpush1.xpose.msra.mxu0 0.0
      %190 = vmatprep.subr.mxu0 0.0
      %191 = vmatpush1.xpose.msra.mxu0 0.0
      %192 = vmatprep.subr.mxu0 0.0
      %193 = vmatpush1.xpose.msra.mxu0 0.0
      %194 = vmatprep.subr.mxu0 0.0
      %195 = vmatpush1.xpose.msra.mxu0 0.0
      %196 = vmatprep.subr.mxu0 0.0
      %197 = vmatpush1.xpose.msra.mxu0 0.0
      %198 = vmatprep.subr.mxu0 0.0
      %199 = vmatpush1.xpose.msra.mxu0 0.0
      %200 = vmatprep.subr.mxu0 0.0
      %201 = vmatpush1.xpose.msra.mxu0 0.0
      %202 = vmatprep.subr.mxu0 0.0
      %203 = vmatpush1.xpose.msra.mxu0 0.0
      %204 = vmatprep.subr.mxu0 0.0
      %205 = vmatpush1.xpose.msra.mxu0 0.0
      %206 = vmatprep.subr.mxu0 0.0
      %207 = vmatpush1.xpose.msra.mxu0 0.0
      %208 = vmatprep.subr.mxu0 0.0
      %209 = vmatpush1.xpose.msra.mxu0 0.0
      %210 = vmatprep.subr.mxu0 0.0
      %211 = vmatpush1.xpose.msra.mxu0 0.0
      %212 = vmatprep.subr.mxu0 0.0
      %213 = vmatpush1.xpose.msra.mxu0 0.0
      %214 = vmatprep.subr.mxu0 0.0
      %215 = vmatpush1.xpose.msra.mxu0 0.0
      %216 = vmatprep.subr.mxu0 0.0
      %217 = vmatpush1.xpose.msra.mxu0 0.0
      %218 = vmatprep.mubr.f32.mxu0 %v152
      %219 = vmatmul.mubr.f32.gmra.mrb[0].mxu0 %v149
      %v220 = vpop.f32.mrb[0].mxu0
      %v221 = vadd.f32 0.0, %v220
      %v222 = vpop.f32.mrb[0].mxu0
      %223 = vdwg.mxu0
      %v224 = vadd.f32 %v150, %v221
      %vm225 = vcmask 27648
      %226 = vst.msk [vmem:[%s142] sm:$0xf] %vm225, %v224
      %p227 = scmp.lt.s32.totalorder %s16, 1
      %s228 = scalar_select %p227, %s16, 1
      %s229 = smul.addr %s228, 4
      %s230 = scalar_lea.vmem %s1, %s229
      // Predicated region
      $region29: #{style_decorator_forward.16} parent=23 // pred_check
        %p231 = pneg %p70
      $region30: #{style_decorator_forward.16} parent=23 // pred_check_branch
        %233 = sbr.rel (%p231) target = $region32
      $region31: #{style_decorator_forward.16} parent=23 // pred_region
        _
      $region32: #{style_decorator_forward.16} parent=23 // pred_fallthru
        _
    $region24: #{style_decorator_forward.16} parent=5 // pred_fallthru
      _
    %p234 = scmp.le.s32.totalorder 2, %s7
    // Predicated region
    $region33: #{style_decorator_forward.16} parent=5 // pred_check
      %p235 = pneg %p234
    $region34: #{style_decorator_forward.16} parent=5 // pred_check_branch
      %237 = sbr.rel (%p235) target = $region36
    $region35: #{style_decorator_forward.16} parent=5 // pred_region
      %s238 = ssub.s32 %s7, 2
      // Predicated region
      $region37: #{style_decorator_forward.16} parent=35 // pred_check
        %p239 = pneg %p76
      $region38: #{style_decorator_forward.16} parent=35 // pred_check_branch
        %241 = sbr.rel (%p239) target = $region40
      $region39: #{style_decorator_forward.16} parent=35 // pred_region
        %p242 = scmp.lt.s32.totalorder %s18, 1
        %s243 = scalar_select %p242, %s18, 1
        %s244 = smul.addr %s243, 4
        %s245 = scalar_lea.vmem %s1, %s244
      $region40: #{style_decorator_forward.16} parent=35 // pred_fallthru
        _
    $region36: #{style_decorator_forward.16} parent=5 // pred_fallthru
      _
  $region6: #{style_decorator_forward.16} parent=0 // loop_footer
    %s11 = sadd.s32 1, %s7
  $region7: #{style_decorator_forward.16} parent=0 // loop_footer_branch
    %6 = sbr.rel target = $region3
  $region8: #{style_decorator_forward.16} parent=0 // loop_exit
    _

// kernel: style_decorator_forward.13
$region0: #{style_decorator_forward.13}
  #allocation0 [shape = 'u32[]', space=smem, size = 0x4, offset = 0x4, fixed_abs, tag = 'smem constant byte address 0x4 - core index']
  #allocation1 [shape = 'u32[144,128]{1,0:T(1,128)}', space=vmem, size = 0x12000, scoped, tag = 'internal scratch']
  %s0 = inlined_call_operand.vmem [shape: f32[2,4,4], index: 0, kind: input, shape index: {}]
  %s1 = inlined_call_operand.vmem [shape: f32[2,4,4], index: 1, kind: input, shape index: {}]
  %s2 = inlined_call_operand.vmem [shape: f32[2,4,4], index: 2, kind: output, shape index: {}]
  %s3 = sld [smem:[#allocation0]]
  $region41: #{style_decorator_forward.13} parent=0
    _
  %s5 = ssub.s32 1, %s3
  %s6 = scalar_select 0, %s5, %s3
  loop: start=0, step=1, limit=4
  $region2: #{style_decorator_forward.13} parent=0 // loop_pre_header
    _
  $region3: #{style_decorator_forward.13} parent=0 // loop_header
    %s8 = sphi 0, %s12
    %p9 = scmp.ge.s32.totalorder %s8, 4
    %s15 = sphi 0, %s27
    %s16 = sphi 0, %s23
    %s17 = sphi 0, %s15
    %s18 = sphi 0, %s16
    %s19 = sphi 0, %s17
    %s20 = sphi 0, %s18
    %s30 = sphi 0, %s32
    %s33 = sphi 0, %s30
    %s34 = sphi 0, %s33
    %s50 = sphi 0, %s34
    %s58 = sphi 0, %s60
    %s61 = sphi 0, %s58
    %s62 = sphi 0, %s61
    %s78 = sphi 0, %s62
    %s86 = sphi 0, %s88
    %s89 = sphi 0, %s86
    %s90 = sphi 0, %s89
    %s106 = sphi 0, %s90
  $region4: #{style_decorator_forward.13} parent=0 // loop_header_branch
    %11 = sbr.rel (%p9) target = $region8
  $region5: #{style_decorator_forward.13} parent=0 // loop_body
    %s13 = ssub.s32 %s8, 1
    %s14 = ssub.s32 %s8, 2
    %s21 = sadd.s32 1, %s16
    %p22 = scmp.ge.s32.totalorder %s21, 1
    %s23 = scalar_select %p22, 0, %s21
    %s24 = sadd.s32 1, %s15
    %s25 = scalar_select %p22, %s24, %s15
    %p26 = scmp.ge.s32.totalorder %s25, 2
    %s27 = scalar_select %p26, 0, %s25
    %s28 = ssub.s32 %s15, %s27
    %p29 = scmp.eq.s32.totalorder %s28, 0
    %s31 = sadd.s32 %s30, 1
    %s32 = scalar_select %p29, %s30, %s31
    %p35 = pneg %p29
    %p36 = scmp.eq.s32.totalorder %s8, 1
    %p37 = por %p35, %p36
    %p38 = scmp.ne.s32.totalorder %s30, %s33
    %p39 = scmp.eq.s32.totalorder %s8, 0
    %p40 = por %p38, %p39
    %p41 = scmp.ne.s32.totalorder %s30, %s33
    %p42 = scmp.eq.s32.totalorder %s13, 1
    %p43 = por %p41, %p42
    %p44 = scmp.ne.s32.totalorder %s33, %s34
    %p45 = scmp.eq.s32.totalorder %s13, 0
    %p46 = por %p44, %p45
    %p47 = scmp.ne.s32.totalorder %s33, %s34
    %p48 = scmp.eq.s32.totalorder %s14, 1
    %p49 = por %p47, %p48
    %p51 = scmp.ne.s32.totalorder %s34, %s50
    %p52 = scmp.eq.s32.totalorder %s14, 0
    %p53 = por %p51, %p52
    %s54 = ssub.s32 %s15, %s27
    %s55 = ssub.s32 %s16, %s23
    %s56 = sor.u32 %s54, %s55
    %p57 = scmp.eq.s32.totalorder %s56, 0
    %s59 = sadd.s32 %s58, 1
    %s60 = scalar_select %p57, %s58, %s59
    %p63 = pneg %p57
    %p64 = scmp.eq.s32.totalorder %s8, 1
    %p65 = por %p63, %p64
    %p66 = scmp.ne.s32.totalorder %s58, %s61
    %p67 = scmp.eq.s32.totalorder %s8, 0
    %p68 = por %p66, %p67
    %p69 = scmp.ne.s32.totalorder %s58, %s61
    %p70 = scmp.eq.s32.totalorder %s13, 1
    %p71 = por %p69, %p70
    %p72 = scmp.ne.s32.totalorder %s61, %s62
    %p73 = scmp.eq.s32.totalorder %s13, 0
    %p74 = por %p72, %p73
    %p75 = scmp.ne.s32.totalorder %s61, %s62
    %p76 = scmp.eq.s32.totalorder %s14, 1
    %p77 = por %p75, %p76
    %p79 = scmp.ne.s32.totalorder %s62, %s78
    %p80 = scmp.eq.s32.totalorder %s14, 0
    %p81 = por %p79, %p80
    %s82 = ssub.s32 %s15, %s27
    %s83 = ssub.s32 %s16, %s23
    %s84 = sor.u32 %s82, %s83
    %p85 = scmp.eq.s32.totalorder %s84, 0
    %s87 = sadd.s32 %s86, 1
    %s88 = scalar_select %p85, %s86, %s87
    %p91 = pneg %p85
    %p92 = scmp.eq.s32.totalorder %s8, 1
    %p93 = por %p91, %p92
    %p94 = scmp.ne.s32.totalorder %s86, %s89
    %p95 = scmp.eq.s32.totalorder %s8, 0
    %p96 = por %p94, %p95
    %p97 = scmp.ne.s32.totalorder %s86, %s89
    %p98 = scmp.eq.s32.totalorder %s13, 1
    %p99 = por %p97, %p98
    %p100 = scmp.ne.s32.totalorder %s89, %s90
    %p101 = scmp.eq.s32.totalorder %s13, 0
    %p102 = por %p100, %p101
    %p103 = scmp.ne.s32.totalorder %s89, %s90
    %p104 = scmp.eq.s32.totalorder %s14, 1
    %p105 = por %p103, %p104
    %p107 = scmp.ne.s32.totalorder %s90, %s106
    %p108 = scmp.eq.s32.totalorder %s14, 0
    %p109 = por %p107, %p108
    %p110 = scmp.le.s32.totalorder 1, %s8
    %p111 = scmp.lt.s32.totalorder %s8, 3
    %p112 = pnand %p110, %p111
    %p113 = pneg %p112
    // Predicated region
    $region9: #{style_decorator_forward.13} parent=5 // pred_check
      _
    $region10: #{style_decorator_forward.13} parent=5 // pred_check_branch
      %115 = sbr.rel (%p112) target = $region12
    $region11: #{style_decorator_forward.13} parent=5 // pred_region
      %s116 = ssub.s32 %s8, 1
    $region12: #{style_decorator_forward.13} parent=5 // pred_fallthru
      _
    %p117 = scmp.lt.s32.totalorder %s8, 2
    // Predicated region
    $region13: #{style_decorator_forward.13} parent=5 // pred_check
      %p118 = pneg %p117
    $region14: #{style_decorator_forward.13} parent=5 // pred_check_branch
      %120 = sbr.rel (%p118) target = $region16
    $region15: #{style_decorator_forward.13} parent=5 // pred_region
      // Predicated region
      $region17: #{style_decorator_forward.13} parent=15 // pred_check
        %p121 = pneg %p40
      $region18: #{style_decorator_forward.13} parent=15 // pred_check_branch
        %123 = sbr.rel (%p121) target = $region20
      $region19: #{style_decorator_forward.13} parent=15 // pred_region
        %p124 = scmp.lt.s32.totalorder %s15, 1
        %s125 = scalar_select %p124, %s15, 1
        %s126 = smul.addr %s125, 4
        %s127 = scalar_lea.vmem %s0, %s126
      $region20: #{style_decorator_forward.13} parent=15 // pred_fallthru
        _
      // Predicated region
      $region21: #{style_decorator_forward.13} parent=15 // pred_check
        %p128 = pneg %p68
      $region22: #{style_decorator_forward.13} parent=15 // pred_check_branch
        %130 = sbr.rel (%p128) target = $region24
      $region23: #{style_decorator_forward.13} parent=15 // pred_region
        %p131 = scmp.lt.s32.totalorder %s15, 1
        %s132 = scalar_select %p131, %s15, 1
        %p133 = scmp.lt.s32.totalorder %s16, 0
        %s134 = scalar_select %p133, %s16, 0
        %s135 = sadd.s32 %s134, %s132
        %s136 = smul.addr %s135, 4
        %s137 = scalar_lea.vmem %s1, %s136
      $region24: #{style_decorator_forward.13} parent=15 // pred_fallthru
        _
    $region16: #{style_decorator_forward.13} parent=5 // pred_fallthru
      _
    %p138 = scmp.le.s32.totalorder 1, %s8
    %p139 = scmp.lt.s32.totalorder %s8, 3
    %p140 = pnand %p138, %p139
    %p141 = pneg %p140
    // Predicated region
    $region25: #{style_decorator_forward.13} parent=5 // pred_check
      _
    $region26: #{style_decorator_forward.13} parent=5 // pred_check_branch
      %143 = sbr.rel (%p140) target = $region28
    $region27: #{style_decorator_forward.13} parent=5 // pred_region
      %s144 = ssub.s32 %s8, 1
      %p145 = scmp.lt.s32.totalorder %s17, 1
      %s146 = scalar_select %p145, %s17, 1
      %s147 = smul.addr %s146, 4
      %s148 = scalar_lea.vmem %s0, %s147
      %p149 = pneg %p46
      %p150 = pneg %p43
      %p151 = scmp.lt.s32.totalorder %s17, 1
      %s152 = scalar_select %p151, %s17, 1
      %p153 = scmp.lt.s32.totalorder %s18, 0
      %s154 = scalar_select %p153, %s18, 0
      %s155 = sadd.s32 %s154, %s152
      %s156 = smul.addr %s155, 4
      %s157 = scalar_lea.vmem %s1, %s156
      %p158 = pneg %p74
      %p159 = pneg %p71
      %p160 = pneg %p102
      %p161 = pneg %p99
      %p162 = scmp.lt.s32.totalorder %s17, 1
      %s163 = scalar_select %p162, %s17, 1
      %p164 = scmp.lt.s32.totalorder %s18, 0
      %s165 = scalar_select %p164, %s18, 0
      %s166 = sadd.s32 %s165, %s163
      %s167 = smul.addr %s166, 4
      %s168 = scalar_lea.vmem %s2, %s167
      %p169 = scmp.lt.s32.totalorder %s17, 1
      %s170 = scalar_select %p169, %s17, 1
      %s171 = smul.addr %s170, 4
      %s172 = scalar_lea.vmem %s0, %s171
      %p173 = scmp.lt.s32.totalorder %s17, 1
      %s174 = scalar_select %p173, %s17, 1
      %p175 = scmp.lt.s32.totalorder %s18, 0
      %s176 = scalar_select %p175, %s18, 0
      %s177 = sadd.s32 %s176, %s174
      %s178 = smul.addr %s177, 4
      %s179 = scalar_lea.vmem %s1, %s178
      %p180 = scmp.lt.s32.totalorder %s17, 1
      %s181 = scalar_select %p180, %s17, 1
      %p182 = scmp.lt.s32.totalorder %s18, 0
      %s183 = scalar_select %p182, %s18, 0
      %s184 = sadd.s32 %s183, %s181
      %s185 = smul.addr %s184, 4
      %s186 = scalar_lea.vmem %s2, %s185
      %v187 = vld [vmem:[%s172] sm:$0xf]
      %v188 = vld [vmem:[%s179] sm:$0xf]
      %vm189 = vcmask 31744
      %v191 = vsel %vm189, %v187, 0
      %vm193 = vcmask 1043456
      %v195 = vsel %vm193, %v188, 0
      %197 = vmatprep.subr.mxu0 0.0
      %198 = vmatpush1.msra.mxu0 %v195
      %199 = vmatprep.subr.mxu0 0.0
      %200 = vmatpush1.msra.mxu0 0.0
      %201 = vmatprep.subr.mxu0 0.0
      %202 = vmatpush1.msra.mxu0 0.0
      %203 = vmatprep.subr.mxu0 0.0
      %204 = vmatpush1.msra.mxu0 0.0
      %205 = vmatprep.subr.mxu0 0.0
      %206 = vmatpush1.msra.mxu0 0.0
      %207 = vmatprep.subr.mxu0 0.0
      %208 = vmatpush1.msra.mxu0 0.0
      %209 = vmatprep.subr.mxu0 0.0
      %210 = vmatpush1.msra.mxu0 0.0
      %211 = vmatprep.subr.mxu0 0.0
      %212 = vmatpush1.msra.mxu0 0.0
      %213 = vmatprep.subr.mxu0 0.0
      %214 = vmatpush1.msra.mxu0 0.0
      %215 = vmatprep.subr.mxu0 0.0
      %216 = vmatpush1.msra.mxu0 0.0
      %217 = vmatprep.subr.mxu0 0.0
      %218 = vmatpush1.msra.mxu0 0.0
      %219 = vmatprep.subr.mxu0 0.0
      %220 = vmatpush1.msra.mxu0 0.0
      %221 = vmatprep.subr.mxu0 0.0
      %222 = vmatpush1.msra.mxu0 0.0
      %223 = vmatprep.subr.mxu0 0.0
      %224 = vmatpush1.msra.mxu0 0.0
      %225 = vmatprep.subr.mxu0 0.0
      %226 = vmatpush1.msra.mxu0 0.0
      %227 = vmatprep.subr.mxu0 0.0
      %228 = vmatpush1.msra.mxu0 0.0
      %229 = vmatprep.subr.mxu0 0.0
      %230 = vmatpush1.msra.mxu0 0.0
      %231 = vmatprep.subr.mxu0 0.0
      %232 = vmatpush1.msra.mxu0 0.0
      %233 = vmatprep.subr.mxu0 0.0
      %234 = vmatpush1.msra.mxu0 0.0
      %235 = vmatprep.subr.mxu0 0.0
      %236 = vmatpush1.msra.mxu0 0.0
      %237 = vmatprep.subr.mxu0 0.0
      %238 = vmatpush1.msra.mxu0 0.0
      %239 = vmatprep.subr.mxu0 0.0
      %240 = vmatpush1.msra.mxu0 0.0
      %241 = vmatprep.subr.mxu0 0.0
      %242 = vmatpush1.msra.mxu0 0.0
      %243 = vmatprep.subr.mxu0 0.0
      %244 = vmatpush1.msra.mxu0 0.0
      %245 = vmatprep.subr.mxu0 0.0
      %246 = vmatpush1.msra.mxu0 0.0
      %247 = vmatprep.subr.mxu0 0.0
      %248 = vmatpush1.msra.mxu0 0.0
      %249 = vmatprep.subr.mxu0 0.0
      %250 = vmatpush1.msra.mxu0 0.0
      %251 = vmatprep.subr.mxu0 0.0
      %252 = vmatpush1.msra.mxu0 0.0
      %253 = vmatprep.subr.mxu0 0.0
      %254 = vmatpush1.msra.mxu0 0.0
      %255 = vmatprep.subr.mxu0 0.0
      %256 = vmatpush1.msra.mxu0 0.0
      %257 = vmatprep.subr.mxu0 0.0
      %258 = vmatpush1.msra.mxu0 0.0
      %259 = vmatprep.subr.mxu0 0.0
      %260 = vmatpush1.msra.mxu0 0.0
      %261 = vmatprep.mubr.f32.mxu0 0.0
      %262 = vmatmul.mubr.f32.gmra.mrb[0].mxu0 %v191
      %v263 = vpop.f32.mrb[0].mxu0
      %v264 = vadd.f32 0.0, %v263
      %v265 = vpop.f32.mrb[0].mxu0
      %266 = vdwg.mxu0
      %vm267 = vcmask 27648
      %268 = vst.msk [vmem:[%s186] sm:$0xf] %vm267, %v264
      %p269 = scmp.lt.s32.totalorder %s17, 1
      %s270 = scalar_select %p269, %s17, 1
      %p271 = scmp.lt.s32.totalorder %s18, 0
      %s272 = scalar_select %p271, %s18, 0
      %s273 = sadd.s32 %s272, %s270
      %s274 = smul.addr %s273, 4
      %s275 = scalar_lea.vmem %s2, %s274
      // Predicated region
      $region29: #{style_decorator_forward.13} parent=27 // pred_check
        %p276 = pneg %p99
      $region30: #{style_decorator_forward.13} parent=27 // pred_check_branch
        %278 = sbr.rel (%p276) target = $region32
      $region31: #{style_decorator_forward.13} parent=27 // pred_region
        _
      $region32: #{style_decorator_forward.13} parent=27 // pred_fallthru
        _
    $region28: #{style_decorator_forward.13} parent=5 // pred_fallthru
      _
    %p279 = scmp.le.s32.totalorder 2, %s8
    // Predicated region
    $region33: #{style_decorator_forward.13} parent=5 // pred_check
      %p280 = pneg %p279
    $region34: #{style_decorator_forward.13} parent=5 // pred_check_branch
      %282 = sbr.rel (%p280) target = $region36
    $region35: #{style_decorator_forward.13} parent=5 // pred_region
      %s283 = ssub.s32 %s8, 2
      // Predicated region
      $region37: #{style_decorator_forward.13} parent=35 // pred_check
        %p284 = pneg %p105
      $region38: #{style_decorator_forward.13} parent=35 // pred_check_branch
        %286 = sbr.rel (%p284) target = $region40
      $region39: #{style_decorator_forward.13} parent=35 // pred_region
        %p287 = scmp.lt.s32.totalorder %s19, 1
        %s288 = scalar_select %p287, %s19, 1
        %p289 = scmp.lt.s32.totalorder %s20, 0
        %s290 = scalar_select %p289, %s20, 0
        %s291 = sadd.s32 %s290, %s288
        %s292 = smul.addr %s291, 4
        %s293 = scalar_lea.vmem %s2, %s292
      $region40: #{style_decorator_forward.13} parent=35 // pred_fallthru
        _
    $region36: #{style_decorator_forward.13} parent=5 // pred_fallthru
      _
  $region6: #{style_decorator_forward.13} parent=0 // loop_footer
    %s12 = sadd.s32 1, %s8
  $region7: #{style_decorator_forward.13} parent=0 // loop_footer_branch
    %7 = sbr.rel target = $region3
  $region8: #{style_decorator_forward.13} parent=0 // loop_exit
    _

// kernel: style_decorator_forward.14
$region0: #{style_decorator_forward.14}
  #allocation0 [shape = 'u32[]', space=smem, size = 0x4, offset = 0x4, fixed_abs, tag = 'smem constant byte address 0x4 - core index']
  #allocation1 [shape = 'u32[144,128]{1,0:T(1,128)}', space=vmem, size = 0x12000, scoped, tag = 'internal scratch']
  %s0 = inlined_call_operand.vmem [shape: f32[2,4,4], index: 0, kind: input, shape index: {}]
  %s1 = inlined_call_operand.vmem [shape: f32[2,4,256], index: 1, kind: input, shape index: {}]
  %s2 = inlined_call_operand.vmem [shape: f32[2,4,256], index: 2, kind: output, shape index: {}]
  %s3 = sld [smem:[#allocation0]]
  $region41: #{style_decorator_forward.14} parent=0
    _
  %s5 = ssub.s32 1, %s3
  %s6 = scalar_select 0, %s5, %s3
  loop: start=0, step=1, limit=4
  $region2: #{style_decorator_forward.14} parent=0 // loop_pre_header
    _
  $region3: #{style_decorator_forward.14} parent=0 // loop_header
    %s8 = sphi 0, %s12
    %p9 = scmp.ge.s32.totalorder %s8, 4
    %s15 = sphi 0, %s27
    %s16 = sphi 0, %s23
    %s17 = sphi 0, %s15
    %s18 = sphi 0, %s16
    %s19 = sphi 0, %s17
    %s20 = sphi 0, %s18
    %s30 = sphi 0, %s32
    %s33 = sphi 0, %s30
    %s34 = sphi 0, %s33
    %s50 = sphi 0, %s34
    %s58 = sphi 0, %s60
    %s61 = sphi 0, %s58
    %s62 = sphi 0, %s61
    %s78 = sphi 0, %s62
    %s86 = sphi 0, %s88
    %s89 = sphi 0, %s86
    %s90 = sphi 0, %s89
    %s106 = sphi 0, %s90
  $region4: #{style_decorator_forward.14} parent=0 // loop_header_branch
    %11 = sbr.rel (%p9) target = $region8
  $region5: #{style_decorator_forward.14} parent=0 // loop_body
    %s13 = ssub.s32 %s8, 1
    %s14 = ssub.s32 %s8, 2
    %s21 = sadd.s32 1, %s16
    %p22 = scmp.ge.s32.totalorder %s21, 1
    %s23 = scalar_select %p22, 0, %s21
    %s24 = sadd.s32 1, %s15
    %s25 = scalar_select %p22, %s24, %s15
    %p26 = scmp.ge.s32.totalorder %s25, 2
    %s27 = scalar_select %p26, 0, %s25
    %s28 = ssub.s32 %s15, %s27
    %p29 = scmp.eq.s32.totalorder %s28, 0
    %s31 = sadd.s32 %s30, 1
    %s32 = scalar_select %p29, %s30, %s31
    %p35 = pneg %p29
    %p36 = scmp.eq.s32.totalorder %s8, 1
    %p37 = por %p35, %p36
    %p38 = scmp.ne.s32.totalorder %s30, %s33
    %p39 = scmp.eq.s32.totalorder %s8, 0
    %p40 = por %p38, %p39
    %p41 = scmp.ne.s32.totalorder %s30, %s33
    %p42 = scmp.eq.s32.totalorder %s13, 1
    %p43 = por %p41, %p42
    %p44 = scmp.ne.s32.totalorder %s33, %s34
    %p45 = scmp.eq.s32.totalorder %s13, 0
    %p46 = por %p44, %p45
    %p47 = scmp.ne.s32.totalorder %s33, %s34
    %p48 = scmp.eq.s32.totalorder %s14, 1
    %p49 = por %p47, %p48
    %p51 = scmp.ne.s32.totalorder %s34, %s50
    %p52 = scmp.eq.s32.totalorder %s14, 0
    %p53 = por %p51, %p52
    %s54 = ssub.s32 %s15, %s27
    %s55 = ssub.s32 %s16, %s23
    %s56 = sor.u32 %s54, %s55
    %p57 = scmp.eq.s32.totalorder %s56, 0
    %s59 = sadd.s32 %s58, 1
    %s60 = scalar_select %p57, %s58, %s59
    %p63 = pneg %p57
    %p64 = scmp.eq.s32.totalorder %s8, 1
    %p65 = por %p63, %p64
    %p66 = scmp.ne.s32.totalorder %s58, %s61
    %p67 = scmp.eq.s32.totalorder %s8, 0
    %p68 = por %p66, %p67
    %p69 = scmp.ne.s32.totalorder %s58, %s61
    %p70 = scmp.eq.s32.totalorder %s13, 1
    %p71 = por %p69, %p70
    %p72 = scmp.ne.s32.totalorder %s61, %s62
    %p73 = scmp.eq.s32.totalorder %s13, 0
    %p74 = por %p72, %p73
    %p75 = scmp.ne.s32.totalorder %s61, %s62
    %p76 = scmp.eq.s32.totalorder %s14, 1
    %p77 = por %p75, %p76
    %p79 = scmp.ne.s32.totalorder %s62, %s78
    %p80 = scmp.eq.s32.totalorder %s14, 0
    %p81 = por %p79, %p80
    %s82 = ssub.s32 %s15, %s27
    %s83 = ssub.s32 %s16, %s23
    %s84 = sor.u32 %s82, %s83
    %p85 = scmp.eq.s32.totalorder %s84, 0
    %s87 = sadd.s32 %s86, 1
    %s88 = scalar_select %p85, %s86, %s87
    %p91 = pneg %p85
    %p92 = scmp.eq.s32.totalorder %s8, 1
    %p93 = por %p91, %p92
    %p94 = scmp.ne.s32.totalorder %s86, %s89
    %p95 = scmp.eq.s32.totalorder %s8, 0
    %p96 = por %p94, %p95
    %p97 = scmp.ne.s32.totalorder %s86, %s89
    %p98 = scmp.eq.s32.totalorder %s13, 1
    %p99 = por %p97, %p98
    %p100 = scmp.ne.s32.totalorder %s89, %s90
    %p101 = scmp.eq.s32.totalorder %s13, 0
    %p102 = por %p100, %p101
    %p103 = scmp.ne.s32.totalorder %s89, %s90
    %p104 = scmp.eq.s32.totalorder %s14, 1
    %p105 = por %p103, %p104
    %p107 = scmp.ne.s32.totalorder %s90, %s106
    %p108 = scmp.eq.s32.totalorder %s14, 0
    %p109 = por %p107, %p108
    %p110 = scmp.le.s32.totalorder 1, %s8
    %p111 = scmp.lt.s32.totalorder %s8, 3
    %p112 = pnand %p110, %p111
    %p113 = pneg %p112
    // Predicated region
    $region9: #{style_decorator_forward.14} parent=5 // pred_check
      _
    $region10: #{style_decorator_forward.14} parent=5 // pred_check_branch
      %115 = sbr.rel (%p112) target = $region12
    $region11: #{style_decorator_forward.14} parent=5 // pred_region
      %s116 = ssub.s32 %s8, 1
    $region12: #{style_decorator_forward.14} parent=5 // pred_fallthru
      _
    %p117 = scmp.lt.s32.totalorder %s8, 2
    // Predicated region
    $region13: #{style_decorator_forward.14} parent=5 // pred_check
      %p118 = pneg %p117
    $region14: #{style_decorator_forward.14} parent=5 // pred_check_branch
      %120 = sbr.rel (%p118) target = $region16
    $region15: #{style_decorator_forward.14} parent=5 // pred_region
      // Predicated region
      $region17: #{style_decorator_forward.14} parent=15 // pred_check
        %p121 = pneg %p40
      $region18: #{style_decorator_forward.14} parent=15 // pred_check_branch
        %123 = sbr.rel (%p121) target = $region20
      $region19: #{style_decorator_forward.14} parent=15 // pred_region
        %p124 = scmp.lt.s32.totalorder %s15, 1
        %s125 = scalar_select %p124, %s15, 1
        %s126 = smul.addr %s125, 4
        %s127 = scalar_lea.vmem %s0, %s126
      $region20: #{style_decorator_forward.14} parent=15 // pred_fallthru
        _
      // Predicated region
      $region21: #{style_decorator_forward.14} parent=15 // pred_check
        %p128 = pneg %p68
      $region22: #{style_decorator_forward.14} parent=15 // pred_check_branch
        %130 = sbr.rel (%p128) target = $region24
      $region23: #{style_decorator_forward.14} parent=15 // pred_region
        %s131 = smul.u32 2, %s16
        %p132 = scmp.lt.s32.totalorder %s15, 1
        %s133 = scalar_select %p132, %s15, 1
        %p134 = scmp.lt.s32.totalorder %s131, 1
        %s135 = scalar_select %p134, %s131, 1
        %s136 = smul.addr %s133, 2
        %s137 = sadd.s32 %s135, %s136
        %s138 = smul.addr %s137, 4
        %s139 = scalar_lea.vmem %s1, %s138
        %s140 = smul.u32 2, %s16
      $region24: #{style_decorator_forward.14} parent=15 // pred_fallthru
        _
    $region16: #{style_decorator_forward.14} parent=5 // pred_fallthru
      _
    %p141 = scmp.le.s32.totalorder 1, %s8
    %p142 = scmp.lt.s32.totalorder %s8, 3
    %p143 = pnand %p141, %p142
    %p144 = pneg %p143
    // Predicated region
    $region25: #{style_decorator_forward.14} parent=5 // pred_check
      _
    $region26: #{style_decorator_forward.14} parent=5 // pred_check_branch
      %146 = sbr.rel (%p143) target = $region28
    $region27: #{style_decorator_forward.14} parent=5 // pred_region
      %s147 = ssub.s32 %s8, 1
      %p148 = scmp.lt.s32.totalorder %s17, 1
      %s149 = scalar_select %p148, %s17, 1
      %s150 = smul.addr %s149, 4
      %s151 = scalar_lea.vmem %s0, %s150
      %p152 = pneg %p46
      %p153 = pneg %p43
      %s154 = smul.u32 2, %s18
      %p155 = scmp.lt.s32.totalorder %s17, 1
      %s156 = scalar_select %p155, %s17, 1
      %p157 = scmp.lt.s32.totalorder %s154, 1
      %s158 = scalar_select %p157, %s154, 1
      %s159 = smul.addr %s156, 2
      %s160 = sadd.s32 %s158, %s159
      %s161 = smul.addr %s160, 4
      %s162 = scalar_lea.vmem %s1, %s161
      %p163 = pneg %p74
      %p164 = pneg %p71
      %p165 = pneg %p102
      %p166 = pneg %p99
      %s167 = smul.u32 2, %s18
      %p168 = scmp.lt.s32.totalorder %s17, 1
      %s169 = scalar_select %p168, %s17, 1
      %p170 = scmp.lt.s32.totalorder %s167, 1
      %s171 = scalar_select %p170, %s167, 1
      %s172 = smul.addr %s169, 2
      %s173 = sadd.s32 %s171, %s172
      %s174 = smul.addr %s173, 4
      %s175 = scalar_lea.vmem %s2, %s174
      %p176 = scmp.lt.s32.totalorder %s17, 1
      %s177 = scalar_select %p176, %s17, 1
      %s178 = smul.addr %s177, 4
      %s179 = scalar_lea.vmem %s0, %s178
      %s180 = smul.u32 2, %s18
      %p181 = scmp.lt.s32.totalorder %s17, 1
      %s182 = scalar_select %p181, %s17, 1
      %p183 = scmp.lt.s32.totalorder %s180, 1
      %s184 = scalar_select %p183, %s180, 1
      %s185 = smul.addr %s182, 2
      %s186 = sadd.s32 %s184, %s185
      %s187 = smul.addr %s186, 4
      %s188 = scalar_lea.vmem %s1, %s187
      %s189 = smul.u32 2, %s18
      %s190 = smul.u32 2, %s18
      %p191 = scmp.lt.s32.totalorder %s17, 1
      %s192 = scalar_select %p191, %s17, 1
      %p193 = scmp.lt.s32.totalorder %s190, 1
      %s194 = scalar_select %p193, %s190, 1
      %s195 = smul.addr %s192, 2
      %s196 = sadd.s32 %s194, %s195
      %s197 = smul.addr %s196, 4
      %s198 = scalar_lea.vmem %s2, %s197
      %s199 = smul.u32 2, %s18
      %v200 = vld [vmem:[%s179] sm:$0xf]
      %v201 = vld [vmem:[%s188] sm:$0xff]
      %v203 = vcombine.high %v201, %v201
      %vm204 = vcmask 31744
      %v206 = vsel %vm204, %v200, 0
      %vm208 = vcmask 1043456
      %v209 = vsel %vm208, %v201, 0
      %v211 = vsel %vm208, %v203, 0
      %213 = vmatprep.subr.mxu0 %v211
      %214 = vmatpush1.msra.mxu0 %v209
      %215 = vmatprep.subr.mxu0 0.0
      %216 = vmatpush1.msra.mxu0 0.0
      %217 = vmatprep.subr.mxu0 0.0
      %218 = vmatpush1.msra.mxu0 0.0
      %219 = vmatprep.subr.mxu0 0.0
      %220 = vmatpush1.msra.mxu0 0.0
      %221 = vmatprep.subr.mxu0 0.0
      %222 = vmatpush1.msra.mxu0 0.0
      %223 = vmatprep.subr.mxu0 0.0
      %224 = vmatpush1.msra.mxu0 0.0
      %225 = vmatprep.subr.mxu0 0.0
      %226 = vmatpush1.msra.mxu0 0.0
      %227 = vmatprep.subr.mxu0 0.0
      %228 = vmatpush1.msra.mxu0 0.0
      %229 = vmatprep.subr.mxu0 0.0
      %230 = vmatpush1.msra.mxu0 0.0
      %231 = vmatprep.subr.mxu0 0.0
      %232 = vmatpush1.msra.mxu0 0.0
      %233 = vmatprep.subr.mxu0 0.0
      %234 = vmatpush1.msra.mxu0 0.0
      %235 = vmatprep.subr.mxu0 0.0
      %236 = vmatpush1.msra.mxu0 0.0
      %237 = vmatprep.subr.mxu0 0.0
      %238 = vmatpush1.msra.mxu0 0.0
      %239 = vmatprep.subr.mxu0 0.0
      %240 = vmatpush1.msra.mxu0 0.0
      %241 = vmatprep.subr.mxu0 0.0
      %242 = vmatpush1.msra.mxu0 0.0
      %243 = vmatprep.subr.mxu0 0.0
      %244 = vmatpush1.msra.mxu0 0.0
      %245 = vmatprep.subr.mxu0 0.0
      %246 = vmatpush1.msra.mxu0 0.0
      %247 = vmatprep.subr.mxu0 0.0
      %248 = vmatpush1.msra.mxu0 0.0
      %249 = vmatprep.subr.mxu0 0.0
      %250 = vmatpush1.msra.mxu0 0.0
      %251 = vmatprep.subr.mxu0 0.0
      %252 = vmatpush1.msra.mxu0 0.0
      %253 = vmatprep.subr.mxu0 0.0
      %254 = vmatpush1.msra.mxu0 0.0
      %255 = vmatprep.subr.mxu0 0.0
      %256 = vmatpush1.msra.mxu0 0.0
      %257 = vmatprep.subr.mxu0 0.0
      %258 = vmatpush1.msra.mxu0 0.0
      %259 = vmatprep.subr.mxu0 0.0
      %260 = vmatpush1.msra.mxu0 0.0
      %261 = vmatprep.subr.mxu0 0.0
      %262 = vmatpush1.msra.mxu0 0.0
      %263 = vmatprep.subr.mxu0 0.0
      %264 = vmatpush1.msra.mxu0 0.0
      %265 = vmatprep.subr.mxu0 0.0
      %266 = vmatpush1.msra.mxu0 0.0
      %267 = vmatprep.subr.mxu0 0.0
      %268 = vmatpush1.msra.mxu0 0.0
      %269 = vmatprep.subr.mxu0 0.0
      %270 = vmatpush1.msra.mxu0 0.0
      %271 = vmatprep.subr.mxu0 0.0
      %272 = vmatpush1.msra.mxu0 0.0
      %273 = vmatprep.subr.mxu0 0.0
      %274 = vmatpush1.msra.mxu0 0.0
      %275 = vmatprep.subr.mxu0 0.0
      %276 = vmatpush1.msra.mxu0 0.0
      %277 = vmatprep.mubr.f32.mxu0 0.0
      %278 = vmatmul.mubr.f32.gmra.mrb[0].mxu0 %v206
      %v279 = vpop.f32.mrb[0].mxu0
      %v280 = vadd.f32 0.0, %v279
      %v281 = vpop.f32.mrb[0].mxu0
      %v282 = vadd.f32 0.0, %v281
      %283 = vdwg.mxu0
      %v286 = vcombine.low %v280, %v282
      %288 = vst [vmem:[%s198] sm:$0xff] %v286
      %s289 = smul.u32 2, %s18
      %p290 = scmp.lt.s32.totalorder %s17, 1
      %s291 = scalar_select %p290, %s17, 1
      %p292 = scmp.lt.s32.totalorder %s289, 1
      %s293 = scalar_select %p292, %s289, 1
      %s294 = smul.addr %s291, 2
      %s295 = sadd.s32 %s293, %s294
      %s296 = smul.addr %s295, 4
      %s297 = scalar_lea.vmem %s2, %s296
      // Predicated region
      $region29: #{style_decorator_forward.14} parent=27 // pred_check
        %p298 = pneg %p99
      $region30: #{style_decorator_forward.14} parent=27 // pred_check_branch
        %300 = sbr.rel (%p298) target = $region32
      $region31: #{style_decorator_forward.14} parent=27 // pred_region
        %s301 = smul.u32 2, %s18
      $region32: #{style_decorator_forward.14} parent=27 // pred_fallthru
        _
    $region28: #{style_decorator_forward.14} parent=5 // pred_fallthru
      _
    %p302 = scmp.le.s32.totalorder 2, %s8
    // Predicated region
    $region33: #{style_decorator_forward.14} parent=5 // pred_check
      %p303 = pneg %p302
    $region34: #{style_decorator_forward.14} parent=5 // pred_check_branch
      %305 = sbr.rel (%p303) target = $region36
    $region35: #{style_decorator_forward.14} parent=5 // pred_region
      %s306 = ssub.s32 %s8, 2
      // Predicated region
      $region37: #{style_decorator_forward.14} parent=35 // pred_check
        %p307 = pneg %p105
      $region38: #{style_decorator_forward.14} parent=35 // pred_check_branch
        %309 = sbr.rel (%p307) target = $region40
      $region39: #{style_decorator_forward.14} parent=35 // pred_region
        %s310 = smul.u32 2, %s20
        %p311 = scmp.lt.s32.totalorder %s19, 1
        %s312 = scalar_select %p311, %s19, 1
        %p313 = scmp.lt.s32.totalorder %s310, 1
        %s314 = scalar_select %p313, %s310, 1
        %s315 = smul.addr %s312, 2
        %s316 = sadd.s32 %s314, %s315
        %s317 = smul.addr %s316, 4
        %s318 = scalar_lea.vmem %s2, %s317
      $region40: #{style_decorator_forward.14} parent=35 // pred_fallthru
        _
    $region36: #{style_decorator_forward.14} parent=5 // pred_fallthru
      _
  $region6: #{style_decorator_forward.14} parent=0 // loop_footer
    %s12 = sadd.s32 1, %s8
  $region7: #{style_decorator_forward.14} parent=0 // loop_footer_branch
    %7 = sbr.rel target = $region3
  $region8: #{style_decorator_forward.14} parent=0 // loop_exit
    _

// kernel: style_decorator_forward.15
$region0: #{style_decorator_forward.15}
  #allocation0 [shape = 'u32[]', space=smem, size = 0x4, offset = 0x4, fixed_abs, tag = 'smem constant byte address 0x4 - core index']
  #allocation1 [shape = 'u32[144,128]{1,0:T(1,128)}', space=vmem, size = 0x12000, scoped, tag = 'internal scratch']
  #allocation2 [shape = 'f32[256,1]{1,0:T(8,128)}', space=vmem, size = 0x20000, scoped, tag = 'scratch operand']
  %s0 = inlined_call_operand.vmem [shape: bf16[2,256,128], index: 0, kind: input, shape index: {}]
  %s1 = inlined_call_operand.vmem [shape: bf16[2,128,256], index: 1, kind: input, shape index: {}]
  %s2 = inlined_call_operand.vmem [shape: s32[2,256,1], index: 2, kind: output, shape index: {}]
  %s3 = sld [smem:[#allocation0]]
  $region45: #{style_decorator_forward.15} parent=0
    _
  %s5 = ssub.s32 1, %s3
  %s6 = scalar_select 0, %s5, %s3
  loop: start=0, step=1, limit=4
  $region2: #{style_decorator_forward.15} parent=0 // loop_pre_header
    _
  $region3: #{style_decorator_forward.15} parent=0 // loop_header
    %s8 = sphi 0, %s12
    %p9 = scmp.ge.s32.totalorder %s8, 4
    %s15 = sphi 0, %s34
    %s16 = sphi 0, %s30
    %s17 = sphi 0, %s26
    %s18 = sphi 0, %s15
    %s19 = sphi 0, %s16
    %s20 = sphi 0, %s17
    %s21 = sphi 0, %s18
    %s22 = sphi 0, %s19
    %s23 = sphi 0, %s20
    %s39 = sphi 0, %s41
    %s42 = sphi 0, %s39
    %s43 = sphi 0, %s42
    %s59 = sphi 0, %s43
    %s67 = sphi 0, %s69
    %s70 = sphi 0, %s67
    %s71 = sphi 0, %s70
    %s87 = sphi 0, %s71
    %s95 = sphi 0, %s97
    %s98 = sphi 0, %s95
    %s99 = sphi 0, %s98
    %s115 = sphi 0, %s99
  $region4: #{style_decorator_forward.15} parent=0 // loop_header_branch
    %11 = sbr.rel (%p9) target = $region8
  $region5: #{style_decorator_forward.15} parent=0 // loop_body
    %s13 = ssub.s32 %s8, 1
    %s14 = ssub.s32 %s8, 2
    %s24 = sadd.s32 1, %s17
    %p25 = scmp.ge.s32.totalorder %s24, 1
    %s26 = scalar_select %p25, 0, %s24
    %s27 = sadd.s32 1, %s16
    %s28 = scalar_select %p25, %s27, %s16
    %p29 = scmp.ge.s32.totalorder %s28, 1
    %s30 = scalar_select %p29, 0, %s28
    %s31 = sadd.s32 1, %s15
    %s32 = scalar_select %p29, %s31, %s15
    %p33 = scmp.ge.s32.totalorder %s32, 2
    %s34 = scalar_select %p33, 0, %s32
    %s35 = ssub.s32 %s15, %s34
    %s36 = ssub.s32 %s16, %s30
    %s37 = sor.u32 %s35, %s36
    %p38 = scmp.eq.s32.totalorder %s37, 0
    %s40 = sadd.s32 %s39, 1
    %s41 = scalar_select %p38, %s39, %s40
    %p44 = pneg %p38
    %p45 = scmp.eq.s32.totalorder %s8, 1
    %p46 = por %p44, %p45
    %p47 = scmp.ne.s32.totalorder %s39, %s42
    %p48 = scmp.eq.s32.totalorder %s8, 0
    %p49 = por %p47, %p48
    %p50 = scmp.ne.s32.totalorder %s39, %s42
    %p51 = scmp.eq.s32.totalorder %s13, 1
    %p52 = por %p50, %p51
    %p53 = scmp.ne.s32.totalorder %s42, %s43
    %p54 = scmp.eq.s32.totalorder %s13, 0
    %p55 = por %p53, %p54
    %p56 = scmp.ne.s32.totalorder %s42, %s43
    %p57 = scmp.eq.s32.totalorder %s14, 1
    %p58 = por %p56, %p57
    %p60 = scmp.ne.s32.totalorder %s43, %s59
    %p61 = scmp.eq.s32.totalorder %s14, 0
    %p62 = por %p60, %p61
    %s63 = ssub.s32 %s15, %s34
    %s64 = ssub.s32 %s17, %s26
    %s65 = sor.u32 %s63, %s64
    %p66 = scmp.eq.s32.totalorder %s65, 0
    %s68 = sadd.s32 %s67, 1
    %s69 = scalar_select %p66, %s67, %s68
    %p72 = pneg %p66
    %p73 = scmp.eq.s32.totalorder %s8, 1
    %p74 = por %p72, %p73
    %p75 = scmp.ne.s32.totalorder %s67, %s70
    %p76 = scmp.eq.s32.totalorder %s8, 0
    %p77 = por %p75, %p76
    %p78 = scmp.ne.s32.totalorder %s67, %s70
    %p79 = scmp.eq.s32.totalorder %s13, 1
    %p80 = por %p78, %p79
    %p81 = scmp.ne.s32.totalorder %s70, %s71
    %p82 = scmp.eq.s32.totalorder %s13, 0
    %p83 = por %p81, %p82
    %p84 = scmp.ne.s32.totalorder %s70, %s71
    %p85 = scmp.eq.s32.totalorder %s14, 1
    %p86 = por %p84, %p85
    %p88 = scmp.ne.s32.totalorder %s71, %s87
    %p89 = scmp.eq.s32.totalorder %s14, 0
    %p90 = por %p88, %p89
    %s91 = ssub.s32 %s15, %s34
    %s92 = ssub.s32 %s16, %s30
    %s93 = sor.u32 %s91, %s92
    %p94 = scmp.eq.s32.totalorder %s93, 0
    %s96 = sadd.s32 %s95, 1
    %s97 = scalar_select %p94, %s95, %s96
    %p100 = pneg %p94
    %p101 = scmp.eq.s32.totalorder %s8, 1
    %p102 = por %p100, %p101
    %p103 = scmp.ne.s32.totalorder %s95, %s98
    %p104 = scmp.eq.s32.totalorder %s8, 0
    %p105 = por %p103, %p104
    %p106 = scmp.ne.s32.totalorder %s95, %s98
    %p107 = scmp.eq.s32.totalorder %s13, 1
    %p108 = por %p106, %p107
    %p109 = scmp.ne.s32.totalorder %s98, %s99
    %p110 = scmp.eq.s32.totalorder %s13, 0
    %p111 = por %p109, %p110
    %p112 = scmp.ne.s32.totalorder %s98, %s99
    %p113 = scmp.eq.s32.totalorder %s14, 1
    %p114 = por %p112, %p113
    %p116 = scmp.ne.s32.totalorder %s99, %s115
    %p117 = scmp.eq.s32.totalorder %s14, 0
    %p118 = por %p116, %p117
    %p119 = scmp.le.s32.totalorder 1, %s8
    %p120 = scmp.lt.s32.totalorder %s8, 3
    %p121 = pnand %p119, %p120
    %p122 = pneg %p121
    // Predicated region
    $region9: #{style_decorator_forward.15} parent=5 // pred_check
      _
    $region10: #{style_decorator_forward.15} parent=5 // pred_check_branch
      %124 = sbr.rel (%p121) target = $region12
    $region11: #{style_decorator_forward.15} parent=5 // pred_region
      %s125 = ssub.s32 %s8, 1
    $region12: #{style_decorator_forward.15} parent=5 // pred_fallthru
      _
    %p126 = scmp.lt.s32.totalorder %s8, 2
    // Predicated region
    $region13: #{style_decorator_forward.15} parent=5 // pred_check
      %p127 = pneg %p126
    $region14: #{style_decorator_forward.15} parent=5 // pred_check_branch
      %129 = sbr.rel (%p127) target = $region16
    $region15: #{style_decorator_forward.15} parent=5 // pred_region
      // Predicated region
      $region17: #{style_decorator_forward.15} parent=15 // pred_check
        %p130 = pneg %p49
      $region18: #{style_decorator_forward.15} parent=15 // pred_check_branch
        %132 = sbr.rel (%p130) target = $region20
      $region19: #{style_decorator_forward.15} parent=15 // pred_region
        %s133 = smul.u32 32, %s16
        %p134 = scmp.lt.s32.totalorder %s15, 1
        %s135 = scalar_select %p134, %s15, 1
        %p136 = scmp.lt.s32.totalorder %s133, 31
        %s137 = scalar_select %p136, %s133, 31
        %s138 = smul.addr %s135, 32
        %s139 = sadd.s32 %s137, %s138
        %s140 = smul.addr %s139, 4
        %s141 = scalar_lea.vmem %s0, %s140
        %s142 = smul.u32 32, %s16
      $region20: #{style_decorator_forward.15} parent=15 // pred_fallthru
        _
      // Predicated region
      $region21: #{style_decorator_forward.15} parent=15 // pred_check
        %p143 = pneg %p77
      $region22: #{style_decorator_forward.15} parent=15 // pred_check_branch
        %145 = sbr.rel (%p143) target = $region24
      $region23: #{style_decorator_forward.15} parent=15 // pred_region
        %s146 = smul.u32 2, %s17
        %p147 = scmp.lt.s32.totalorder %s15, 1
        %s148 = scalar_select %p147, %s15, 1
        %p149 = scmp.lt.s32.totalorder %s146, 1
        %s150 = scalar_select %p149, %s146, 1
        %s151 = smul.addr %s148, 32
        %s152 = sadd.s32 %s150, %s151
        %s153 = smul.addr %s152, 4
        %s154 = scalar_lea.vmem %s1, %s153
        %s155 = smul.u32 2, %s17
      $region24: #{style_decorator_forward.15} parent=15 // pred_fallthru
        _
    $region16: #{style_decorator_forward.15} parent=5 // pred_fallthru
      _
    %p156 = scmp.le.s32.totalorder 1, %s8
    %p157 = scmp.lt.s32.totalorder %s8, 3
    %p158 = pnand %p156, %p157
    %p159 = pneg %p158
    // Predicated region
    $region25: #{style_decorator_forward.15} parent=5 // pred_check
      _
    $region26: #{style_decorator_forward.15} parent=5 // pred_check_branch
      %161 = sbr.rel (%p158) target = $region28
    $region27: #{style_decorator_forward.15} parent=5 // pred_region
      %s162 = ssub.s32 %s8, 1
      %s163 = smul.u32 32, %s19
      %p164 = scmp.lt.s32.totalorder %s18, 1
      %s165 = scalar_select %p164, %s18, 1
      %p166 = scmp.lt.s32.totalorder %s163, 31
      %s167 = scalar_select %p166, %s163, 31
      %s168 = smul.addr %s165, 32
      %s169 = sadd.s32 %s167, %s168
      %s170 = smul.addr %s169, 4
      %s171 = scalar_lea.vmem %s0, %s170
      %p172 = pneg %p55
      %p173 = pneg %p52
      %s174 = smul.u32 2, %s20
      %p175 = scmp.lt.s32.totalorder %s18, 1
      %s176 = scalar_select %p175, %s18, 1
      %p177 = scmp.lt.s32.totalorder %s174, 1
      %s178 = scalar_select %p177, %s174, 1
      %s179 = smul.addr %s176, 32
      %s180 = sadd.s32 %s178, %s179
      %s181 = smul.addr %s180, 4
      %s182 = scalar_lea.vmem %s1, %s181
      %p183 = pneg %p83
      %p184 = pneg %p80
      %p185 = pneg %p111
      %p186 = pneg %p108
      %s187 = smul.u32 32, %s19
      %p188 = scmp.lt.s32.totalorder %s18, 1
      %s189 = scalar_select %p188, %s18, 1
      %p190 = scmp.lt.s32.totalorder %s187, 31
      %s191 = scalar_select %p190, %s187, 31
      %s192 = smul.addr %s189, 32
      %s193 = sadd.s32 %s191, %s192
      %s194 = smul.addr %s193, 8
      %s195 = scalar_lea.vmem %s2, %s194
      %s196 = smul.u32 32, %s19
      %p197 = scmp.lt.s32.totalorder %s18, 1
      %s198 = scalar_select %p197, %s18, 1
      %p199 = scmp.lt.s32.totalorder %s196, 31
      %s200 = scalar_select %p199, %s196, 31
      %s201 = smul.addr %s198, 32
      %s202 = sadd.s32 %s200, %s201
      %s203 = smul.addr %s202, 4
      %s204 = scalar_lea.vmem %s0, %s203
      %s205 = smul.u32 32, %s19
      %s206 = smul.u32 2, %s20
      %p207 = scmp.lt.s32.totalorder %s18, 1
      %s208 = scalar_select %p207, %s18, 1
      %p209 = scmp.lt.s32.totalorder %s206, 1
      %s210 = scalar_select %p209, %s206, 1
      %s211 = smul.addr %s208, 32
      %s212 = sadd.s32 %s210, %s211
      %s213 = smul.addr %s212, 4
      %s214 = scalar_lea.vmem %s1, %s213
      %s215 = smul.u32 2, %s20
      %s216 = smul.u32 32, %s19
      %p217 = scmp.lt.s32.totalorder %s18, 1
      %s218 = scalar_select %p217, %s18, 1
      %p219 = scmp.lt.s32.totalorder %s216, 31
      %s220 = scalar_select %p219, %s216, 31
      %s221 = smul.addr %s218, 32
      %s222 = sadd.s32 %s220, %s221
      %s223 = smul.addr %s222, 8
      %s224 = scalar_lea.vmem %s2, %s223
      %s225 = smul.u32 32, %s19
      %p227 = scmp.eq.s32.totalorder %s20, 0
      // Predicated region
      $region29: #{style_decorator_forward.15} parent=27 // pred_check
        %p228 = pneg %p227
      $region30: #{style_decorator_forward.15} parent=27 // pred_check_branch
        %230 = sbr.rel (%p228) target = $region32
      $region31: #{style_decorator_forward.15} parent=27 // pred_region
        %vm231 = vcmask 7168
        %232 = vst.msk [vmem:[#allocation2] sm:$0xff] %vm231, -inf
        %233 = vst.msk [vmem:[#allocation2 + $0x8] sm:$0xff] %vm231, -inf
        %234 = vst.msk [vmem:[#allocation2 + $0x10] sm:$0xff] %vm231, -inf
        %235 = vst.msk [vmem:[#allocation2 + $0x18] sm:$0xff] %vm231, -inf
        %236 = vst.msk [vmem:[#allocation2 + $0x20] sm:$0xff] %vm231, -inf
        %237 = vst.msk [vmem:[#allocation2 + $0x28] sm:$0xff] %vm231, -inf
        %238 = vst.msk [vmem:[#allocation2 + $0x30] sm:$0xff] %vm231, -inf
        %239 = vst.msk [vmem:[#allocation2 + $0x38] sm:$0xff] %vm231, -inf
        %240 = vst.msk [vmem:[#allocation2 + $0x40] sm:$0xff] %vm231, -inf
        %241 = vst.msk [vmem:[#allocation2 + $0x48] sm:$0xff] %vm231, -inf
        %242 = vst.msk [vmem:[#allocation2 + $0x50] sm:$0xff] %vm231, -inf
        %243 = vst.msk [vmem:[#allocation2 + $0x58] sm:$0xff] %vm231, -inf
        %244 = vst.msk [vmem:[#allocation2 + $0x60] sm:$0xff] %vm231, -inf
        %245 = vst.msk [vmem:[#allocation2 + $0x68] sm:$0xff] %vm231, -inf
        %246 = vst.msk [vmem:[#allocation2 + $0x70] sm:$0xff] %vm231, -inf
        %247 = vst.msk [vmem:[#allocation2 + $0x78] sm:$0xff] %vm231, -inf
        %248 = vst.msk [vmem:[#allocation2 + $0x80] sm:$0xff] %vm231, -inf
        %249 = vst.msk [vmem:[#allocation2 + $0x88] sm:$0xff] %vm231, -inf
        %250 = vst.msk [vmem:[#allocation2 + $0x90] sm:$0xff] %vm231, -inf
        %251 = vst.msk [vmem:[#allocation2 + $0x98] sm:$0xff] %vm231, -inf
        %252 = vst.msk [vmem:[#allocation2 + $0xa0] sm:$0xff] %vm231, -inf
        %253 = vst.msk [vmem:[#allocation2 + $0xa8] sm:$0xff] %vm231, -inf
        %254 = vst.msk [vmem:[#allocation2 + $0xb0] sm:$0xff] %vm231, -inf
        %255 = vst.msk [vmem:[#allocation2 + $0xb8] sm:$0xff] %vm231, -inf
        %256 = vst.msk [vmem:[#allocation2 + $0xc0] sm:$0xff] %vm231, -inf
        %257 = vst.msk [vmem:[#allocation2 + $0xc8] sm:$0xff] %vm231, -inf
        %258 = vst.msk [vmem:[#allocation2 + $0xd0] sm:$0xff] %vm231, -inf
        %259 = vst.msk [vmem:[#allocation2 + $0xd8] sm:$0xff] %vm231, -inf
        %260 = vst.msk [vmem:[#allocation2 + $0xe0] sm:$0xff] %vm231, -inf
        %261 = vst.msk [vmem:[#allocation2 + $0xe8] sm:$0xff] %vm231, -inf
        %262 = vst.msk [vmem:[#allocation2 + $0xf0] sm:$0xff] %vm231, -inf
        %263 = vst.msk [vmem:[#allocation2 + $0xf8] sm:$0xff] %vm231, -inf
        %264 = vst.msk [vmem:[%s224] sm:$0xff] %vm231, 0
        %265 = vst.msk [vmem:[%s224 + $0x8] sm:$0xff] %vm231, 0
        %266 = vst.msk [vmem:[%s224 + $0x10] sm:$0xff] %vm231, 0
        %267 = vst.msk [vmem:[%s224 + $0x18] sm:$0xff] %vm231, 0
        %268 = vst.msk [vmem:[%s224 + $0x20] sm:$0xff] %vm231, 0
        %269 = vst.msk [vmem:[%s224 + $0x28] sm:$0xff] %vm231, 0
        %270 = vst.msk [vmem:[%s224 + $0x30] sm:$0xff] %vm231, 0
        %271 = vst.msk [vmem:[%s224 + $0x38] sm:$0xff] %vm231, 0
        %272 = vst.msk [vmem:[%s224 + $0x40] sm:$0xff] %vm231, 0
        %273 = vst.msk [vmem:[%s224 + $0x48] sm:$0xff] %vm231, 0
        %274 = vst.msk [vmem:[%s224 + $0x50] sm:$0xff] %vm231, 0
        %275 = vst.msk [vmem:[%s224 + $0x58] sm:$0xff] %vm231, 0
        %276 = vst.msk [vmem:[%s224 + $0x60] sm:$0xff] %vm231, 0
        %277 = vst.msk [vmem:[%s224 + $0x68] sm:$0xff] %vm231, 0
        %278 = vst.msk [vmem:[%s224 + $0x70] sm:$0xff] %vm231, 0
        %279 = vst.msk [vmem:[%s224 + $0x78] sm:$0xff] %vm231, 0
        %280 = vst.msk [vmem:[%s224 + $0x80] sm:$0xff] %vm231, 0
        %281 = vst.msk [vmem:[%s224 + $0x88] sm:$0xff] %vm231, 0
        %282 = vst.msk [vmem:[%s224 + $0x90] sm:$0xff] %vm231, 0
        %283 = vst.msk [vmem:[%s224 + $0x98] sm:$0xff] %vm231, 0
        %284 = vst.msk [vmem:[%s224 + $0xa0] sm:$0xff] %vm231, 0
        %285 = vst.msk [vmem:[%s224 + $0xa8] sm:$0xff] %vm231, 0
        %286 = vst.msk [vmem:[%s224 + $0xb0] sm:$0xff] %vm231, 0
        %287 = vst.msk [vmem:[%s224 + $0xb8] sm:$0xff] %vm231, 0
        %288 = vst.msk [vmem:[%s224 + $0xc0] sm:$0xff] %vm231, 0
        %289 = vst.msk [vmem:[%s224 + $0xc8] sm:$0xff] %vm231, 0
        %290 = vst.msk [vmem:[%s224 + $0xd0] sm:$0xff] %vm231, 0
        %291 = vst.msk [vmem:[%s224 + $0xd8] sm:$0xff] %vm231, 0
        %292 = vst.msk [vmem:[%s224 + $0xe0] sm:$0xff] %vm231, 0
        %293 = vst.msk [vmem:[%s224 + $0xe8] sm:$0xff] %vm231, 0
        %294 = vst.msk [vmem:[%s224 + $0xf0] sm:$0xff] %vm231, 0
        %295 = vst.msk [vmem:[%s224 + $0xf8] sm:$0xff] %vm231, 0
      $region32: #{style_decorator_forward.15} parent=27 // pred_fallthru
        _
      %v296 = vld [vmem:[%s204] sm:$0xf]
      %v297 = vld [vmem:[%s204 + $0x4] sm:$0xf]
      %v298 = vld [vmem:[%s204 + $0x8] sm:$0xf]
      %v299 = vld [vmem:[%s204 + $0xc] sm:$0xf]
      %v300 = vld [vmem:[%s204 + $0x10] sm:$0xf]
      %v301 = vld [vmem:[%s204 + $0x14] sm:$0xf]
      %v302 = vld [vmem:[%s204 + $0x18] sm:$0xf]
      %v303 = vld [vmem:[%s204 + $0x1c] sm:$0xf]
      %v304 = vld [vmem:[%s204 + $0x20] sm:$0xf]
      %v305 = vld [vmem:[%s204 + $0x24] sm:$0xf]
      %v306 = vld [vmem:[%s204 + $0x28] sm:$0xf]
      %v307 = vld [vmem:[%s204 + $0x2c] sm:$0xf]
      %v308 = vld [vmem:[%s204 + $0x30] sm:$0xf]
      %v309 = vld [vmem:[%s204 + $0x34] sm:$0xf]
      %v310 = vld [vmem:[%s204 + $0x38] sm:$0xf]
      %v311 = vld [vmem:[%s204 + $0x3c] sm:$0xf]
      %v312 = vld [vmem:[%s204 + $0x40] sm:$0xf]
      %v313 = vld [vmem:[%s204 + $0x44] sm:$0xf]
      %v314 = vld [vmem:[%s204 + $0x48] sm:$0xf]
      %v315 = vld [vmem:[%s204 + $0x4c] sm:$0xf]
      %v316 = vld [vmem:[%s204 + $0x50] sm:$0xf]
      %v317 = vld [vmem:[%s204 + $0x54] sm:$0xf]
      %v318 = vld [vmem:[%s204 + $0x58] sm:$0xf]
      %v319 = vld [vmem:[%s204 + $0x5c] sm:$0xf]
      %v320 = vld [vmem:[%s204 + $0x60] sm:$0xf]
      %v321 = vld [vmem:[%s204 + $0x64] sm:$0xf]
      %v322 = vld [vmem:[%s204 + $0x68] sm:$0xf]
      %v323 = vld [vmem:[%s204 + $0x6c] sm:$0xf]
      %v324 = vld [vmem:[%s204 + $0x70] sm:$0xf]
      %v325 = vld [vmem:[%s204 + $0x74] sm:$0xf]
      %v326 = vld [vmem:[%s204 + $0x78] sm:$0xf]
      %v327 = vld [vmem:[%s204 + $0x7c] sm:$0xf]
      %v328 = vld [vmem:[%s214] sm:$0xff]
      %v329 = vld [vmem:[%s214 + $0x8] sm:$0xff]
      %v330 = vld [vmem:[%s214 + $0x10] sm:$0xff]
      %v331 = vld [vmem:[%s214 + $0x18] sm:$0xff]
      %v332 = vld [vmem:[%s214 + $0x20] sm:$0xff]
      %v333 = vld [vmem:[%s214 + $0x28] sm:$0xff]
      %v334 = vld [vmem:[%s214 + $0x30] sm:$0xff]
      %v335 = vld [vmem:[%s214 + $0x38] sm:$0xff]
      %v336 = vld [vmem:[%s214 + $0x40] sm:$0xff]
      %v337 = vld [vmem:[%s214 + $0x48] sm:$0xff]
      %v338 = vld [vmem:[%s214 + $0x50] sm:$0xff]
      %v339 = vld [vmem:[%s214 + $0x58] sm:$0xff]
      %v340 = vld [vmem:[%s214 + $0x60] sm:$0xff]
      %v341 = vld [vmem:[%s214 + $0x68] sm:$0xff]
      %v342 = vld [vmem:[%s214 + $0x70] sm:$0xff]
      %v343 = vld [vmem:[%s214 + $0x78] sm:$0xff]
      %v376 = vunpack.c.l.b16 %v296
      %v377 = vunpack.c.l.b16 %v297
      %v378 = vunpack.c.l.b16 %v298
      %v379 = vunpack.c.l.b16 %v299
      %v380 = vunpack.c.l.b16 %v300
      %v381 = vunpack.c.l.b16 %v301
      %v382 = vunpack.c.l.b16 %v302
      %v383 = vunpack.c.l.b16 %v303
      %v384 = vunpack.c.l.b16 %v304
      %v385 = vunpack.c.l.b16 %v305
      %v386 = vunpack.c.l.b16 %v306
      %v387 = vunpack.c.l.b16 %v307
      %v388 = vunpack.c.l.b16 %v308
      %v389 = vunpack.c.l.b16 %v309
      %v390 = vunpack.c.l.b16 %v310
      %v391 = vunpack.c.l.b16 %v311
      %v392 = vunpack.c.l.b16 %v312
      %v393 = vunpack.c.l.b16 %v313
      %v394 = vunpack.c.l.b16 %v314
      %v395 = vunpack.c.l.b16 %v315
      %v396 = vunpack.c.l.b16 %v316
      %v397 = vunpack.c.l.b16 %v317
      %v398 = vunpack.c.l.b16 %v318
      %v399 = vunpack.c.l.b16 %v319
      %v400 = vunpack.c.l.b16 %v320
      %v401 = vunpack.c.l.b16 %v321
      %v402 = vunpack.c.l.b16 %v322
      %v403 = vunpack.c.l.b16 %v323
      %v404 = vunpack.c.l.b16 %v324
      %v405 = vunpack.c.l.b16 %v325
      %v406 = vunpack.c.l.b16 %v326
      %v407 = vunpack.c.l.b16 %v327
      %v408 = vpack.c.b16 %v377, %v376
      %v409 = vpack.c.b16 %v379, %v378
      %v410 = vpack.c.b16 %v381, %v380
      %v411 = vpack.c.b16 %v383, %v382
      %v412 = vpack.c.b16 %v385, %v384
      %v413 = vpack.c.b16 %v387, %v386
      %v414 = vpack.c.b16 %v389, %v388
      %v415 = vpack.c.b16 %v391, %v390
      %v416 = vpack.c.b16 %v393, %v392
      %v417 = vpack.c.b16 %v395, %v394
      %v418 = vpack.c.b16 %v397, %v396
      %v419 = vpack.c.b16 %v399, %v398
      %v420 = vpack.c.b16 %v401, %v400
      %v421 = vpack.c.b16 %v403, %v402
      %v422 = vpack.c.b16 %v405, %v404
      %v423 = vpack.c.b16 %v407, %v406
      %v456 = vunpack.c.l.b16 %v328
      %v457 = vunpack.c.h.b16 %v328
      %v458 = vunpack.c.l.b16 %v329
      %v459 = vunpack.c.h.b16 %v329
      %v460 = vunpack.c.l.b16 %v330
      %v461 = vunpack.c.h.b16 %v330
      %v462 = vunpack.c.l.b16 %v331
      %v463 = vunpack.c.h.b16 %v331
      %v464 = vunpack.c.l.b16 %v332
      %v465 = vunpack.c.h.b16 %v332
      %v466 = vunpack.c.l.b16 %v333
      %v467 = vunpack.c.h.b16 %v333
      %v468 = vunpack.c.l.b16 %v334
      %v469 = vunpack.c.h.b16 %v334
      %v470 = vunpack.c.l.b16 %v335
      %v471 = vunpack.c.h.b16 %v335
      %v472 = vunpack.c.l.b16 %v336
      %v473 = vunpack.c.h.b16 %v336
      %v474 = vunpack.c.l.b16 %v337
      %v475 = vunpack.c.h.b16 %v337
      %v476 = vunpack.c.l.b16 %v338
      %v477 = vunpack.c.h.b16 %v338
      %v478 = vunpack.c.l.b16 %v339
      %v479 = vunpack.c.h.b16 %v339
      %v480 = vunpack.c.l.b16 %v340
      %v481 = vunpack.c.h.b16 %v340
      %v482 = vunpack.c.l.b16 %v341
      %v483 = vunpack.c.h.b16 %v341
      %v484 = vunpack.c.l.b16 %v342
      %v485 = vunpack.c.h.b16 %v342
      %v486 = vunpack.c.l.b16 %v343
      %v487 = vunpack.c.h.b16 %v343
      %v488 = vpack.c.b16 %v458, %v456
      %v489 = vpack.c.b16 %v459, %v457
      %v490 = vpack.c.b16 %v462, %v460
      %v491 = vpack.c.b16 %v463, %v461
      %v492 = vpack.c.b16 %v466, %v464
      %v493 = vpack.c.b16 %v467, %v465
      %v494 = vpack.c.b16 %v470, %v468
      %v495 = vpack.c.b16 %v471, %v469
      %v496 = vpack.c.b16 %v474, %v472
      %v497 = vpack.c.b16 %v475, %v473
      %v498 = vpack.c.b16 %v478, %v476
      %v499 = vpack.c.b16 %v479, %v477
      %v500 = vpack.c.b16 %v482, %v480
      %v501 = vpack.c.b16 %v483, %v481
      %v502 = vpack.c.b16 %v486, %v484
      %v503 = vpack.c.b16 %v487, %v485
      %520 = vmatprep.subr.bf16.mxu0 %v489
      %521 = vmatpush1.bf16.msra.mxu0 %v488
      %522 = vmatprep.subr.bf16.mxu0 %v491
      %523 = vmatpush1.bf16.msra.mxu0 %v490
      %524 = vmatprep.subr.bf16.mxu0 %v493
      %525 = vmatpush1.bf16.msra.mxu0 %v492
      %526 = vmatprep.subr.bf16.mxu0 %v495
      %527 = vmatpush1.bf16.msra.mxu0 %v494
      %528 = vmatprep.subr.bf16.mxu0 %v497
      %529 = vmatpush1.bf16.msra.mxu0 %v496
      %530 = vmatprep.subr.bf16.mxu0 %v499
      %531 = vmatpush1.bf16.msra.mxu0 %v498
      %532 = vmatprep.subr.bf16.mxu0 %v501
      %533 = vmatpush1.bf16.msra.mxu0 %v500
      %534 = vmatprep.subr.bf16.mxu0 %v503
      %535 = vmatpush1.bf16.msra.mxu0 %v502
      %536 = vmatprep.subr.bf16.mxu0 0
      %537 = vmatpush1.bf16.msra.mxu0 0
      %538 = vmatprep.subr.bf16.mxu0 0
      %539 = vmatpush1.bf16.msra.mxu0 0
      %540 = vmatprep.subr.bf16.mxu0 0
      %541 = vmatpush1.bf16.msra.mxu0 0
      %542 = vmatprep.subr.bf16.mxu0 0
      %543 = vmatpush1.bf16.msra.mxu0 0
      %544 = vmatprep.subr.bf16.mxu0 0
      %545 = vmatpush1.bf16.msra.mxu0 0
      %546 = vmatprep.subr.bf16.mxu0 0
      %547 = vmatpush1.bf16.msra.mxu0 0
      %548 = vmatprep.subr.bf16.mxu0 0
      %549 = vmatpush1.bf16.msra.mxu0 0
      %550 = vmatprep.subr.bf16.mxu0 0
      %551 = vmatpush1.bf16.msra.mxu0 0
      %552 = vmatprep.mubr.bf16.mxu0 0
      %553 = vmatmul.mubr.bf16.gmra.mrb[0].mxu0 %v408
      %v554 = vpop.f32.mrb[0].mxu0
      %v555 = vadd.f32 0.0, %v554
      %v556 = vpop.f32.mrb[0].mxu0
      %v557 = vadd.f32 0.0, %v556
      %v558 = vpop.f32.mrb[0].mxu0
      %v559 = vadd.f32 0.0, %v558
      %v560 = vpop.f32.mrb[0].mxu0
      %v561 = vadd.f32 0.0, %v560
      %562 = vmatprep.mubr.bf16.mxu0 0
      %563 = vmatmul.mubr.bf16.gmra.mrb[0].mxu0 %v409
      %v564 = vpop.f32.mrb[0].mxu0
      %v565 = vadd.f32 0.0, %v564
      %v566 = vpop.f32.mrb[0].mxu0
      %v567 = vadd.f32 0.0, %v566
      %v568 = vpop.f32.mrb[0].mxu0
      %v569 = vadd.f32 0.0, %v568
      %v570 = vpop.f32.mrb[0].mxu0
      %v571 = vadd.f32 0.0, %v570
      %572 = vmatprep.mubr.bf16.mxu0 0
      %573 = vmatmul.mubr.bf16.gmra.mrb[0].mxu0 %v410
      %v574 = vpop.f32.mrb[0].mxu0
      %v575 = vadd.f32 0.0, %v574
      %v576 = vpop.f32.mrb[0].mxu0
      %v577 = vadd.f32 0.0, %v576
      %v578 = vpop.f32.mrb[0].mxu0
      %v579 = vadd.f32 0.0, %v578
      %v580 = vpop.f32.mrb[0].mxu0
      %v581 = vadd.f32 0.0, %v580
      %582 = vmatprep.mubr.bf16.mxu0 0
      %583 = vmatmul.mubr.bf16.gmra.mrb[0].mxu0 %v411
      %v584 = vpop.f32.mrb[0].mxu0
      %v585 = vadd.f32 0.0, %v584
      %v586 = vpop.f32.mrb[0].mxu0
      %v587 = vadd.f32 0.0, %v586
      %v588 = vpop.f32.mrb[0].mxu0
      %v589 = vadd.f32 0.0, %v588
      %v590 = vpop.f32.mrb[0].mxu0
      %v591 = vadd.f32 0.0, %v590
      %592 = vmatprep.mubr.bf16.mxu0 0
      %593 = vmatmul.mubr.bf16.gmra.mrb[0].mxu0 %v412
      %v594 = vpop.f32.mrb[0].mxu0
      %v595 = vadd.f32 0.0, %v594
      %v596 = vpop.f32.mrb[0].mxu0
      %v597 = vadd.f32 0.0, %v596
      %v598 = vpop.f32.mrb[0].mxu0
      %v599 = vadd.f32 0.0, %v598
      %v600 = vpop.f32.mrb[0].mxu0
      %v601 = vadd.f32 0.0, %v600
      %602 = vmatprep.mubr.bf16.mxu0 0
      %603 = vmatmul.mubr.bf16.gmra.mrb[0].mxu0 %v413
      %v604 = vpop.f32.mrb[0].mxu0
      %v605 = vadd.f32 0.0, %v604
      %v606 = vpop.f32.mrb[0].mxu0
      %v607 = vadd.f32 0.0, %v606
      %v608 = vpop.f32.mrb[0].mxu0
      %v609 = vadd.f32 0.0, %v608
      %v610 = vpop.f32.mrb[0].mxu0
      %v611 = vadd.f32 0.0, %v610
      %612 = vmatprep.mubr.bf16.mxu0 0
      %613 = vmatmul.mubr.bf16.gmra.mrb[0].mxu0 %v414
      %v614 = vpop.f32.mrb[0].mxu0
      %v615 = vadd.f32 0.0, %v614
      %v616 = vpop.f32.mrb[0].mxu0
      %v617 = vadd.f32 0.0, %v616
      %v618 = vpop.f32.mrb[0].mxu0
      %v619 = vadd.f32 0.0, %v618
      %v620 = vpop.f32.mrb[0].mxu0
      %v621 = vadd.f32 0.0, %v620
      %622 = vmatprep.mubr.bf16.mxu0 0
      %623 = vmatmul.mubr.bf16.gmra.mrb[0].mxu0 %v415
      %v624 = vpop.f32.mrb[0].mxu0
      %v625 = vadd.f32 0.0, %v624
      %v626 = vpop.f32.mrb[0].mxu0
      %v627 = vadd.f32 0.0, %v626
      %v628 = vpop.f32.mrb[0].mxu0
      %v629 = vadd.f32 0.0, %v628
      %v630 = vpop.f32.mrb[0].mxu0
      %v631 = vadd.f32 0.0, %v630
      %632 = vmatprep.mubr.bf16.mxu0 0
      %633 = vmatmul.mubr.bf16.gmra.mrb[0].mxu0 %v416
      %v634 = vpop.f32.mrb[0].mxu0
      %v635 = vadd.f32 0.0, %v634
      %v636 = vpop.f32.mrb[0].mxu0
      %v637 = vadd.f32 0.0, %v636
      %v638 = vpop.f32.mrb[0].mxu0
      %v639 = vadd.f32 0.0, %v638
      %v640 = vpop.f32.mrb[0].mxu0
      %v641 = vadd.f32 0.0, %v640
      %642 = vmatprep.mubr.bf16.mxu0 0
      %643 = vmatmul.mubr.bf16.gmra.mrb[0].mxu0 %v417
      %v644 = vpop.f32.mrb[0].mxu0
      %v645 = vadd.f32 0.0, %v644
      %v646 = vpop.f32.mrb[0].mxu0
      %v647 = vadd.f32 0.0, %v646
      %v648 = vpop.f32.mrb[0].mxu0
      %v649 = vadd.f32 0.0, %v648
      %v650 = vpop.f32.mrb[0].mxu0
      %v651 = vadd.f32 0.0, %v650
      %652 = vmatprep.mubr.bf16.mxu0 0
      %653 = vmatmul.mubr.bf16.gmra.mrb[0].mxu0 %v418
      %v654 = vpop.f32.mrb[0].mxu0
      %v655 = vadd.f32 0.0, %v654
      %v656 = vpop.f32.mrb[0].mxu0
      %v657 = vadd.f32 0.0, %v656
      %v658 = vpop.f32.mrb[0].mxu0
      %v659 = vadd.f32 0.0, %v658
      %v660 = vpop.f32.mrb[0].mxu0
      %v661 = vadd.f32 0.0, %v660
      %662 = vmatprep.mubr.bf16.mxu0 0
      %663 = vmatmul.mubr.bf16.gmra.mrb[0].mxu0 %v419
      %v664 = vpop.f32.mrb[0].mxu0
      %v665 = vadd.f32 0.0, %v664
      %v666 = vpop.f32.mrb[0].mxu0
      %v667 = vadd.f32 0.0, %v666
      %v668 = vpop.f32.mrb[0].mxu0
      %v669 = vadd.f32 0.0, %v668
      %v670 = vpop.f32.mrb[0].mxu0
      %v671 = vadd.f32 0.0, %v670
      %672 = vmatprep.mubr.bf16.mxu0 0
      %673 = vmatmul.mubr.bf16.gmra.mrb[0].mxu0 %v420
      %v674 = vpop.f32.mrb[0].mxu0
      %v675 = vadd.f32 0.0, %v674
      %v676 = vpop.f32.mrb[0].mxu0
      %v677 = vadd.f32 0.0, %v676
      %v678 = vpop.f32.mrb[0].mxu0
      %v679 = vadd.f32 0.0, %v678
      %v680 = vpop.f32.mrb[0].mxu0
      %v681 = vadd.f32 0.0, %v680
      %682 = vmatprep.mubr.bf16.mxu0 0
      %683 = vmatmul.mubr.bf16.gmra.mrb[0].mxu0 %v421
      %v684 = vpop.f32.mrb[0].mxu0
      %v685 = vadd.f32 0.0, %v684
      %v686 = vpop.f32.mrb[0].mxu0
      %v687 = vadd.f32 0.0, %v686
      %v688 = vpop.f32.mrb[0].mxu0
      %v689 = vadd.f32 0.0, %v688
      %v690 = vpop.f32.mrb[0].mxu0
      %v691 = vadd.f32 0.0, %v690
      %692 = vmatprep.mubr.bf16.mxu0 0
      %693 = vmatmul.mubr.bf16.gmra.mrb[0].mxu0 %v422
      %v694 = vpop.f32.mrb[0].mxu0
      %v695 = vadd.f32 0.0, %v694
      %v696 = vpop.f32.mrb[0].mxu0
      %v697 = vadd.f32 0.0, %v696
      %v698 = vpop.f32.mrb[0].mxu0
      %v699 = vadd.f32 0.0, %v698
      %v700 = vpop.f32.mrb[0].mxu0
      %v701 = vadd.f32 0.0, %v700
      %702 = vmatprep.mubr.bf16.mxu0 0
      %703 = vmatmul.mubr.bf16.gmra.mrb[0].mxu0 %v423
      %v704 = vpop.f32.mrb[0].mxu0
      %v705 = vadd.f32 0.0, %v704
      %v706 = vpop.f32.mrb[0].mxu0
      %v707 = vadd.f32 0.0, %v706
      %v708 = vpop.f32.mrb[0].mxu0
      %v709 = vadd.f32 0.0, %v708
      %v710 = vpop.f32.mrb[0].mxu0
      %v711 = vadd.f32 0.0, %v710
      %712 = vdwg.mxu0
      %v713 = vlaneseq
      %v714 = vand.u32 %v713, 127
      %v715 = vadd.s32 %v714, 128
      %v716 = vmax.f32 %v555, %v557
      %717 = vmax.xlane.f32.xlu0 %v716
      %v718 = vpop.xlane.xlu0 %717
      %v719 = vmax.f32 %v559, %v561
      %720 = vmax.xlane.f32.xlu0 %v719
      %v721 = vpop.xlane.xlu0 %720
      %v722 = vmax.f32 %v565, %v567
      %723 = vmax.xlane.f32.xlu0 %v722
      %v724 = vpop.xlane.xlu0 %723
      %v725 = vmax.f32 %v569, %v571
      %726 = vmax.xlane.f32.xlu0 %v725
      %v727 = vpop.xlane.xlu0 %726
      %v728 = vmax.f32 %v575, %v577
      %729 = vmax.xlane.f32.xlu0 %v728
      %v730 = vpop.xlane.xlu0 %729
      %v731 = vmax.f32 %v579, %v581
      %732 = vmax.xlane.f32.xlu0 %v731
      %v733 = vpop.xlane.xlu0 %732
      %v734 = vmax.f32 %v585, %v587
      %735 = vmax.xlane.f32.xlu0 %v734
      %v736 = vpop.xlane.xlu0 %735
      %v737 = vmax.f32 %v589, %v591
      %738 = vmax.xlane.f32.xlu0 %v737
      %v739 = vpop.xlane.xlu0 %738
      %v740 = vmax.f32 %v595, %v597
      %741 = vmax.xlane.f32.xlu0 %v740
      %v742 = vpop.xlane.xlu0 %741
      %v743 = vmax.f32 %v599, %v601
      %744 = vmax.xlane.f32.xlu0 %v743
      %v745 = vpop.xlane.xlu0 %744
      %v746 = vmax.f32 %v605, %v607
      %747 = vmax.xlane.f32.xlu0 %v746
      %v748 = vpop.xlane.xlu0 %747
      %v749 = vmax.f32 %v609, %v611
      %750 = vmax.xlane.f32.xlu0 %v749
      %v751 = vpop.xlane.xlu0 %750
      %v752 = vmax.f32 %v615, %v617
      %753 = vmax.xlane.f32.xlu0 %v752
      %v754 = vpop.xlane.xlu0 %753
      %v755 = vmax.f32 %v619, %v621
      %756 = vmax.xlane.f32.xlu0 %v755
      %v757 = vpop.xlane.xlu0 %756
      %v758 = vmax.f32 %v625, %v627
      %759 = vmax.xlane.f32.xlu0 %v758
      %v760 = vpop.xlane.xlu0 %759
      %v761 = vmax.f32 %v629, %v631
      %762 = vmax.xlane.f32.xlu0 %v761
      %v763 = vpop.xlane.xlu0 %762
      %v764 = vmax.f32 %v635, %v637
      %765 = vmax.xlane.f32.xlu0 %v764
      %v766 = vpop.xlane.xlu0 %765
      %v767 = vmax.f32 %v639, %v641
      %768 = vmax.xlane.f32.xlu0 %v767
      %v769 = vpop.xlane.xlu0 %768
      %v770 = vmax.f32 %v645, %v647
      %771 = vmax.xlane.f32.xlu0 %v770
      %v772 = vpop.xlane.xlu0 %771
      %v773 = vmax.f32 %v649, %v651
      %774 = vmax.xlane.f32.xlu0 %v773
      %v775 = vpop.xlane.xlu0 %774
      %v776 = vmax.f32 %v655, %v657
      %777 = vmax.xlane.f32.xlu0 %v776
      %v778 = vpop.xlane.xlu0 %777
      %v779 = vmax.f32 %v659, %v661
      %780 = vmax.xlane.f32.xlu0 %v779
      %v781 = vpop.xlane.xlu0 %780
      %v782 = vmax.f32 %v665, %v667
      %783 = vmax.xlane.f32.xlu0 %v782
      %v784 = vpop.xlane.xlu0 %783
      %v785 = vmax.f32 %v669, %v671
      %786 = vmax.xlane.f32.xlu0 %v785
      %v787 = vpop.xlane.xlu0 %786
      %v788 = vmax.f32 %v675, %v677
      %789 = vmax.xlane.f32.xlu0 %v788
      %v790 = vpop.xlane.xlu0 %789
      %v791 = vmax.f32 %v679, %v681
      %792 = vmax.xlane.f32.xlu0 %v791
      %v793 = vpop.xlane.xlu0 %792
      %v794 = vmax.f32 %v685, %v687
      %795 = vmax.xlane.f32.xlu0 %v794
      %v796 = vpop.xlane.xlu0 %795
      %v797 = vmax.f32 %v689, %v691
      %798 = vmax.xlane.f32.xlu0 %v797
      %v799 = vpop.xlane.xlu0 %798
      %v800 = vmax.f32 %v695, %v697
      %801 = vmax.xlane.f32.xlu0 %v800
      %v802 = vpop.xlane.xlu0 %801
      %v803 = vmax.f32 %v699, %v701
      %804 = vmax.xlane.f32.xlu0 %v803
      %v805 = vpop.xlane.xlu0 %804
      %v806 = vmax.f32 %v705, %v707
      %807 = vmax.xlane.f32.xlu0 %v806
      %v808 = vpop.xlane.xlu0 %807
      %v809 = vmax.f32 %v709, %v711
      %810 = vmax.xlane.f32.xlu0 %v809
      %v811 = vpop.xlane.xlu0 %810
      %vm812 = vcmp.eq.f32.partialorder %v555, %v718
      %vm813 = vcmp.eq.f32.partialorder %v557, %v718
      %vm814 = vcmp.eq.f32.partialorder %v559, %v721
      %vm815 = vcmp.eq.f32.partialorder %v561, %v721
      %vm816 = vcmp.eq.f32.partialorder %v565, %v724
      %vm817 = vcmp.eq.f32.partialorder %v567, %v724
      %vm818 = vcmp.eq.f32.partialorder %v569, %v727
      %vm819 = vcmp.eq.f32.partialorder %v571, %v727
      %vm820 = vcmp.eq.f32.partialorder %v575, %v730
      %vm821 = vcmp.eq.f32.partialorder %v577, %v730
      %vm822 = vcmp.eq.f32.partialorder %v579, %v733
      %vm823 = vcmp.eq.f32.partialorder %v581, %v733
      %vm824 = vcmp.eq.f32.partialorder %v585, %v736
      %vm825 = vcmp.eq.f32.partialorder %v587, %v736
      %vm826 = vcmp.eq.f32.partialorder %v589, %v739
      %vm827 = vcmp.eq.f32.partialorder %v591, %v739
      %vm828 = vcmp.eq.f32.partialorder %v595, %v742
      %vm829 = vcmp.eq.f32.partialorder %v597, %v742
      %vm830 = vcmp.eq.f32.partialorder %v599, %v745
      %vm831 = vcmp.eq.f32.partialorder %v601, %v745
      %vm832 = vcmp.eq.f32.partialorder %v605, %v748
      %vm833 = vcmp.eq.f32.partialorder %v607, %v748
      %vm834 = vcmp.eq.f32.partialorder %v609, %v751
      %vm835 = vcmp.eq.f32.partialorder %v611, %v751
      %vm836 = vcmp.eq.f32.partialorder %v615, %v754
      %vm837 = vcmp.eq.f32.partialorder %v617, %v754
      %vm838 = vcmp.eq.f32.partialorder %v619, %v757
      %vm839 = vcmp.eq.f32.partialorder %v621, %v757
      %vm840 = vcmp.eq.f32.partialorder %v625, %v760
      %vm841 = vcmp.eq.f32.partialorder %v627, %v760
      %vm842 = vcmp.eq.f32.partialorder %v629, %v763
      %vm843 = vcmp.eq.f32.partialorder %v631, %v763
      %vm844 = vcmp.eq.f32.partialorder %v635, %v766
      %vm845 = vcmp.eq.f32.partialorder %v637, %v766
      %vm846 = vcmp.eq.f32.partialorder %v639, %v769
      %vm847 = vcmp.eq.f32.partialorder %v641, %v769
      %vm848 = vcmp.eq.f32.partialorder %v645, %v772
      %vm849 = vcmp.eq.f32.partialorder %v647, %v772
      %vm850 = vcmp.eq.f32.partialorder %v649, %v775
      %vm851 = vcmp.eq.f32.partialorder %v651, %v775
      %vm852 = vcmp.eq.f32.partialorder %v655, %v778
      %vm853 = vcmp.eq.f32.partialorder %v657, %v778
      %vm854 = vcmp.eq.f32.partialorder %v659, %v781
      %vm855 = vcmp.eq.f32.partialorder %v661, %v781
      %vm856 = vcmp.eq.f32.partialorder %v665, %v784
      %vm857 = vcmp.eq.f32.partialorder %v667, %v784
      %vm858 = vcmp.eq.f32.partialorder %v669, %v787
      %vm859 = vcmp.eq.f32.partialorder %v671, %v787
      %vm860 = vcmp.eq.f32.partialorder %v675, %v790
      %vm861 = vcmp.eq.f32.partialorder %v677, %v790
      %vm862 = vcmp.eq.f32.partialorder %v679, %v793
      %vm863 = vcmp.eq.f32.partialorder %v681, %v793
      %vm864 = vcmp.eq.f32.partialorder %v685, %v796
      %vm865 = vcmp.eq.f32.partialorder %v687, %v796
      %vm866 = vcmp.eq.f32.partialorder %v689, %v799
      %vm867 = vcmp.eq.f32.partialorder %v691, %v799
      %vm868 = vcmp.eq.f32.partialorder %v695, %v802
      %vm869 = vcmp.eq.f32.partialorder %v697, %v802
      %vm870 = vcmp.eq.f32.partialorder %v699, %v805
      %vm871 = vcmp.eq.f32.partialorder %v701, %v805
      %vm872 = vcmp.eq.f32.partialorder %v705, %v808
      %vm873 = vcmp.eq.f32.partialorder %v707, %v808
      %vm874 = vcmp.eq.f32.partialorder %v709, %v811
      %vm875 = vcmp.eq.f32.partialorder %v711, %v811
      %v876 = vsel %vm812, %v714, 1073741824
      %v877 = vsel %vm813, %v715, 1073741824
      %v878 = vsel %vm814, %v714, 1073741824
      %v879 = vsel %vm815, %v715, 1073741824
      %v880 = vsel %vm816, %v714, 1073741824
      %v881 = vsel %vm817, %v715, 1073741824
      %v882 = vsel %vm818, %v714, 1073741824
      %v883 = vsel %vm819, %v715, 1073741824
      %v884 = vsel %vm820, %v714, 1073741824
      %v885 = vsel %vm821, %v715, 1073741824
      %v886 = vsel %vm822, %v714, 1073741824
      %v887 = vsel %vm823, %v715, 1073741824
      %v888 = vsel %vm824, %v714, 1073741824
      %v889 = vsel %vm825, %v715, 1073741824
      %v890 = vsel %vm826, %v714, 1073741824
      %v891 = vsel %vm827, %v715, 1073741824
      %v892 = vsel %vm828, %v714, 1073741824
      %v893 = vsel %vm829, %v715, 1073741824
      %v894 = vsel %vm830, %v714, 1073741824
      %v895 = vsel %vm831, %v715, 1073741824
      %v896 = vsel %vm832, %v714, 1073741824
      %v897 = vsel %vm833, %v715, 1073741824
      %v898 = vsel %vm834, %v714, 1073741824
      %v899 = vsel %vm835, %v715, 1073741824
      %v900 = vsel %vm836, %v714, 1073741824
      %v901 = vsel %vm837, %v715, 1073741824
      %v902 = vsel %vm838, %v714, 1073741824
      %v903 = vsel %vm839, %v715, 1073741824
      %v904 = vsel %vm840, %v714, 1073741824
      %v905 = vsel %vm841, %v715, 1073741824
      %v906 = vsel %vm842, %v714, 1073741824
      %v907 = vsel %vm843, %v715, 1073741824
      %v908 = vsel %vm844, %v714, 1073741824
      %v909 = vsel %vm845, %v715, 1073741824
      %v910 = vsel %vm846, %v714, 1073741824
      %v911 = vsel %vm847, %v715, 1073741824
      %v912 = vsel %vm848, %v714, 1073741824
      %v913 = vsel %vm849, %v715, 1073741824
      %v914 = vsel %vm850, %v714, 1073741824
      %v915 = vsel %vm851, %v715, 1073741824
      %v916 = vsel %vm852, %v714, 1073741824
      %v917 = vsel %vm853, %v715, 1073741824
      %v918 = vsel %vm854, %v714, 1073741824
      %v919 = vsel %vm855, %v715, 1073741824
      %v920 = vsel %vm856, %v714, 1073741824
      %v921 = vsel %vm857, %v715, 1073741824
      %v922 = vsel %vm858, %v714, 1073741824
      %v923 = vsel %vm859, %v715, 1073741824
      %v924 = vsel %vm860, %v714, 1073741824
      %v925 = vsel %vm861, %v715, 1073741824
      %v926 = vsel %vm862, %v714, 1073741824
      %v927 = vsel %vm863, %v715, 1073741824
      %v928 = vsel %vm864, %v714, 1073741824
      %v929 = vsel %vm865, %v715, 1073741824
      %v930 = vsel %vm866, %v714, 1073741824
      %v931 = vsel %vm867, %v715, 1073741824
      %v932 = vsel %vm868, %v714, 1073741824
      %v933 = vsel %vm869, %v715, 1073741824
      %v934 = vsel %vm870, %v714, 1073741824
      %v935 = vsel %vm871, %v715, 1073741824
      %v936 = vsel %vm872, %v714, 1073741824
      %v937 = vsel %vm873, %v715, 1073741824
      %v938 = vsel %vm874, %v714, 1073741824
      %v939 = vsel %vm875, %v715, 1073741824
      %vm940 = vcmp.lt.s32.totalorder %v876, %v877
      %v941 = vsel %vm940, %v876, %v877
      %v942 = vand.u32 %v941, 65535
      %v943 = vshra.s32 %v941, 16
      %v944 = vcvt.s32.f32 %v942
      %v945 = vcvt.s32.f32 %v943
      %946 = vmin.xlane.f32.xlu0 %v945
      %v947 = vpop.xlane.xlu0 %946
      %vm948 = vcmp.eq.f32.partialorder %v945, %v947
      %v949 = vsel %vm948, %v944, inf
      %950 = vmin.xlane.f32.xlu0 %v949
      %v951 = vpop.xlane.xlu0 %950
      %v952 = vcvt.f32.s32 %v951
      %v953 = vcvt.f32.s32 %v947
      %v954 = vshll.u32 %v953, 16
      %v955 = vadd.s32 %v954, %v952
      %vm956 = vcmp.lt.s32.totalorder %v878, %v879
      %v957 = vsel %vm956, %v878, %v879
      %v958 = vand.u32 %v957, 65535
      %v959 = vshra.s32 %v957, 16
      %v960 = vcvt.s32.f32 %v958
      %v961 = vcvt.s32.f32 %v959
      %962 = vmin.xlane.f32.xlu0 %v961
      %v963 = vpop.xlane.xlu0 %962
      %vm964 = vcmp.eq.f32.partialorder %v961, %v963
      %v965 = vsel %vm964, %v960, inf
      %966 = vmin.xlane.f32.xlu0 %v965
      %v967 = vpop.xlane.xlu0 %966
      %v968 = vcvt.f32.s32 %v967
      %v969 = vcvt.f32.s32 %v963
      %v970 = vshll.u32 %v969, 16
      %v971 = vadd.s32 %v970, %v968
      %vm972 = vcmp.lt.s32.totalorder %v880, %v881
      %v973 = vsel %vm972, %v880, %v881
      %v974 = vand.u32 %v973, 65535
      %v975 = vshra.s32 %v973, 16
      %v976 = vcvt.s32.f32 %v974
      %v977 = vcvt.s32.f32 %v975
      %978 = vmin.xlane.f32.xlu0 %v977
      %v979 = vpop.xlane.xlu0 %978
      %vm980 = vcmp.eq.f32.partialorder %v977, %v979
      %v981 = vsel %vm980, %v976, inf
      %982 = vmin.xlane.f32.xlu0 %v981
      %v983 = vpop.xlane.xlu0 %982
      %v984 = vcvt.f32.s32 %v983
      %v985 = vcvt.f32.s32 %v979
      %v986 = vshll.u32 %v985, 16
      %v987 = vadd.s32 %v986, %v984
      %vm988 = vcmp.lt.s32.totalorder %v882, %v883
      %v989 = vsel %vm988, %v882, %v883
      %v990 = vand.u32 %v989, 65535
      %v991 = vshra.s32 %v989, 16
      %v992 = vcvt.s32.f32 %v990
      %v993 = vcvt.s32.f32 %v991
      %994 = vmin.xlane.f32.xlu0 %v993
      %v995 = vpop.xlane.xlu0 %994
      %vm996 = vcmp.eq.f32.partialorder %v993, %v995
      %v997 = vsel %vm996, %v992, inf
      %998 = vmin.xlane.f32.xlu0 %v997
      %v999 = vpop.xlane.xlu0 %998
      %v1000 = vcvt.f32.s32 %v999
      %v1001 = vcvt.f32.s32 %v995
      %v1002 = vshll.u32 %v1001, 16
      %v1003 = vadd.s32 %v1002, %v1000
      %vm1004 = vcmp.lt.s32.totalorder %v884, %v885
      %v1005 = vsel %vm1004, %v884, %v885
      %v1006 = vand.u32 %v1005, 65535
      %v1007 = vshra.s32 %v1005, 16
      %v1008 = vcvt.s32.f32 %v1006
      %v1009 = vcvt.s32.f32 %v1007
      %1010 = vmin.xlane.f32.xlu0 %v1009
      %v1011 = vpop.xlane.xlu0 %1010
      %vm1012 = vcmp.eq.f32.partialorder %v1009, %v1011
      %v1013 = vsel %vm1012, %v1008, inf
      %1014 = vmin.xlane.f32.xlu0 %v1013
      %v1015 = vpop.xlane.xlu0 %1014
      %v1016 = vcvt.f32.s32 %v1015
      %v1017 = vcvt.f32.s32 %v1011
      %v1018 = vshll.u32 %v1017, 16
      %v1019 = vadd.s32 %v1018, %v1016
      %vm1020 = vcmp.lt.s32.totalorder %v886, %v887
      %v1021 = vsel %vm1020, %v886, %v887
      %v1022 = vand.u32 %v1021, 65535
      %v1023 = vshra.s32 %v1021, 16
      %v1024 = vcvt.s32.f32 %v1022
      %v1025 = vcvt.s32.f32 %v1023
      %1026 = vmin.xlane.f32.xlu0 %v1025
      %v1027 = vpop.xlane.xlu0 %1026
      %vm1028 = vcmp.eq.f32.partialorder %v1025, %v1027
      %v1029 = vsel %vm1028, %v1024, inf
      %1030 = vmin.xlane.f32.xlu0 %v1029
      %v1031 = vpop.xlane.xlu0 %1030
      %v1032 = vcvt.f32.s32 %v1031
      %v1033 = vcvt.f32.s32 %v1027
      %v1034 = vshll.u32 %v1033, 16
      %v1035 = vadd.s32 %v1034, %v1032
      %vm1036 = vcmp.lt.s32.totalorder %v888, %v889
      %v1037 = vsel %vm1036, %v888, %v889
      %v1038 = vand.u32 %v1037, 65535
      %v1039 = vshra.s32 %v1037, 16
      %v1040 = vcvt.s32.f32 %v1038
      %v1041 = vcvt.s32.f32 %v1039
      %1042 = vmin.xlane.f32.xlu0 %v1041
      %v1043 = vpop.xlane.xlu0 %1042
      %vm1044 = vcmp.eq.f32.partialorder %v1041, %v1043
      %v1045 = vsel %vm1044, %v1040, inf
      %1046 = vmin.xlane.f32.xlu0 %v1045
      %v1047 = vpop.xlane.xlu0 %1046
      %v1048 = vcvt.f32.s32 %v1047
      %v1049 = vcvt.f32.s32 %v1043
      %v1050 = vshll.u32 %v1049, 16
      %v1051 = vadd.s32 %v1050, %v1048
      %vm1052 = vcmp.lt.s32.totalorder %v890, %v891
      %v1053 = vsel %vm1052, %v890, %v891
      %v1054 = vand.u32 %v1053, 65535
      %v1055 = vshra.s32 %v1053, 16
      %v1056 = vcvt.s32.f32 %v1054
      %v1057 = vcvt.s32.f32 %v1055
      %1058 = vmin.xlane.f32.xlu0 %v1057
      %v1059 = vpop.xlane.xlu0 %1058
      %vm1060 = vcmp.eq.f32.partialorder %v1057, %v1059
      %v1061 = vsel %vm1060, %v1056, inf
      %1062 = vmin.xlane.f32.xlu0 %v1061
      %v1063 = vpop.xlane.xlu0 %1062
      %v1064 = vcvt.f32.s32 %v1063
      %v1065 = vcvt.f32.s32 %v1059
      %v1066 = vshll.u32 %v1065, 16
      %v1067 = vadd.s32 %v1066, %v1064
      %vm1068 = vcmp.lt.s32.totalorder %v892, %v893
      %v1069 = vsel %vm1068, %v892, %v893
      %v1070 = vand.u32 %v1069, 65535
      %v1071 = vshra.s32 %v1069, 16
      %v1072 = vcvt.s32.f32 %v1070
      %v1073 = vcvt.s32.f32 %v1071
      %1074 = vmin.xlane.f32.xlu0 %v1073
      %v1075 = vpop.xlane.xlu0 %1074
      %vm1076 = vcmp.eq.f32.partialorder %v1073, %v1075
      %v1077 = vsel %vm1076, %v1072, inf
      %1078 = vmin.xlane.f32.xlu0 %v1077
      %v1079 = vpop.xlane.xlu0 %1078
      %v1080 = vcvt.f32.s32 %v1079
      %v1081 = vcvt.f32.s32 %v1075
      %v1082 = vshll.u32 %v1081, 16
      %v1083 = vadd.s32 %v1082, %v1080
      %vm1084 = vcmp.lt.s32.totalorder %v894, %v895
      %v1085 = vsel %vm1084, %v894, %v895
      %v1086 = vand.u32 %v1085, 65535
      %v1087 = vshra.s32 %v1085, 16
      %v1088 = vcvt.s32.f32 %v1086
      %v1089 = vcvt.s32.f32 %v1087
      %1090 = vmin.xlane.f32.xlu0 %v1089
      %v1091 = vpop.xlane.xlu0 %1090
      %vm1092 = vcmp.eq.f32.partialorder %v1089, %v1091
      %v1093 = vsel %vm1092, %v1088, inf
      %1094 = vmin.xlane.f32.xlu0 %v1093
      %v1095 = vpop.xlane.xlu0 %1094
      %v1096 = vcvt.f32.s32 %v1095
      %v1097 = vcvt.f32.s32 %v1091
      %v1098 = vshll.u32 %v1097, 16
      %v1099 = vadd.s32 %v1098, %v1096
      %vm1100 = vcmp.lt.s32.totalorder %v896, %v897
      %v1101 = vsel %vm1100, %v896, %v897
      %v1102 = vand.u32 %v1101, 65535
      %v1103 = vshra.s32 %v1101, 16
      %v1104 = vcvt.s32.f32 %v1102
      %v1105 = vcvt.s32.f32 %v1103
      %1106 = vmin.xlane.f32.xlu0 %v1105
      %v1107 = vpop.xlane.xlu0 %1106
      %vm1108 = vcmp.eq.f32.partialorder %v1105, %v1107
      %v1109 = vsel %vm1108, %v1104, inf
      %1110 = vmin.xlane.f32.xlu0 %v1109
      %v1111 = vpop.xlane.xlu0 %1110
      %v1112 = vcvt.f32.s32 %v1111
      %v1113 = vcvt.f32.s32 %v1107
      %v1114 = vshll.u32 %v1113, 16
      %v1115 = vadd.s32 %v1114, %v1112
      %vm1116 = vcmp.lt.s32.totalorder %v898, %v899
      %v1117 = vsel %vm1116, %v898, %v899
      %v1118 = vand.u32 %v1117, 65535
      %v1119 = vshra.s32 %v1117, 16
      %v1120 = vcvt.s32.f32 %v1118
      %v1121 = vcvt.s32.f32 %v1119
      %1122 = vmin.xlane.f32.xlu0 %v1121
      %v1123 = vpop.xlane.xlu0 %1122
      %vm1124 = vcmp.eq.f32.partialorder %v1121, %v1123
      %v1125 = vsel %vm1124, %v1120, inf
      %1126 = vmin.xlane.f32.xlu0 %v1125
      %v1127 = vpop.xlane.xlu0 %1126
      %v1128 = vcvt.f32.s32 %v1127
      %v1129 = vcvt.f32.s32 %v1123
      %v1130 = vshll.u32 %v1129, 16
      %v1131 = vadd.s32 %v1130, %v1128
      %vm1132 = vcmp.lt.s32.totalorder %v900, %v901
      %v1133 = vsel %vm1132, %v900, %v901
      %v1134 = vand.u32 %v1133, 65535
      %v1135 = vshra.s32 %v1133, 16
      %v1136 = vcvt.s32.f32 %v1134
      %v1137 = vcvt.s32.f32 %v1135
      %1138 = vmin.xlane.f32.xlu0 %v1137
      %v1139 = vpop.xlane.xlu0 %1138
      %vm1140 = vcmp.eq.f32.partialorder %v1137, %v1139
      %v1141 = vsel %vm1140, %v1136, inf
      %1142 = vmin.xlane.f32.xlu0 %v1141
      %v1143 = vpop.xlane.xlu0 %1142
      %v1144 = vcvt.f32.s32 %v1143
      %v1145 = vcvt.f32.s32 %v1139
      %v1146 = vshll.u32 %v1145, 16
      %v1147 = vadd.s32 %v1146, %v1144
      %vm1148 = vcmp.lt.s32.totalorder %v902, %v903
      %v1149 = vsel %vm1148, %v902, %v903
      %v1150 = vand.u32 %v1149, 65535
      %v1151 = vshra.s32 %v1149, 16
      %v1152 = vcvt.s32.f32 %v1150
      %v1153 = vcvt.s32.f32 %v1151
      %1154 = vmin.xlane.f32.xlu0 %v1153
      %v1155 = vpop.xlane.xlu0 %1154
      %vm1156 = vcmp.eq.f32.partialorder %v1153, %v1155
      %v1157 = vsel %vm1156, %v1152, inf
      %1158 = vmin.xlane.f32.xlu0 %v1157
      %v1159 = vpop.xlane.xlu0 %1158
      %v1160 = vcvt.f32.s32 %v1159
      %v1161 = vcvt.f32.s32 %v1155
      %v1162 = vshll.u32 %v1161, 16
      %v1163 = vadd.s32 %v1162, %v1160
      %vm1164 = vcmp.lt.s32.totalorder %v904, %v905
      %v1165 = vsel %vm1164, %v904, %v905
      %v1166 = vand.u32 %v1165, 65535
      %v1167 = vshra.s32 %v1165, 16
      %v1168 = vcvt.s32.f32 %v1166
      %v1169 = vcvt.s32.f32 %v1167
      %1170 = vmin.xlane.f32.xlu0 %v1169
      %v1171 = vpop.xlane.xlu0 %1170
      %vm1172 = vcmp.eq.f32.partialorder %v1169, %v1171
      %v1173 = vsel %vm1172, %v1168, inf
      %1174 = vmin.xlane.f32.xlu0 %v1173
      %v1175 = vpop.xlane.xlu0 %1174
      %v1176 = vcvt.f32.s32 %v1175
      %v1177 = vcvt.f32.s32 %v1171
      %v1178 = vshll.u32 %v1177, 16
      %v1179 = vadd.s32 %v1178, %v1176
      %vm1180 = vcmp.lt.s32.totalorder %v906, %v907
      %v1181 = vsel %vm1180, %v906, %v907
      %v1182 = vand.u32 %v1181, 65535
      %v1183 = vshra.s32 %v1181, 16
      %v1184 = vcvt.s32.f32 %v1182
      %v1185 = vcvt.s32.f32 %v1183
      %1186 = vmin.xlane.f32.xlu0 %v1185
      %v1187 = vpop.xlane.xlu0 %1186
      %vm1188 = vcmp.eq.f32.partialorder %v1185, %v1187
      %v1189 = vsel %vm1188, %v1184, inf
      %1190 = vmin.xlane.f32.xlu0 %v1189
      %v1191 = vpop.xlane.xlu0 %1190
      %v1192 = vcvt.f32.s32 %v1191
      %v1193 = vcvt.f32.s32 %v1187
      %v1194 = vshll.u32 %v1193, 16
      %v1195 = vadd.s32 %v1194, %v1192
      %vm1196 = vcmp.lt.s32.totalorder %v908, %v909
      %v1197 = vsel %vm1196, %v908, %v909
      %v1198 = vand.u32 %v1197, 65535
      %v1199 = vshra.s32 %v1197, 16
      %v1200 = vcvt.s32.f32 %v1198
      %v1201 = vcvt.s32.f32 %v1199
      %1202 = vmin.xlane.f32.xlu0 %v1201
      %v1203 = vpop.xlane.xlu0 %1202
      %vm1204 = vcmp.eq.f32.partialorder %v1201, %v1203
      %v1205 = vsel %vm1204, %v1200, inf
      %1206 = vmin.xlane.f32.xlu0 %v1205
      %v1207 = vpop.xlane.xlu0 %1206
      %v1208 = vcvt.f32.s32 %v1207
      %v1209 = vcvt.f32.s32 %v1203
      %v1210 = vshll.u32 %v1209, 16
      %v1211 = vadd.s32 %v1210, %v1208
      %vm1212 = vcmp.lt.s32.totalorder %v910, %v911
      %v1213 = vsel %vm1212, %v910, %v911
      %v1214 = vand.u32 %v1213, 65535
      %v1215 = vshra.s32 %v1213, 16
      %v1216 = vcvt.s32.f32 %v1214
      %v1217 = vcvt.s32.f32 %v1215
      %1218 = vmin.xlane.f32.xlu0 %v1217
      %v1219 = vpop.xlane.xlu0 %1218
      %vm1220 = vcmp.eq.f32.partialorder %v1217, %v1219
      %v1221 = vsel %vm1220, %v1216, inf
      %1222 = vmin.xlane.f32.xlu0 %v1221
      %v1223 = vpop.xlane.xlu0 %1222
      %v1224 = vcvt.f32.s32 %v1223
      %v1225 = vcvt.f32.s32 %v1219
      %v1226 = vshll.u32 %v1225, 16
      %v1227 = vadd.s32 %v1226, %v1224
      %vm1228 = vcmp.lt.s32.totalorder %v912, %v913
      %v1229 = vsel %vm1228, %v912, %v913
      %v1230 = vand.u32 %v1229, 65535
      %v1231 = vshra.s32 %v1229, 16
      %v1232 = vcvt.s32.f32 %v1230
      %v1233 = vcvt.s32.f32 %v1231
      %1234 = vmin.xlane.f32.xlu0 %v1233
      %v1235 = vpop.xlane.xlu0 %1234
      %vm1236 = vcmp.eq.f32.partialorder %v1233, %v1235
      %v1237 = vsel %vm1236, %v1232, inf
      %1238 = vmin.xlane.f32.xlu0 %v1237
      %v1239 = vpop.xlane.xlu0 %1238
      %v1240 = vcvt.f32.s32 %v1239
      %v1241 = vcvt.f32.s32 %v1235
      %v1242 = vshll.u32 %v1241, 16
      %v1243 = vadd.s32 %v1242, %v1240
      %vm1244 = vcmp.lt.s32.totalorder %v914, %v915
      %v1245 = vsel %vm1244, %v914, %v915
      %v1246 = vand.u32 %v1245, 65535
      %v1247 = vshra.s32 %v1245, 16
      %v1248 = vcvt.s32.f32 %v1246
      %v1249 = vcvt.s32.f32 %v1247
      %1250 = vmin.xlane.f32.xlu0 %v1249
      %v1251 = vpop.xlane.xlu0 %1250
      %vm1252 = vcmp.eq.f32.partialorder %v1249, %v1251
      %v1253 = vsel %vm1252, %v1248, inf
      %1254 = vmin.xlane.f32.xlu0 %v1253
      %v1255 = vpop.xlane.xlu0 %1254
      %v1256 = vcvt.f32.s32 %v1255
      %v1257 = vcvt.f32.s32 %v1251
      %v1258 = vshll.u32 %v1257, 16
      %v1259 = vadd.s32 %v1258, %v1256
      %vm1260 = vcmp.lt.s32.totalorder %v916, %v917
      %v1261 = vsel %vm1260, %v916, %v917
      %v1262 = vand.u32 %v1261, 65535
      %v1263 = vshra.s32 %v1261, 16
      %v1264 = vcvt.s32.f32 %v1262
      %v1265 = vcvt.s32.f32 %v1263
      %1266 = vmin.xlane.f32.xlu0 %v1265
      %v1267 = vpop.xlane.xlu0 %1266
      %vm1268 = vcmp.eq.f32.partialorder %v1265, %v1267
      %v1269 = vsel %vm1268, %v1264, inf
      %1270 = vmin.xlane.f32.xlu0 %v1269
      %v1271 = vpop.xlane.xlu0 %1270
      %v1272 = vcvt.f32.s32 %v1271
      %v1273 = vcvt.f32.s32 %v1267
      %v1274 = vshll.u32 %v1273, 16
      %v1275 = vadd.s32 %v1274, %v1272
      %vm1276 = vcmp.lt.s32.totalorder %v918, %v919
      %v1277 = vsel %vm1276, %v918, %v919
      %v1278 = vand.u32 %v1277, 65535
      %v1279 = vshra.s32 %v1277, 16
      %v1280 = vcvt.s32.f32 %v1278
      %v1281 = vcvt.s32.f32 %v1279
      %1282 = vmin.xlane.f32.xlu0 %v1281
      %v1283 = vpop.xlane.xlu0 %1282
      %vm1284 = vcmp.eq.f32.partialorder %v1281, %v1283
      %v1285 = vsel %vm1284, %v1280, inf
      %1286 = vmin.xlane.f32.xlu0 %v1285
      %v1287 = vpop.xlane.xlu0 %1286
      %v1288 = vcvt.f32.s32 %v1287
      %v1289 = vcvt.f32.s32 %v1283
      %v1290 = vshll.u32 %v1289, 16
      %v1291 = vadd.s32 %v1290, %v1288
      %vm1292 = vcmp.lt.s32.totalorder %v920, %v921
      %v1293 = vsel %vm1292, %v920, %v921
      %v1294 = vand.u32 %v1293, 65535
      %v1295 = vshra.s32 %v1293, 16
      %v1296 = vcvt.s32.f32 %v1294
      %v1297 = vcvt.s32.f32 %v1295
      %1298 = vmin.xlane.f32.xlu0 %v1297
      %v1299 = vpop.xlane.xlu0 %1298
      %vm1300 = vcmp.eq.f32.partialorder %v1297, %v1299
      %v1301 = vsel %vm1300, %v1296, inf
      %1302 = vmin.xlane.f32.xlu0 %v1301
      %v1303 = vpop.xlane.xlu0 %1302
      %v1304 = vcvt.f32.s32 %v1303
      %v1305 = vcvt.f32.s32 %v1299
      %v1306 = vshll.u32 %v1305, 16
      %v1307 = vadd.s32 %v1306, %v1304
      %vm1308 = vcmp.lt.s32.totalorder %v922, %v923
      %v1309 = vsel %vm1308, %v922, %v923
      %v1310 = vand.u32 %v1309, 65535
      %v1311 = vshra.s32 %v1309, 16
      %v1312 = vcvt.s32.f32 %v1310
      %v1313 = vcvt.s32.f32 %v1311
      %1314 = vmin.xlane.f32.xlu0 %v1313
      %v1315 = vpop.xlane.xlu0 %1314
      %vm1316 = vcmp.eq.f32.partialorder %v1313, %v1315
      %v1317 = vsel %vm1316, %v1312, inf
      %1318 = vmin.xlane.f32.xlu0 %v1317
      %v1319 = vpop.xlane.xlu0 %1318
      %v1320 = vcvt.f32.s32 %v1319
      %v1321 = vcvt.f32.s32 %v1315
      %v1322 = vshll.u32 %v1321, 16
      %v1323 = vadd.s32 %v1322, %v1320
      %vm1324 = vcmp.lt.s32.totalorder %v924, %v925
      %v1325 = vsel %vm1324, %v924, %v925
      %v1326 = vand.u32 %v1325, 65535
      %v1327 = vshra.s32 %v1325, 16
      %v1328 = vcvt.s32.f32 %v1326
      %v1329 = vcvt.s32.f32 %v1327
      %1330 = vmin.xlane.f32.xlu0 %v1329
      %v1331 = vpop.xlane.xlu0 %1330
      %vm1332 = vcmp.eq.f32.partialorder %v1329, %v1331
      %v1333 = vsel %vm1332, %v1328, inf
      %1334 = vmin.xlane.f32.xlu0 %v1333
      %v1335 = vpop.xlane.xlu0 %1334
      %v1336 = vcvt.f32.s32 %v1335
      %v1337 = vcvt.f32.s32 %v1331
      %v1338 = vshll.u32 %v1337, 16
      %v1339 = vadd.s32 %v1338, %v1336
      %vm1340 = vcmp.lt.s32.totalorder %v926, %v927
      %v1341 = vsel %vm1340, %v926, %v927
      %v1342 = vand.u32 %v1341, 65535
      %v1343 = vshra.s32 %v1341, 16
      %v1344 = vcvt.s32.f32 %v1342
      %v1345 = vcvt.s32.f32 %v1343
      %1346 = vmin.xlane.f32.xlu0 %v1345
      %v1347 = vpop.xlane.xlu0 %1346
      %vm1348 = vcmp.eq.f32.partialorder %v1345, %v1347
      %v1349 = vsel %vm1348, %v1344, inf
      %1350 = vmin.xlane.f32.xlu0 %v1349
      %v1351 = vpop.xlane.xlu0 %1350
      %v1352 = vcvt.f32.s32 %v1351
      %v1353 = vcvt.f32.s32 %v1347
      %v1354 = vshll.u32 %v1353, 16
      %v1355 = vadd.s32 %v1354, %v1352
      %vm1356 = vcmp.lt.s32.totalorder %v928, %v929
      %v1357 = vsel %vm1356, %v928, %v929
      %v1358 = vand.u32 %v1357, 65535
      %v1359 = vshra.s32 %v1357, 16
      %v1360 = vcvt.s32.f32 %v1358
      %v1361 = vcvt.s32.f32 %v1359
      %1362 = vmin.xlane.f32.xlu0 %v1361
      %v1363 = vpop.xlane.xlu0 %1362
      %vm1364 = vcmp.eq.f32.partialorder %v1361, %v1363
      %v1365 = vsel %vm1364, %v1360, inf
      %1366 = vmin.xlane.f32.xlu0 %v1365
      %v1367 = vpop.xlane.xlu0 %1366
      %v1368 = vcvt.f32.s32 %v1367
      %v1369 = vcvt.f32.s32 %v1363
      %v1370 = vshll.u32 %v1369, 16
      %v1371 = vadd.s32 %v1370, %v1368
      %vm1372 = vcmp.lt.s32.totalorder %v930, %v931
      %v1373 = vsel %vm1372, %v930, %v931
      %v1374 = vand.u32 %v1373, 65535
      %v1375 = vshra.s32 %v1373, 16
      %v1376 = vcvt.s32.f32 %v1374
      %v1377 = vcvt.s32.f32 %v1375
      %1378 = vmin.xlane.f32.xlu0 %v1377
      %v1379 = vpop.xlane.xlu0 %1378
      %vm1380 = vcmp.eq.f32.partialorder %v1377, %v1379
      %v1381 = vsel %vm1380, %v1376, inf
      %1382 = vmin.xlane.f32.xlu0 %v1381
      %v1383 = vpop.xlane.xlu0 %1382
      %v1384 = vcvt.f32.s32 %v1383
      %v1385 = vcvt.f32.s32 %v1379
      %v1386 = vshll.u32 %v1385, 16
      %v1387 = vadd.s32 %v1386, %v1384
      %vm1388 = vcmp.lt.s32.totalorder %v932, %v933
      %v1389 = vsel %vm1388, %v932, %v933
      %v1390 = vand.u32 %v1389, 65535
      %v1391 = vshra.s32 %v1389, 16
      %v1392 = vcvt.s32.f32 %v1390
      %v1393 = vcvt.s32.f32 %v1391
      %1394 = vmin.xlane.f32.xlu0 %v1393
      %v1395 = vpop.xlane.xlu0 %1394
      %vm1396 = vcmp.eq.f32.partialorder %v1393, %v1395
      %v1397 = vsel %vm1396, %v1392, inf
      %1398 = vmin.xlane.f32.xlu0 %v1397
      %v1399 = vpop.xlane.xlu0 %1398
      %v1400 = vcvt.f32.s32 %v1399
      %v1401 = vcvt.f32.s32 %v1395
      %v1402 = vshll.u32 %v1401, 16
      %v1403 = vadd.s32 %v1402, %v1400
      %vm1404 = vcmp.lt.s32.totalorder %v934, %v935
      %v1405 = vsel %vm1404, %v934, %v935
      %v1406 = vand.u32 %v1405, 65535
      %v1407 = vshra.s32 %v1405, 16
      %v1408 = vcvt.s32.f32 %v1406
      %v1409 = vcvt.s32.f32 %v1407
      %1410 = vmin.xlane.f32.xlu0 %v1409
      %v1411 = vpop.xlane.xlu0 %1410
      %vm1412 = vcmp.eq.f32.partialorder %v1409, %v1411
      %v1413 = vsel %vm1412, %v1408, inf
      %1414 = vmin.xlane.f32.xlu0 %v1413
      %v1415 = vpop.xlane.xlu0 %1414
      %v1416 = vcvt.f32.s32 %v1415
      %v1417 = vcvt.f32.s32 %v1411
      %v1418 = vshll.u32 %v1417, 16
      %v1419 = vadd.s32 %v1418, %v1416
      %vm1420 = vcmp.lt.s32.totalorder %v936, %v937
      %v1421 = vsel %vm1420, %v936, %v937
      %v1422 = vand.u32 %v1421, 65535
      %v1423 = vshra.s32 %v1421, 16
      %v1424 = vcvt.s32.f32 %v1422
      %v1425 = vcvt.s32.f32 %v1423
      %1426 = vmin.xlane.f32.xlu0 %v1425
      %v1427 = vpop.xlane.xlu0 %1426
      %vm1428 = vcmp.eq.f32.partialorder %v1425, %v1427
      %v1429 = vsel %vm1428, %v1424, inf
      %1430 = vmin.xlane.f32.xlu0 %v1429
      %v1431 = vpop.xlane.xlu0 %1430
      %v1432 = vcvt.f32.s32 %v1431
      %v1433 = vcvt.f32.s32 %v1427
      %v1434 = vshll.u32 %v1433, 16
      %v1435 = vadd.s32 %v1434, %v1432
      %vm1436 = vcmp.lt.s32.totalorder %v938, %v939
      %v1437 = vsel %vm1436, %v938, %v939
      %v1438 = vand.u32 %v1437, 65535
      %v1439 = vshra.s32 %v1437, 16
      %v1440 = vcvt.s32.f32 %v1438
      %v1441 = vcvt.s32.f32 %v1439
      %1442 = vmin.xlane.f32.xlu0 %v1441
      %v1443 = vpop.xlane.xlu0 %1442
      %vm1444 = vcmp.eq.f32.partialorder %v1441, %v1443
      %v1445 = vsel %vm1444, %v1440, inf
      %1446 = vmin.xlane.f32.xlu0 %v1445
      %v1447 = vpop.xlane.xlu0 %1446
      %v1448 = vcvt.f32.s32 %v1447
      %v1449 = vcvt.f32.s32 %v1443
      %v1450 = vshll.u32 %v1449, 16
      %v1451 = vadd.s32 %v1450, %v1448
      %s1452 = smul.u32 %s20, 256
      %v1453 = vstv %s1452
      %v1454 = vadd.s32 %v955, %v1453
      %v1455 = vadd.s32 %v971, %v1453
      %v1456 = vadd.s32 %v987, %v1453
      %v1457 = vadd.s32 %v1003, %v1453
      %v1458 = vadd.s32 %v1019, %v1453
      %v1459 = vadd.s32 %v1035, %v1453
      %v1460 = vadd.s32 %v1051, %v1453
      %v1461 = vadd.s32 %v1067, %v1453
      %v1462 = vadd.s32 %v1083, %v1453
      %v1463 = vadd.s32 %v1099, %v1453
      %v1464 = vadd.s32 %v1115, %v1453
      %v1465 = vadd.s32 %v1131, %v1453
      %v1466 = vadd.s32 %v1147, %v1453
      %v1467 = vadd.s32 %v1163, %v1453
      %v1468 = vadd.s32 %v1179, %v1453
      %v1469 = vadd.s32 %v1195, %v1453
      %v1470 = vadd.s32 %v1211, %v1453
      %v1471 = vadd.s32 %v1227, %v1453
      %v1472 = vadd.s32 %v1243, %v1453
      %v1473 = vadd.s32 %v1259, %v1453
      %v1474 = vadd.s32 %v1275, %v1453
      %v1475 = vadd.s32 %v1291, %v1453
      %v1476 = vadd.s32 %v1307, %v1453
      %v1477 = vadd.s32 %v1323, %v1453
      %v1478 = vadd.s32 %v1339, %v1453
      %v1479 = vadd.s32 %v1355, %v1453
      %v1480 = vadd.s32 %v1371, %v1453
      %v1481 = vadd.s32 %v1387, %v1453
      %v1482 = vadd.s32 %v1403, %v1453
      %v1483 = vadd.s32 %v1419, %v1453
      %v1484 = vadd.s32 %v1435, %v1453
      %v1485 = vadd.s32 %v1451, %v1453
      %v1486 = vld [vmem:[#allocation2] sm:$0xff]
      %v1487 = vld [vmem:[#allocation2 + $0x8] sm:$0xff]
      %v1488 = vld [vmem:[#allocation2 + $0x10] sm:$0xff]
      %v1489 = vld [vmem:[#allocation2 + $0x18] sm:$0xff]
      %v1490 = vld [vmem:[#allocation2 + $0x20] sm:$0xff]
      %v1491 = vld [vmem:[#allocation2 + $0x28] sm:$0xff]
      %v1492 = vld [vmem:[#allocation2 + $0x30] sm:$0xff]
      %v1493 = vld [vmem:[#allocation2 + $0x38] sm:$0xff]
      %v1494 = vld [vmem:[#allocation2 + $0x40] sm:$0xff]
      %v1495 = vld [vmem:[#allocation2 + $0x48] sm:$0xff]
      %v1496 = vld [vmem:[#allocation2 + $0x50] sm:$0xff]
      %v1497 = vld [vmem:[#allocation2 + $0x58] sm:$0xff]
      %v1498 = vld [vmem:[#allocation2 + $0x60] sm:$0xff]
      %v1499 = vld [vmem:[#allocation2 + $0x68] sm:$0xff]
      %v1500 = vld [vmem:[#allocation2 + $0x70] sm:$0xff]
      %v1501 = vld [vmem:[#allocation2 + $0x78] sm:$0xff]
      %v1502 = vld [vmem:[#allocation2 + $0x80] sm:$0xff]
      %v1503 = vld [vmem:[#allocation2 + $0x88] sm:$0xff]
      %v1504 = vld [vmem:[#allocation2 + $0x90] sm:$0xff]
      %v1505 = vld [vmem:[#allocation2 + $0x98] sm:$0xff]
      %v1506 = vld [vmem:[#allocation2 + $0xa0] sm:$0xff]
      %v1507 = vld [vmem:[#allocation2 + $0xa8] sm:$0xff]
      %v1508 = vld [vmem:[#allocation2 + $0xb0] sm:$0xff]
      %v1509 = vld [vmem:[#allocation2 + $0xb8] sm:$0xff]
      %v1510 = vld [vmem:[#allocation2 + $0xc0] sm:$0xff]
      %v1511 = vld [vmem:[#allocation2 + $0xc8] sm:$0xff]
      %v1512 = vld [vmem:[#allocation2 + $0xd0] sm:$0xff]
      %v1513 = vld [vmem:[#allocation2 + $0xd8] sm:$0xff]
      %v1514 = vld [vmem:[#allocation2 + $0xe0] sm:$0xff]
      %v1515 = vld [vmem:[#allocation2 + $0xe8] sm:$0xff]
      %v1516 = vld [vmem:[#allocation2 + $0xf0] sm:$0xff]
      %v1517 = vld [vmem:[#allocation2 + $0xf8] sm:$0xff]
      %vm1518 = vcmp.gt.f32.partialorder %v718, %v1486
      %vm1519 = vcmp.gt.f32.partialorder %v721, %v1487
      %vm1520 = vcmp.gt.f32.partialorder %v724, %v1488
      %vm1521 = vcmp.gt.f32.partialorder %v727, %v1489
      %vm1522 = vcmp.gt.f32.partialorder %v730, %v1490
      %vm1523 = vcmp.gt.f32.partialorder %v733, %v1491
      %vm1524 = vcmp.gt.f32.partialorder %v736, %v1492
      %vm1525 = vcmp.gt.f32.partialorder %v739, %v1493
      %vm1526 = vcmp.gt.f32.partialorder %v742, %v1494
      %vm1527 = vcmp.gt.f32.partialorder %v745, %v1495
      %vm1528 = vcmp.gt.f32.partialorder %v748, %v1496
      %vm1529 = vcmp.gt.f32.partialorder %v751, %v1497
      %vm1530 = vcmp.gt.f32.partialorder %v754, %v1498
      %vm1531 = vcmp.gt.f32.partialorder %v757, %v1499
      %vm1532 = vcmp.gt.f32.partialorder %v760, %v1500
      %vm1533 = vcmp.gt.f32.partialorder %v763, %v1501
      %vm1534 = vcmp.gt.f32.partialorder %v766, %v1502
      %vm1535 = vcmp.gt.f32.partialorder %v769, %v1503
      %vm1536 = vcmp.gt.f32.partialorder %v772, %v1504
      %vm1537 = vcmp.gt.f32.partialorder %v775, %v1505
      %vm1538 = vcmp.gt.f32.partialorder %v778, %v1506
      %vm1539 = vcmp.gt.f32.partialorder %v781, %v1507
      %vm1540 = vcmp.gt.f32.partialorder %v784, %v1508
      %vm1541 = vcmp.gt.f32.partialorder %v787, %v1509
      %vm1542 = vcmp.gt.f32.partialorder %v790, %v1510
      %vm1543 = vcmp.gt.f32.partialorder %v793, %v1511
      %vm1544 = vcmp.gt.f32.partialorder %v796, %v1512
      %vm1545 = vcmp.gt.f32.partialorder %v799, %v1513
      %vm1546 = vcmp.gt.f32.partialorder %v802, %v1514
      %vm1547 = vcmp.gt.f32.partialorder %v805, %v1515
      %vm1548 = vcmp.gt.f32.partialorder %v808, %v1516
      %vm1549 = vcmp.gt.f32.partialorder %v811, %v1517
      %v1550 = vsel %vm1518, %v718, %v1486
      %v1551 = vsel %vm1519, %v721, %v1487
      %v1552 = vsel %vm1520, %v724, %v1488
      %v1553 = vsel %vm1521, %v727, %v1489
      %v1554 = vsel %vm1522, %v730, %v1490
      %v1555 = vsel %vm1523, %v733, %v1491
      %v1556 = vsel %vm1524, %v736, %v1492
      %v1557 = vsel %vm1525, %v739, %v1493
      %v1558 = vsel %vm1526, %v742, %v1494
      %v1559 = vsel %vm1527, %v745, %v1495
      %v1560 = vsel %vm1528, %v748, %v1496
      %v1561 = vsel %vm1529, %v751, %v1497
      %v1562 = vsel %vm1530, %v754, %v1498
      %v1563 = vsel %vm1531, %v757, %v1499
      %v1564 = vsel %vm1532, %v760, %v1500
      %v1565 = vsel %vm1533, %v763, %v1501
      %v1566 = vsel %vm1534, %v766, %v1502
      %v1567 = vsel %vm1535, %v769, %v1503
      %v1568 = vsel %vm1536, %v772, %v1504
      %v1569 = vsel %vm1537, %v775, %v1505
      %v1570 = vsel %vm1538, %v778, %v1506
      %v1571 = vsel %vm1539, %v781, %v1507
      %v1572 = vsel %vm1540, %v784, %v1508
      %v1573 = vsel %vm1541, %v787, %v1509
      %v1574 = vsel %vm1542, %v790, %v1510
      %v1575 = vsel %vm1543, %v793, %v1511
      %v1576 = vsel %vm1544, %v796, %v1512
      %v1577 = vsel %vm1545, %v799, %v1513
      %v1578 = vsel %vm1546, %v802, %v1514
      %v1579 = vsel %vm1547, %v805, %v1515
      %v1580 = vsel %vm1548, %v808, %v1516
      %v1581 = vsel %vm1549, %v811, %v1517
      %vm1582 = vcmask 7168
      %1583 = vst.msk [vmem:[#allocation2] sm:$0xff] %vm1582, %v1550
      %1584 = vst.msk [vmem:[#allocation2 + $0x8] sm:$0xff] %vm1582, %v1551
      %1585 = vst.msk [vmem:[#allocation2 + $0x10] sm:$0xff] %vm1582, %v1552
      %1586 = vst.msk [vmem:[#allocation2 + $0x18] sm:$0xff] %vm1582, %v1553
      %1587 = vst.msk [vmem:[#allocation2 + $0x20] sm:$0xff] %vm1582, %v1554
      %1588 = vst.msk [vmem:[#allocation2 + $0x28] sm:$0xff] %vm1582, %v1555
      %1589 = vst.msk [vmem:[#allocation2 + $0x30] sm:$0xff] %vm1582, %v1556
      %1590 = vst.msk [vmem:[#allocation2 + $0x38] sm:$0xff] %vm1582, %v1557
      %1591 = vst.msk [vmem:[#allocation2 + $0x40] sm:$0xff] %vm1582, %v1558
      %1592 = vst.msk [vmem:[#allocation2 + $0x48] sm:$0xff] %vm1582, %v1559
      %1593 = vst.msk [vmem:[#allocation2 + $0x50] sm:$0xff] %vm1582, %v1560
      %1594 = vst.msk [vmem:[#allocation2 + $0x58] sm:$0xff] %vm1582, %v1561
      %1595 = vst.msk [vmem:[#allocation2 + $0x60] sm:$0xff] %vm1582, %v1562
      %1596 = vst.msk [vmem:[#allocation2 + $0x68] sm:$0xff] %vm1582, %v1563
      %1597 = vst.msk [vmem:[#allocation2 + $0x70] sm:$0xff] %vm1582, %v1564
      %1598 = vst.msk [vmem:[#allocation2 + $0x78] sm:$0xff] %vm1582, %v1565
      %1599 = vst.msk [vmem:[#allocation2 + $0x80] sm:$0xff] %vm1582, %v1566
      %1600 = vst.msk [vmem:[#allocation2 + $0x88] sm:$0xff] %vm1582, %v1567
      %1601 = vst.msk [vmem:[#allocation2 + $0x90] sm:$0xff] %vm1582, %v1568
      %1602 = vst.msk [vmem:[#allocation2 + $0x98] sm:$0xff] %vm1582, %v1569
      %1603 = vst.msk [vmem:[#allocation2 + $0xa0] sm:$0xff] %vm1582, %v1570
      %1604 = vst.msk [vmem:[#allocation2 + $0xa8] sm:$0xff] %vm1582, %v1571
      %1605 = vst.msk [vmem:[#allocation2 + $0xb0] sm:$0xff] %vm1582, %v1572
      %1606 = vst.msk [vmem:[#allocation2 + $0xb8] sm:$0xff] %vm1582, %v1573
      %1607 = vst.msk [vmem:[#allocation2 + $0xc0] sm:$0xff] %vm1582, %v1574
      %1608 = vst.msk [vmem:[#allocation2 + $0xc8] sm:$0xff] %vm1582, %v1575
      %1609 = vst.msk [vmem:[#allocation2 + $0xd0] sm:$0xff] %vm1582, %v1576
      %1610 = vst.msk [vmem:[#allocation2 + $0xd8] sm:$0xff] %vm1582, %v1577
      %1611 = vst.msk [vmem:[#allocation2 + $0xe0] sm:$0xff] %vm1582, %v1578
      %1612 = vst.msk [vmem:[#allocation2 + $0xe8] sm:$0xff] %vm1582, %v1579
      %1613 = vst.msk [vmem:[#allocation2 + $0xf0] sm:$0xff] %vm1582, %v1580
      %1614 = vst.msk [vmem:[#allocation2 + $0xf8] sm:$0xff] %vm1582, %v1581
      %v1615 = vld [vmem:[%s224] sm:$0xff]
      %v1616 = vld [vmem:[%s224 + $0x8] sm:$0xff]
      %v1617 = vld [vmem:[%s224 + $0x10] sm:$0xff]
      %v1618 = vld [vmem:[%s224 + $0x18] sm:$0xff]
      %v1619 = vld [vmem:[%s224 + $0x20] sm:$0xff]
      %v1620 = vld [vmem:[%s224 + $0x28] sm:$0xff]
      %v1621 = vld [vmem:[%s224 + $0x30] sm:$0xff]
      %v1622 = vld [vmem:[%s224 + $0x38] sm:$0xff]
      %v1623 = vld [vmem:[%s224 + $0x40] sm:$0xff]
      %v1624 = vld [vmem:[%s224 + $0x48] sm:$0xff]
      %v1625 = vld [vmem:[%s224 + $0x50] sm:$0xff]
      %v1626 = vld [vmem:[%s224 + $0x58] sm:$0xff]
      %v1627 = vld [vmem:[%s224 + $0x60] sm:$0xff]
      %v1628 = vld [vmem:[%s224 + $0x68] sm:$0xff]
      %v1629 = vld [vmem:[%s224 + $0x70] sm:$0xff]
      %v1630 = vld [vmem:[%s224 + $0x78] sm:$0xff]
      %v1631 = vld [vmem:[%s224 + $0x80] sm:$0xff]
      %v1632 = vld [vmem:[%s224 + $0x88] sm:$0xff]
      %v1633 = vld [vmem:[%s224 + $0x90] sm:$0xff]
      %v1634 = vld [vmem:[%s224 + $0x98] sm:$0xff]
      %v1635 = vld [vmem:[%s224 + $0xa0] sm:$0xff]
      %v1636 = vld [vmem:[%s224 + $0xa8] sm:$0xff]
      %v1637 = vld [vmem:[%s224 + $0xb0] sm:$0xff]
      %v1638 = vld [vmem:[%s224 + $0xb8] sm:$0xff]
      %v1639 = vld [vmem:[%s224 + $0xc0] sm:$0xff]
      %v1640 = vld [vmem:[%s224 + $0xc8] sm:$0xff]
      %v1641 = vld [vmem:[%s224 + $0xd0] sm:$0xff]
      %v1642 = vld [vmem:[%s224 + $0xd8] sm:$0xff]
      %v1643 = vld [vmem:[%s224 + $0xe0] sm:$0xff]
      %v1644 = vld [vmem:[%s224 + $0xe8] sm:$0xff]
      %v1645 = vld [vmem:[%s224 + $0xf0] sm:$0xff]
      %v1646 = vld [vmem:[%s224 + $0xf8] sm:$0xff]
      %v1647 = vsel %vm1518, %v1454, %v1615
      %v1648 = vsel %vm1519, %v1455, %v1616
      %v1649 = vsel %vm1520, %v1456, %v1617
      %v1650 = vsel %vm1521, %v1457, %v1618
      %v1651 = vsel %vm1522, %v1458, %v1619
      %v1652 = vsel %vm1523, %v1459, %v1620
      %v1653 = vsel %vm1524, %v1460, %v1621
      %v1654 = vsel %vm1525, %v1461, %v1622
      %v1655 = vsel %vm1526, %v1462, %v1623
      %v1656 = vsel %vm1527, %v1463, %v1624
      %v1657 = vsel %vm1528, %v1464, %v1625
      %v1658 = vsel %vm1529, %v1465, %v1626
      %v1659 = vsel %vm1530, %v1466, %v1627
      %v1660 = vsel %vm1531, %v1467, %v1628
      %v1661 = vsel %vm1532, %v1468, %v1629
      %v1662 = vsel %vm1533, %v1469, %v1630
      %v1663 = vsel %vm1534, %v1470, %v1631
      %v1664 = vsel %vm1535, %v1471, %v1632
      %v1665 = vsel %vm1536, %v1472, %v1633
      %v1666 = vsel %vm1537, %v1473, %v1634
      %v1667 = vsel %vm1538, %v1474, %v1635
      %v1668 = vsel %vm1539, %v1475, %v1636
      %v1669 = vsel %vm1540, %v1476, %v1637
      %v1670 = vsel %vm1541, %v1477, %v1638
      %v1671 = vsel %vm1542, %v1478, %v1639
      %v1672 = vsel %vm1543, %v1479, %v1640
      %v1673 = vsel %vm1544, %v1480, %v1641
      %v1674 = vsel %vm1545, %v1481, %v1642
      %v1675 = vsel %vm1546, %v1482, %v1643
      %v1676 = vsel %vm1547, %v1483, %v1644
      %v1677 = vsel %vm1548, %v1484, %v1645
      %v1678 = vsel %vm1549, %v1485, %v1646
      %1679 = vst.msk [vmem:[%s224] sm:$0xff] %vm1582, %v1647
      %1680 = vst.msk [vmem:[%s224 + $0x8] sm:$0xff] %vm1582, %v1648
      %1681 = vst.msk [vmem:[%s224 + $0x10] sm:$0xff] %vm1582, %v1649
      %1682 = vst.msk [vmem:[%s224 + $0x18] sm:$0xff] %vm1582, %v1650
      %1683 = vst.msk [vmem:[%s224 + $0x20] sm:$0xff] %vm1582, %v1651
      %1684 = vst.msk [vmem:[%s224 + $0x28] sm:$0xff] %vm1582, %v1652
      %1685 = vst.msk [vmem:[%s224 + $0x30] sm:$0xff] %vm1582, %v1653
      %1686 = vst.msk [vmem:[%s224 + $0x38] sm:$0xff] %vm1582, %v1654
      %1687 = vst.msk [vmem:[%s224 + $0x40] sm:$0xff] %vm1582, %v1655
      %1688 = vst.msk [vmem:[%s224 + $0x48] sm:$0xff] %vm1582, %v1656
      %1689 = vst.msk [vmem:[%s224 + $0x50] sm:$0xff] %vm1582, %v1657
      %1690 = vst.msk [vmem:[%s224 + $0x58] sm:$0xff] %vm1582, %v1658
      %1691 = vst.msk [vmem:[%s224 + $0x60] sm:$0xff] %vm1582, %v1659
      %1692 = vst.msk [vmem:[%s224 + $0x68] sm:$0xff] %vm1582, %v1660
      %1693 = vst.msk [vmem:[%s224 + $0x70] sm:$0xff] %vm1582, %v1661
      %1694 = vst.msk [vmem:[%s224 + $0x78] sm:$0xff] %vm1582, %v1662
      %1695 = vst.msk [vmem:[%s224 + $0x80] sm:$0xff] %vm1582, %v1663
      %1696 = vst.msk [vmem:[%s224 + $0x88] sm:$0xff] %vm1582, %v1664
      %1697 = vst.msk [vmem:[%s224 + $0x90] sm:$0xff] %vm1582, %v1665
      %1698 = vst.msk [vmem:[%s224 + $0x98] sm:$0xff] %vm1582, %v1666
      %1699 = vst.msk [vmem:[%s224 + $0xa0] sm:$0xff] %vm1582, %v1667
      %1700 = vst.msk [vmem:[%s224 + $0xa8] sm:$0xff] %vm1582, %v1668
      %1701 = vst.msk [vmem:[%s224 + $0xb0] sm:$0xff] %vm1582, %v1669
      %1702 = vst.msk [vmem:[%s224 + $0xb8] sm:$0xff] %vm1582, %v1670
      %1703 = vst.msk [vmem:[%s224 + $0xc0] sm:$0xff] %vm1582, %v1671
      %1704 = vst.msk [vmem:[%s224 + $0xc8] sm:$0xff] %vm1582, %v1672
      %1705 = vst.msk [vmem:[%s224 + $0xd0] sm:$0xff] %vm1582, %v1673
      %1706 = vst.msk [vmem:[%s224 + $0xd8] sm:$0xff] %vm1582, %v1674
      %1707 = vst.msk [vmem:[%s224 + $0xe0] sm:$0xff] %vm1582, %v1675
      %1708 = vst.msk [vmem:[%s224 + $0xe8] sm:$0xff] %vm1582, %v1676
      %1709 = vst.msk [vmem:[%s224 + $0xf0] sm:$0xff] %vm1582, %v1677
      %1710 = vst.msk [vmem:[%s224 + $0xf8] sm:$0xff] %vm1582, %v1678
      %s1711 = smul.u32 32, %s19
      %p1712 = scmp.lt.s32.totalorder %s18, 1
      %s1713 = scalar_select %p1712, %s18, 1
      %p1714 = scmp.lt.s32.totalorder %s1711, 31
      %s1715 = scalar_select %p1714, %s1711, 31
      %s1716 = smul.addr %s1713, 32
      %s1717 = sadd.s32 %s1715, %s1716
      %s1718 = smul.addr %s1717, 8
      %s1719 = scalar_lea.vmem %s2, %s1718
      // Predicated region
      $region33: #{style_decorator_forward.15} parent=27 // pred_check
        %p1720 = pneg %p108
      $region34: #{style_decorator_forward.15} parent=27 // pred_check_branch
        %1722 = sbr.rel (%p1720) target = $region36
      $region35: #{style_decorator_forward.15} parent=27 // pred_region
        %s1723 = smul.u32 32, %s19
      $region36: #{style_decorator_forward.15} parent=27 // pred_fallthru
        _
    $region28: #{style_decorator_forward.15} parent=5 // pred_fallthru
      _
    %p1724 = scmp.le.s32.totalorder 2, %s8
    // Predicated region
    $region37: #{style_decorator_forward.15} parent=5 // pred_check
      %p1725 = pneg %p1724
    $region38: #{style_decorator_forward.15} parent=5 // pred_check_branch
      %1727 = sbr.rel (%p1725) target = $region40
    $region39: #{style_decorator_forward.15} parent=5 // pred_region
      %s1728 = ssub.s32 %s8, 2
      // Predicated region
      $region41: #{style_decorator_forward.15} parent=39 // pred_check
        %p1729 = pneg %p114
      $region42: #{style_decorator_forward.15} parent=39 // pred_check_branch
        %1731 = sbr.rel (%p1729) target = $region44
      $region43: #{style_decorator_forward.15} parent=39 // pred_region
        %s1732 = smul.u32 32, %s22
        %p1733 = scmp.lt.s32.totalorder %s21, 1
        %s1734 = scalar_select %p1733, %s21, 1
        %p1735 = scmp.lt.s32.totalorder %s1732, 31
        %s1736 = scalar_select %p1735, %s1732, 31
        %s1737 = smul.addr %s1734, 32
        %s1738 = sadd.s32 %s1736, %s1737
        %s1739 = smul.addr %s1738, 8
        %s1740 = scalar_lea.vmem %s2, %s1739
      $region44: #{style_decorator_forward.15} parent=39 // pred_fallthru
        _
    $region40: #{style_decorator_forward.15} parent=5 // pred_fallthru
      _
  $region6: #{style_decorator_forward.15} parent=0 // loop_footer
    %s12 = sadd.s32 1, %s8
  $region7: #{style_decorator_forward.15} parent=0 // loop_footer_branch
    %7 = sbr.rel target = $region3
  $region8: #{style_decorator_forward.15} parent=0 // loop_exit
    _

</llo_original>
